<compile_context>
chip_gen: v6e
topology: v6e:2x2x1
jax: 0.10.0
libtpu: 0.0.40
codegen_flags: <defaults>
</compile_context>

<pallas_src>
import jax
import jax.numpy as jnp
from jax.experimental import pallas as pl
from jax.experimental.pallas import tpu as pltpu

INPUT_DIM = 768          # BERT hidden size (CLS embedding width)
HIDDEN = 384             # LSTM hidden size
GATES = 4 * HIDDEN       # 1536 (i, f, g, o)
FEAT_DIM = 64            # fin_feature output
N_CLASS = 3              # fc output


def lstm_mood_kernel(x_ref, w1_ref, b1_ref, w2_ref, b2_ref,
                     wf_ref, bf_ref, wc_ref, bc_ref,
                     out_ref, feat_ref):
    x = x_ref[...]

    # ---- LSTM layer 1, single time step, zero initial (h, c) ----
    # h0 == 0 => recurrent term vanishes; b_hh already folded into b1.
    g1 = jnp.dot(x, w1_ref[...], preferred_element_type=jnp.float32) + b1_ref[...]
    i1 = jax.nn.sigmoid(g1[:, 0:HIDDEN])
    # forget gate would multiply c0 == 0 -> skipped
    c1 = i1 * jnp.tanh(g1[:, 2 * HIDDEN:3 * HIDDEN])
    o1 = jax.nn.sigmoid(g1[:, 3 * HIDDEN:4 * HIDDEN])
    h1 = o1 * jnp.tanh(c1)
    # inter-layer dropout(p=0.5): eval-mode identity

    # ---- LSTM layer 2, single time step, zero initial (h, c) ----
    g2 = jnp.dot(h1, w2_ref[...], preferred_element_type=jnp.float32) + b2_ref[...]
    i2 = jax.nn.sigmoid(g2[:, 0:HIDDEN])
    c2 = i2 * jnp.tanh(g2[:, 2 * HIDDEN:3 * HIDDEN])
    o2 = jax.nn.sigmoid(g2[:, 3 * HIDDEN:4 * HIDDEN])
    h2 = o2 * jnp.tanh(c2)

    # ---- heads ----
    feat = jnp.dot(h2, wf_ref[...], preferred_element_type=jnp.float32) + bf_ref[...]
    out = jnp.dot(feat, wc_ref[...], preferred_element_type=jnp.float32) + bc_ref[...]

    feat_ref[...] = feat.astype(feat_ref.dtype)
    out_ref[...] = out.astype(out_ref.dtype)


def _round_up(x, m):
    return (x + m - 1) // m * m


def lstm_mood_forward(x, kparams, *, tile_b=256):
    """x: [B, 768] CLS embeddings. Returns (outputs [B,3], feature [B,64])."""
    B = x.shape[0]
    tile_b = min(tile_b, _round_up(B, 8))
    pB = _round_up(B, tile_b)
    if pB != B:
        x = jnp.pad(x, ((0, pB - B), (0, 0)))

    const = lambda i: (0, 0)
    row = lambda i: (i, 0)

    outputs, feature = pl.pallas_call(
        lstm_mood_kernel,
        grid=(pB // tile_b,),
        in_specs=[
            pl.BlockSpec((tile_b, INPUT_DIM), row),      # x (streamed per tile)
            pl.BlockSpec((INPUT_DIM, GATES), const),     # W_ih layer 1 (resident)
            pl.BlockSpec((1, GATES), const),             # b layer 1
            pl.BlockSpec((HIDDEN, GATES), const),        # W_ih layer 2
            pl.BlockSpec((1, GATES), const),             # b layer 2
            pl.BlockSpec((HIDDEN, FEAT_DIM), const),     # fin_feature weight
            pl.BlockSpec((1, FEAT_DIM), const),          # fin_feature bias
            pl.BlockSpec((FEAT_DIM, N_CLASS), const),    # fc weight
            pl.BlockSpec((1, N_CLASS), const),           # fc bias
        ],
        out_specs=[
            pl.BlockSpec((tile_b, N_CLASS), row),
            pl.BlockSpec((tile_b, FEAT_DIM), row),
        ],
        out_shape=(
            jax.ShapeDtypeStruct((pB, N_CLASS), jnp.float32),
            jax.ShapeDtypeStruct((pB, FEAT_DIM), jnp.float32),
        ),
        compiler_params=pltpu.CompilerParams(
            dimension_semantics=("parallel",),
            vmem_limit_bytes=64 * 1024 * 1024,
        ),
    )(
        x,
        kparams["w1"], kparams["b1"],
        kparams["w2"], kparams["b2"],
        kparams["wf"], kparams["bf"],
        kparams["wc"], kparams["bc"],
    )
    return outputs[:B], feature[:B]


def init_params(key):
    """Deterministic synthetic parameters matching the nn.Module shapes.

    Weights stored pre-transposed as [in_features, out_features]."""
    ks = jax.random.split(key, 12)
    s = 0.05
    return {
        # LSTM layer 1
        "w_ih1_t": jax.random.normal(ks[0], (INPUT_DIM, GATES), jnp.float32) * s,
        "w_hh1_t": jax.random.normal(ks[1], (HIDDEN, GATES), jnp.float32) * s,
        "b_ih1": jax.random.normal(ks[2], (GATES,), jnp.float32) * s,
        "b_hh1": jax.random.normal(ks[3], (GATES,), jnp.float32) * s,
        # LSTM layer 2
        "w_ih2_t": jax.random.normal(ks[4], (HIDDEN, GATES), jnp.float32) * s,
        "w_hh2_t": jax.random.normal(ks[5], (HIDDEN, GATES), jnp.float32) * s,
        "b_ih2": jax.random.normal(ks[6], (GATES,), jnp.float32) * s,
        "b_hh2": jax.random.normal(ks[7], (GATES,), jnp.float32) * s,
        # fin_feature: 384 -> 64
        "wf": jax.random.normal(ks[8], (HIDDEN, FEAT_DIM), jnp.float32) * s,
        "bf": jax.random.normal(ks[9], (FEAT_DIM,), jnp.float32) * s,
        # fc: 64 -> 3
        "wc": jax.random.normal(ks[10], (FEAT_DIM, N_CLASS), jnp.float32) * s,
        "bc": jax.random.normal(ks[11], (N_CLASS,), jnp.float32) * s,
    }


def prep_kernel_params(p):
    """Wrapper-side folds: b = b_ih + b_hh (h0 == 0 kills the W_hh terms)."""
    return {
        "w1": p["w_ih1_t"],
        "b1": (p["b_ih1"] + p["b_hh1"])[None, :],
        "w2": p["w_ih2_t"],
        "b2": (p["b_ih2"] + p["b_hh2"])[None, :],
        "wf": p["wf"],
        "bf": p["bf"][None, :],
        "wc": p["wc"],
        "bc": p["bc"][None, :],
    }


def reference_forward(x, p):
    """Plain-JAX reference reproducing the full PyTorch LSTM cell math
    (including the zero h0/c0 terms) for sanity checking."""
    B = x.shape[0]

    def cell(inp, h_prev, c_prev, w_ih_t, w_hh_t, b_ih, b_hh):
        g = inp @ w_ih_t + h_prev @ w_hh_t + b_ih + b_hh
        i = jax.nn.sigmoid(g[:, 0:HIDDEN])
        f = jax.nn.sigmoid(g[:, HIDDEN:2 * HIDDEN])
        gg = jnp.tanh(g[:, 2 * HIDDEN:3 * HIDDEN])
        o = jax.nn.sigmoid(g[:, 3 * HIDDEN:4 * HIDDEN])
        c = f * c_prev + i * gg
        h = o * jnp.tanh(c)
        return h, c

    h0 = jnp.zeros((B, HIDDEN), jnp.float32)
    c0 = jnp.zeros((B, HIDDEN), jnp.float32)
    h1, _ = cell(x, h0, c0, p["w_ih1_t"], p["w_hh1_t"], p["b_ih1"], p["b_hh1"])
    h2, _ = cell(h1, h0, c0, p["w_ih2_t"], p["w_hh2_t"], p["b_ih2"], p["b_hh2"])
    feature = h2 @ p["wf"] + p["bf"]
    outputs = feature @ p["wc"] + p["bc"]
    return outputs, feature


if __name__ == "__main__":
    key = jax.random.PRNGKey(0)
    k_x, k_p = jax.random.split(key)

    B = 8
    x = jax.random.normal(k_x, (B, INPUT_DIM), jnp.float32)  # BERT CLS embeddings
    params = init_params(k_p)
    kparams = prep_kernel_params(params)

    outputs, feature = lstm_mood_forward(x, kparams)
    outputs, feature = jax.block_until_ready((outputs, feature))

    ref_out, ref_feat = reference_forward(x, params)
    assert outputs.shape == (B, N_CLASS)
    assert feature.shape == (B, FEAT_DIM)
    assert jnp.allclose(outputs, ref_out, atol=1e-4, rtol=1e-4)
    assert jnp.allclose(feature, ref_feat, atol=1e-4, rtol=1e-4)

    print("KERNEL_OK")
</pallas_src>

<mosaic_0001>
module attributes {stable_mosaic.version = 11 : i64} {
  func.func @lstm_mood_kernel(%arg0: i32, %arg1: memref<8x768xf32, #tpu.memory_space<vmem>>, %arg2: memref<768x1536xf32, #tpu.memory_space<vmem>>, %arg3: memref<1x1536xf32, #tpu.memory_space<vmem>>, %arg4: memref<384x1536xf32, #tpu.memory_space<vmem>>, %arg5: memref<1x1536xf32, #tpu.memory_space<vmem>>, %arg6: memref<384x64xf32, #tpu.memory_space<vmem>>, %arg7: memref<1x64xf32, #tpu.memory_space<vmem>>, %arg8: memref<64x3xf32, #tpu.memory_space<vmem>>, %arg9: memref<1x3xf32, #tpu.memory_space<vmem>>, %arg10: memref<8x3xf32, #tpu.memory_space<vmem>>, %arg11: memref<8x64xf32, #tpu.memory_space<vmem>>) attributes {dimension_semantics = [#tpu.dimension_semantics<parallel>], iteration_bounds = array<i64: 1>, scalar_prefetch = 0 : i64, scratch_operands = 0 : i64, tpu.core_type = #tpu.core_type<tc>, window_params = [{transform_indices = @transform_0, window_bounds = array<i64: 8, 768>}, {pipeline_mode = #tpu.pipeline_mode<synchronous>, transform_indices = @transform_1, window_bounds = array<i64: 768, 1536>}, {pipeline_mode = #tpu.pipeline_mode<synchronous>, transform_indices = @transform_2, window_bounds = array<i64: 1, 1536>}, {pipeline_mode = #tpu.pipeline_mode<synchronous>, transform_indices = @transform_3, window_bounds = array<i64: 384, 1536>}, {pipeline_mode = #tpu.pipeline_mode<synchronous>, transform_indices = @transform_4, window_bounds = array<i64: 1, 1536>}, {pipeline_mode = #tpu.pipeline_mode<synchronous>, transform_indices = @transform_5, window_bounds = array<i64: 384, 64>}, {pipeline_mode = #tpu.pipeline_mode<synchronous>, transform_indices = @transform_6, window_bounds = array<i64: 1, 64>}, {pipeline_mode = #tpu.pipeline_mode<synchronous>, transform_indices = @transform_7, window_bounds = array<i64: 64, 3>}, {pipeline_mode = #tpu.pipeline_mode<synchronous>, transform_indices = @transform_8, window_bounds = array<i64: 1, 3>}, {transform_indices = @transform_9, window_bounds = array<i64: 8, 3>}, {transform_indices = @transform_10, window_bounds = array<i64: 8, 64>}]} {
    %c0 = arith.constant 0 : index
    %c0_0 = arith.constant 0 : index
    %0 = vector.load %arg1[%c0, %c0_0] : memref<8x768xf32, #tpu.memory_space<vmem>>, vector<8x768xf32>
    %c0_1 = arith.constant 0 : index
    %c0_2 = arith.constant 0 : index
    %1 = vector.load %arg2[%c0_1, %c0_2] : memref<768x1536xf32, #tpu.memory_space<vmem>>, vector<768x1536xf32>
    %cst = arith.constant dense<0.000000e+00> : vector<8x1536xf32>
    %2 = tpu.matmul %0, %1, %cst {dimension_numbers = #tpu.dot_dimension_numbers<[1], [0], [0], [1], [0, 0, 1, 1], [], []>} : vector<8x768xf32>, vector<768x1536xf32>, vector<8x1536xf32> -> vector<8x1536xf32>
    %c0_3 = arith.constant 0 : index
    %c0_4 = arith.constant 0 : index
    %3 = vector.load %arg3[%c0_3, %c0_4] : memref<1x1536xf32, #tpu.memory_space<vmem>>, vector<1x1536xf32>
    %4 = vector.broadcast %3 : vector<1x1536xf32> to vector<8x1536xf32>
    %5 = arith.addf %2, %4 : vector<8x1536xf32>
    %6 = vector.extract_strided_slice %5 {offsets = [0, 0], sizes = [8, 384], strides = [1, 1]} : vector<8x1536xf32> to vector<8x384xf32>
    %7 = arith.negf %6 : vector<8x384xf32>
    %8 = math.exp %7 : vector<8x384xf32>
    %cst_5 = arith.constant 1.000000e+00 : f32
    %9 = vector.broadcast %cst_5 : f32 to vector<8x384xf32>
    %10 = arith.addf %9, %8 : vector<8x384xf32>
    %11 = arith.divf %9, %10 : vector<8x384xf32>
    %12 = vector.extract_strided_slice %5 {offsets = [0, 768], sizes = [8, 384], strides = [1, 1]} : vector<8x1536xf32> to vector<8x384xf32>
    %13 = math.tanh %12 : vector<8x384xf32>
    %14 = arith.mulf %11, %13 : vector<8x384xf32>
    %15 = vector.extract_strided_slice %5 {offsets = [0, 1152], sizes = [8, 384], strides = [1, 1]} : vector<8x1536xf32> to vector<8x384xf32>
    %16 = arith.negf %15 : vector<8x384xf32>
    %17 = math.exp %16 : vector<8x384xf32>
    %cst_6 = arith.constant 1.000000e+00 : f32
    %18 = vector.broadcast %cst_6 : f32 to vector<8x384xf32>
    %19 = arith.addf %18, %17 : vector<8x384xf32>
    %20 = arith.divf %18, %19 : vector<8x384xf32>
    %21 = math.tanh %14 : vector<8x384xf32>
    %22 = arith.mulf %20, %21 : vector<8x384xf32>
    %c0_7 = arith.constant 0 : index
    %c0_8 = arith.constant 0 : index
    %23 = vector.load %arg4[%c0_7, %c0_8] : memref<384x1536xf32, #tpu.memory_space<vmem>>, vector<384x1536xf32>
    %cst_9 = arith.constant dense<0.000000e+00> : vector<8x1536xf32>
    %24 = tpu.matmul %22, %23, %cst_9 {dimension_numbers = #tpu.dot_dimension_numbers<[1], [0], [0], [1], [0, 0, 1, 1], [], []>} : vector<8x384xf32>, vector<384x1536xf32>, vector<8x1536xf32> -> vector<8x1536xf32>
    %c0_10 = arith.constant 0 : index
    %c0_11 = arith.constant 0 : index
    %25 = vector.load %arg5[%c0_10, %c0_11] : memref<1x1536xf32, #tpu.memory_space<vmem>>, vector<1x1536xf32>
    %26 = vector.broadcast %25 : vector<1x1536xf32> to vector<8x1536xf32>
    %27 = arith.addf %24, %26 : vector<8x1536xf32>
    %28 = vector.extract_strided_slice %27 {offsets = [0, 0], sizes = [8, 384], strides = [1, 1]} : vector<8x1536xf32> to vector<8x384xf32>
    %29 = arith.negf %28 : vector<8x384xf32>
    %30 = math.exp %29 : vector<8x384xf32>
    %cst_12 = arith.constant 1.000000e+00 : f32
    %31 = vector.broadcast %cst_12 : f32 to vector<8x384xf32>
    %32 = arith.addf %31, %30 : vector<8x384xf32>
    %33 = arith.divf %31, %32 : vector<8x384xf32>
    %34 = vector.extract_strided_slice %27 {offsets = [0, 768], sizes = [8, 384], strides = [1, 1]} : vector<8x1536xf32> to vector<8x384xf32>
    %35 = math.tanh %34 : vector<8x384xf32>
    %36 = arith.mulf %33, %35 : vector<8x384xf32>
    %37 = vector.extract_strided_slice %27 {offsets = [0, 1152], sizes = [8, 384], strides = [1, 1]} : vector<8x1536xf32> to vector<8x384xf32>
    %38 = arith.negf %37 : vector<8x384xf32>
    %39 = math.exp %38 : vector<8x384xf32>
    %cst_13 = arith.constant 1.000000e+00 : f32
    %40 = vector.broadcast %cst_13 : f32 to vector<8x384xf32>
    %41 = arith.addf %40, %39 : vector<8x384xf32>
    %42 = arith.divf %40, %41 : vector<8x384xf32>
    %43 = math.tanh %36 : vector<8x384xf32>
    %44 = arith.mulf %42, %43 : vector<8x384xf32>
    %c0_14 = arith.constant 0 : index
    %c0_15 = arith.constant 0 : index
    %45 = vector.load %arg6[%c0_14, %c0_15] : memref<384x64xf32, #tpu.memory_space<vmem>>, vector<384x64xf32>
    %cst_16 = arith.constant dense<0.000000e+00> : vector<8x64xf32>
    %46 = tpu.matmul %44, %45, %cst_16 {dimension_numbers = #tpu.dot_dimension_numbers<[1], [0], [0], [1], [0, 0, 1, 1], [], []>} : vector<8x384xf32>, vector<384x64xf32>, vector<8x64xf32> -> vector<8x64xf32>
    %c0_17 = arith.constant 0 : index
    %c0_18 = arith.constant 0 : index
    %47 = vector.load %arg7[%c0_17, %c0_18] : memref<1x64xf32, #tpu.memory_space<vmem>>, vector<1x64xf32>
    %48 = vector.broadcast %47 : vector<1x64xf32> to vector<8x64xf32>
    %49 = arith.addf %46, %48 : vector<8x64xf32>
    %c0_19 = arith.constant 0 : index
    %c0_20 = arith.constant 0 : index
    %50 = vector.load %arg8[%c0_19, %c0_20] : memref<64x3xf32, #tpu.memory_space<vmem>>, vector<64x3xf32>
    %cst_21 = arith.constant dense<0.000000e+00> : vector<8x3xf32>
    %51 = tpu.matmul %49, %50, %cst_21 {dimension_numbers = #tpu.dot_dimension_numbers<[1], [0], [0], [1], [0, 0, 1, 1], [], []>} : vector<8x64xf32>, vector<64x3xf32>, vector<8x3xf32> -> vector<8x3xf32>
    %c0_22 = arith.constant 0 : index
    %c0_23 = arith.constant 0 : index
    %52 = vector.load %arg9[%c0_22, %c0_23] : memref<1x3xf32, #tpu.memory_space<vmem>>, vector<1x3xf32>
    %53 = vector.broadcast %52 : vector<1x3xf32> to vector<8x3xf32>
    %54 = arith.addf %51, %53 : vector<8x3xf32>
    %c0_24 = arith.constant 0 : index
    %c0_25 = arith.constant 0 : index
    %55 = vector.load %arg11[%c0_24, %c0_25] : memref<8x64xf32, #tpu.memory_space<vmem>>, vector<8x64xf32>
    tpu.vector_store %arg11[%c0_24, %c0_25], %49 {strides = array<i32>} : memref<8x64xf32, #tpu.memory_space<vmem>>, vector<8x64xf32>,
    %c0_26 = arith.constant 0 : index
    %c0_27 = arith.constant 0 : index
    %56 = vector.load %arg10[%c0_26, %c0_27] : memref<8x3xf32, #tpu.memory_space<vmem>>, vector<8x3xf32>
    tpu.vector_store %arg10[%c0_26, %c0_27], %54 {strides = array<i32>} : memref<8x3xf32, #tpu.memory_space<vmem>>, vector<8x3xf32>,
    return
  }
  func.func @transform_0(%arg0: i32) -> (i32, i32) {
    %c0_i32 = arith.constant 0 : i32
    %c0_i32_0 = arith.constant 0 : i32
    return %arg0, %c0_i32 : i32, i32
  }
  func.func @transform_1(%arg0: i32) -> (i32, i32) {
    %c0_i32 = arith.constant 0 : i32
    %c0_i32_0 = arith.constant 0 : i32
    %c0_i32_1 = arith.constant 0 : i32
    return %c0_i32, %c0_i32_0 : i32, i32
  }
  func.func @transform_2(%arg0: i32) -> (i32, i32) {
    %c0_i32 = arith.constant 0 : i32
    %c0_i32_0 = arith.constant 0 : i32
    %c0_i32_1 = arith.constant 0 : i32
    return %c0_i32, %c0_i32_0 : i32, i32
  }
  func.func @transform_3(%arg0: i32) -> (i32, i32) {
    %c0_i32 = arith.constant 0 : i32
    %c0_i32_0 = arith.constant 0 : i32
    %c0_i32_1 = arith.constant 0 : i32
    return %c0_i32, %c0_i32_0 : i32, i32
  }
  func.func @transform_4(%arg0: i32) -> (i32, i32) {
    %c0_i32 = arith.constant 0 : i32
    %c0_i32_0 = arith.constant 0 : i32
    %c0_i32_1 = arith.constant 0 : i32
    return %c0_i32, %c0_i32_0 : i32, i32
  }
  func.func @transform_5(%arg0: i32) -> (i32, i32) {
    %c0_i32 = arith.constant 0 : i32
    %c0_i32_0 = arith.constant 0 : i32
    %c0_i32_1 = arith.constant 0 : i32
    return %c0_i32, %c0_i32_0 : i32, i32
  }
  func.func @transform_6(%arg0: i32) -> (i32, i32) {
    %c0_i32 = arith.constant 0 : i32
    %c0_i32_0 = arith.constant 0 : i32
    %c0_i32_1 = arith.constant 0 : i32
    return %c0_i32, %c0_i32_0 : i32, i32
  }
  func.func @transform_7(%arg0: i32) -> (i32, i32) {
    %c0_i32 = arith.constant 0 : i32
    %c0_i32_0 = arith.constant 0 : i32
    %c0_i32_1 = arith.constant 0 : i32
    return %c0_i32, %c0_i32_0 : i32, i32
  }
  func.func @transform_8(%arg0: i32) -> (i32, i32) {
    %c0_i32 = arith.constant 0 : i32
    %c0_i32_0 = arith.constant 0 : i32
    %c0_i32_1 = arith.constant 0 : i32
    return %c0_i32, %c0_i32_0 : i32, i32
  }
  func.func @transform_9(%arg0: i32) -> (i32, i32) {
    %c0_i32 = arith.constant 0 : i32
    %c0_i32_0 = arith.constant 0 : i32
    return %arg0, %c0_i32 : i32, i32
  }
  func.func @transform_10(%arg0: i32) -> (i32, i32) {
    %c0_i32 = arith.constant 0 : i32
    %c0_i32_0 = arith.constant 0 : i32
    return %arg0, %c0_i32 : i32, i32
  }
}

</mosaic_0001>

<llo_original>
// kernel: tpu_custom_call.1
$region0: #{tpu_custom_call.1}
  #allocation0 [shape = 'u32[]', space=smem, size = 0x4, offset = 0x4, fixed_abs, tag = 'smem constant byte address 0x4 - core index']
  #allocation1 [shape = 'u32[144,128]{1,0:T(1,128)}', space=vmem, size = 0x12000, scoped, tag = 'internal scratch']
  %s0 = inlined_call_operand.hbm [shape: f32[8,768], index: 0, kind: input, shape index: {}]
  %s1 = inlined_call_operand.hbm [shape: f32[768,1536], index: 1, kind: input, shape index: {}]
  %s2 = inlined_call_operand.hbm [shape: f32[1,1536], index: 2, kind: input, shape index: {}]
  %s3 = inlined_call_operand.hbm [shape: f32[384,1536], index: 3, kind: input, shape index: {}]
  %s4 = inlined_call_operand.hbm [shape: f32[1,1536], index: 4, kind: input, shape index: {}]
  %s5 = inlined_call_operand.vmem [shape: f32[384,64], index: 5, kind: input, shape index: {}]
  %s6 = inlined_call_operand.hbm [shape: f32[1,64], index: 6, kind: input, shape index: {}]
  %s7 = inlined_call_operand.vmem [shape: f32[64,3], index: 7, kind: input, shape index: {}]
  %s8 = inlined_call_operand.hbm [shape: f32[1,3], index: 8, kind: input, shape index: {}]
  %s9 = inlined_call_operand.vmem [shape: f32[8,3], index: 9, kind: output, shape index: {0}]
  %s10 = inlined_call_operand.hbm [shape: f32[8,64], index: 10, kind: output, shape index: {1}]
  %11 = xla_tuple %s9, %s10
  %s12 = sld [smem:[#allocation0]]
  $region82: #{tpu_custom_call.1} parent=0
    _
  %s14 = ssub.s32 1, %s12
  %s15 = scalar_select 0, %s14, %s12
  $region1: #{tpu_custom_call.1} parent=0
    #allocation2 [shape = 'u8[24576]{0}', space=vmem, size = 0x6000, scoped, tag = 'input window, operand 0, single buffered']
    #allocation3 [shape = 's32[1]{0}', space=sflag, size = 0x4, scoped, tag = 'scoped memory for tpu_custom_call.1']
    #allocation4 [shape = 's32[1]{0}', space=sflag, size = 0x4, scoped, tag = 'scoped memory for tpu_custom_call.1']
    #allocation5 [shape = 'u8[4718592]{0}', space=vmem, size = 0x480000, scoped, tag = 'input window, operand 1, single buffered']
    #allocation6 [shape = 's32[1]{0}', space=sflag, size = 0x4, scoped, tag = 'scoped memory for tpu_custom_call.1']
    #allocation7 [shape = 'u8[6144]{0}', space=vmem, size = 0x1800, scoped, tag = 'input window, operand 2, single buffered']
    #allocation8 [shape = 'u8[2359296]{0}', space=vmem, size = 0x240000, scoped, tag = 'input window, operand 3, single buffered']
    #allocation9 [shape = 's32[1]{0}', space=sflag, size = 0x4, scoped, tag = 'scoped memory for tpu_custom_call.1']
    #allocation10 [shape = 'u8[6144]{0}', space=vmem, size = 0x1800, scoped, tag = 'input window, operand 4, single buffered']
    #allocation11 [shape = 'u8[512]{0}', space=vmem, size = 0x400, scoped, tag = 'input window, operand 6, single buffered']
    #allocation12 [shape = 's32[1]{0}', space=sflag, size = 0x4, scoped, tag = 'scoped memory for tpu_custom_call.1']
    #allocation13 [shape = 'u8[512]{0}', space=vmem, size = 0x400, scoped, tag = 'input window, operand 8, single buffered']
    #allocation14 [shape = 'u8[4096]{0}', space=vmem, size = 0x1000, scoped, tag = 'output window, operand 1, single buffered']
    %16 = vsyncpa [#allocation3], 0
    %17 = vsyncpa [#allocation6], 0
    %18 = vsyncpa [#allocation9], 0
    %19 = vsyncpa [#allocation12], 0
    %20 = vsyncpa [#allocation4], 0
    // Predicated region
    $region2: #{tpu_custom_call.1} parent=1 // pred_check
      _
    $region3: #{tpu_custom_call.1} parent=1 // pred_check_branch
      %22 = sbr.rel (0) target = $region5
    $region4: #{tpu_custom_call.1} parent=1 // pred_region
      %s24 = ssub.s32 768, 768
      %25 = vsyncadd [#allocation3], %s24
      %s27 = sshll.u32 [#allocation2], 4
      %s28 = int_to_ptr.vmem [resolvable:$true] %s27
      %30 = dma.hbm_to_vmem [thread:$0]  %s0, 768, %s28, [#allocation3]
    $region5: #{tpu_custom_call.1} parent=1 // pred_fallthru
      _
    // Predicated region
    $region6: #{tpu_custom_call.1} parent=1 // pred_check
      _
    $region7: #{tpu_custom_call.1} parent=1 // pred_check_branch
      %32 = sbr.rel (0) target = $region9
    $region8: #{tpu_custom_call.1} parent=1 // pred_region
      %s34 = ssub.s32 147456, 147456
      %35 = vsyncadd [#allocation6], %s34
      %s36 = sshll.u32 [#allocation5], 4
      %s37 = int_to_ptr.vmem [resolvable:$true] %s36
      %42 = dma.hbm_to_vmem [thread:$0]  %s1, 147456, %s37, [#allocation6], 1536, 1536, 96
    $region9: #{tpu_custom_call.1} parent=1 // pred_fallthru
      _
    // Predicated region
    $region10: #{tpu_custom_call.1} parent=1 // pred_check
      _
    $region11: #{tpu_custom_call.1} parent=1 // pred_check_branch
      %44 = sbr.rel (0) target = $region13
    $region12: #{tpu_custom_call.1} parent=1 // pred_region
      %s46 = ssub.s32 192, 192
      %47 = vsyncadd [#allocation6], %s46
      %s49 = sshll.u32 [#allocation7], 4
      %s50 = int_to_ptr.vmem [resolvable:$true] %s49
      %52 = dma.hbm_to_vmem [thread:$0]  %s2, 192, %s50, [#allocation6]
    $region13: #{tpu_custom_call.1} parent=1 // pred_fallthru
      _
    // Predicated region
    $region14: #{tpu_custom_call.1} parent=1 // pred_check
      _
    $region15: #{tpu_custom_call.1} parent=1 // pred_check_branch
      %54 = sbr.rel (0) target = $region17
    $region16: #{tpu_custom_call.1} parent=1 // pred_region
      %s56 = ssub.s32 73728, 73728
      %57 = vsyncadd [#allocation9], %s56
      %s58 = sshll.u32 [#allocation8], 4
      %s59 = int_to_ptr.vmem [resolvable:$true] %s58
      %64 = dma.hbm_to_vmem [thread:$0]  %s3, 73728, %s59, [#allocation9], 1536, 1536, 96
    $region17: #{tpu_custom_call.1} parent=1 // pred_fallthru
      _
    // Predicated region
    $region18: #{tpu_custom_call.1} parent=1 // pred_check
      _
    $region19: #{tpu_custom_call.1} parent=1 // pred_check_branch
      %66 = sbr.rel (0) target = $region21
    $region20: #{tpu_custom_call.1} parent=1 // pred_region
      %s68 = ssub.s32 192, 192
      %69 = vsyncadd [#allocation9], %s68
      %s71 = sshll.u32 [#allocation10], 4
      %s72 = int_to_ptr.vmem [resolvable:$true] %s71
      %74 = dma.hbm_to_vmem [thread:$0]  %s4, 192, %s72, [#allocation9]
    $region21: #{tpu_custom_call.1} parent=1 // pred_fallthru
      _
    // Predicated region
    $region22: #{tpu_custom_call.1} parent=1 // pred_check
      _
    $region23: #{tpu_custom_call.1} parent=1 // pred_check_branch
      %76 = sbr.rel (0) target = $region25
    $region24: #{tpu_custom_call.1} parent=1 // pred_region
      _
    $region25: #{tpu_custom_call.1} parent=1 // pred_fallthru
      _
    // Predicated region
    $region26: #{tpu_custom_call.1} parent=1 // pred_check
      _
    $region27: #{tpu_custom_call.1} parent=1 // pred_check_branch
      %78 = sbr.rel (0) target = $region29
    $region28: #{tpu_custom_call.1} parent=1 // pred_region
      %s80 = ssub.s32 16, 16
      %81 = vsyncadd [#allocation12], %s80
      %s83 = sshll.u32 [#allocation11], 4
      %s84 = int_to_ptr.vmem [resolvable:$true] %s83
      %86 = dma.hbm_to_vmem [thread:$0]  %s6, 16, %s84, [#allocation12]
    $region29: #{tpu_custom_call.1} parent=1 // pred_fallthru
      _
    // Predicated region
    $region30: #{tpu_custom_call.1} parent=1 // pred_check
      _
    $region31: #{tpu_custom_call.1} parent=1 // pred_check_branch
      %88 = sbr.rel (0) target = $region33
    $region32: #{tpu_custom_call.1} parent=1 // pred_region
      _
    $region33: #{tpu_custom_call.1} parent=1 // pred_fallthru
      _
    // Predicated region
    $region34: #{tpu_custom_call.1} parent=1 // pred_check
      _
    $region35: #{tpu_custom_call.1} parent=1 // pred_check_branch
      %90 = sbr.rel (0) target = $region37
    $region36: #{tpu_custom_call.1} parent=1 // pred_region
      %s92 = ssub.s32 16, 16
      %93 = vsyncadd [#allocation12], %s92
      %s95 = sshll.u32 [#allocation13], 4
      %s96 = int_to_ptr.vmem [resolvable:$true] %s95
      %98 = dma.hbm_to_vmem [thread:$0]  %s8, 16, %s96, [#allocation12]
    $region37: #{tpu_custom_call.1} parent=1 // pred_fallthru
      _
    // Predicated region
    $region38: #{tpu_custom_call.1} parent=1 // pred_check
      _
    $region39: #{tpu_custom_call.1} parent=1 // pred_check_branch
      %100 = sbr.rel (0) target = $region41
    $region40: #{tpu_custom_call.1} parent=1 // pred_region
      %101 = dma.done [#allocation3], 768
    $region41: #{tpu_custom_call.1} parent=1 // pred_fallthru
      _
    // Predicated region
    $region42: #{tpu_custom_call.1} parent=1 // pred_check
      _
    $region43: #{tpu_custom_call.1} parent=1 // pred_check_branch
      %103 = sbr.rel (0) target = $region45
    $region44: #{tpu_custom_call.1} parent=1 // pred_region
      %104 = dma.done [#allocation6], 147456
    $region45: #{tpu_custom_call.1} parent=1 // pred_fallthru
      _
    // Predicated region
    $region46: #{tpu_custom_call.1} parent=1 // pred_check
      _
    $region47: #{tpu_custom_call.1} parent=1 // pred_check_branch
      %106 = sbr.rel (0) target = $region49
    $region48: #{tpu_custom_call.1} parent=1 // pred_region
      %107 = dma.done [#allocation6], 192
    $region49: #{tpu_custom_call.1} parent=1 // pred_fallthru
      _
    // Predicated region
    $region50: #{tpu_custom_call.1} parent=1 // pred_check
      _
    $region51: #{tpu_custom_call.1} parent=1 // pred_check_branch
      %109 = sbr.rel (0) target = $region53
    $region52: #{tpu_custom_call.1} parent=1 // pred_region
      %110 = dma.done [#allocation9], 73728
    $region53: #{tpu_custom_call.1} parent=1 // pred_fallthru
      _
    // Predicated region
    $region54: #{tpu_custom_call.1} parent=1 // pred_check
      _
    $region55: #{tpu_custom_call.1} parent=1 // pred_check_branch
      %112 = sbr.rel (0) target = $region57
    $region56: #{tpu_custom_call.1} parent=1 // pred_region
      %113 = dma.done [#allocation9], 192
    $region57: #{tpu_custom_call.1} parent=1 // pred_fallthru
      _
    // Predicated region
    $region58: #{tpu_custom_call.1} parent=1 // pred_check
      _
    $region59: #{tpu_custom_call.1} parent=1 // pred_check_branch
      %115 = sbr.rel (0) target = $region61
    $region60: #{tpu_custom_call.1} parent=1 // pred_region
      %116 = dma.done [#allocation12], 16
    $region61: #{tpu_custom_call.1} parent=1 // pred_fallthru
      _
    // Predicated region
    $region62: #{tpu_custom_call.1} parent=1 // pred_check
      _
    $region63: #{tpu_custom_call.1} parent=1 // pred_check_branch
      %118 = sbr.rel (0) target = $region65
    $region64: #{tpu_custom_call.1} parent=1 // pred_region
      %119 = dma.done [#allocation12], 16
    $region65: #{tpu_custom_call.1} parent=1 // pred_fallthru
      _
    %v120 = vld [vmem:[#allocation2] sm:$0xff]
    %v121 = vld [vmem:[#allocation2 + $0x8] sm:$0xff]
    %v122 = vld [vmem:[#allocation2 + $0x10] sm:$0xff]
    %v123 = vld [vmem:[#allocation2 + $0x18] sm:$0xff]
    %v124 = vld [vmem:[#allocation2 + $0x20] sm:$0xff]
    %v125 = vld [vmem:[#allocation2 + $0x28] sm:$0xff]
    %v126 = vld [vmem:[#allocation5] sm:$0xff]
    %v127 = vld [vmem:[#allocation5 + $0x8] sm:$0xff]
    %v128 = vld [vmem:[#allocation5 + $0x10] sm:$0xff]
    %v129 = vld [vmem:[#allocation5 + $0x18] sm:$0xff]
    %v130 = vld [vmem:[#allocation5 + $0x30] sm:$0xff]
    %v131 = vld [vmem:[#allocation5 + $0x38] sm:$0xff]
    %v132 = vld [vmem:[#allocation5 + $0x40] sm:$0xff]
    %v133 = vld [vmem:[#allocation5 + $0x48] sm:$0xff]
    %v134 = vld [vmem:[#allocation5 + $0x50] sm:$0xff]
    %v135 = vld [vmem:[#allocation5 + $0x58] sm:$0xff]
    %v136 = vld [vmem:[#allocation5 + $0x60] sm:$0xff]
    %v137 = vld [vmem:[#allocation5 + $0x68] sm:$0xff]
    %v138 = vld [vmem:[#allocation5 + $0x70] sm:$0xff]
    %v139 = vld [vmem:[#allocation5 + $0x78] sm:$0xff]
    %v140 = vld [vmem:[#allocation5 + $0x90] sm:$0xff]
    %v141 = vld [vmem:[#allocation5 + $0x98] sm:$0xff]
    %v142 = vld [vmem:[#allocation5 + $0xa0] sm:$0xff]
    %v143 = vld [vmem:[#allocation5 + $0xa8] sm:$0xff]
    %v144 = vld [vmem:[#allocation5 + $0xb0] sm:$0xff]
    %v145 = vld [vmem:[#allocation5 + $0xb8] sm:$0xff]
    %v146 = vld [vmem:[#allocation5 + $0xc0] sm:$0xff]
    %v147 = vld [vmem:[#allocation5 + $0xc8] sm:$0xff]
    %v148 = vld [vmem:[#allocation5 + $0xd0] sm:$0xff]
    %v149 = vld [vmem:[#allocation5 + $0xd8] sm:$0xff]
    %v150 = vld [vmem:[#allocation5 + $0xf0] sm:$0xff]
    %v151 = vld [vmem:[#allocation5 + $0xf8] sm:$0xff]
    %v152 = vld [vmem:[#allocation5 + $0x100] sm:$0xff]
    %v153 = vld [vmem:[#allocation5 + $0x108] sm:$0xff]
    %v154 = vld [vmem:[#allocation5 + $0x110] sm:$0xff]
    %v155 = vld [vmem:[#allocation5 + $0x118] sm:$0xff]
    %v156 = vld [vmem:[#allocation5 + $0x120] sm:$0xff]
    %v157 = vld [vmem:[#allocation5 + $0x128] sm:$0xff]
    %v158 = vld [vmem:[#allocation5 + $0x130] sm:$0xff]
    %v159 = vld [vmem:[#allocation5 + $0x138] sm:$0xff]
    %v160 = vld [vmem:[#allocation5 + $0x150] sm:$0xff]
    %v161 = vld [vmem:[#allocation5 + $0x158] sm:$0xff]
    %v162 = vld [vmem:[#allocation5 + $0x160] sm:$0xff]
    %v163 = vld [vmem:[#allocation5 + $0x168] sm:$0xff]
    %v164 = vld [vmem:[#allocation5 + $0x170] sm:$0xff]
    %v165 = vld [vmem:[#allocation5 + $0x178] sm:$0xff]
    %v166 = vld [vmem:[#allocation5 + $0x180] sm:$0xff]
    %v167 = vld [vmem:[#allocation5 + $0x188] sm:$0xff]
    %v168 = vld [vmem:[#allocation5 + $0x190] sm:$0xff]
    %v169 = vld [vmem:[#allocation5 + $0x198] sm:$0xff]
    %v170 = vld [vmem:[#allocation5 + $0x1b0] sm:$0xff]
    %v171 = vld [vmem:[#allocation5 + $0x1b8] sm:$0xff]
    %v172 = vld [vmem:[#allocation5 + $0x1c0] sm:$0xff]
    %v173 = vld [vmem:[#allocation5 + $0x1c8] sm:$0xff]
    %v174 = vld [vmem:[#allocation5 + $0x1d0] sm:$0xff]
    %v175 = vld [vmem:[#allocation5 + $0x1d8] sm:$0xff]
    %v176 = vld [vmem:[#allocation5 + $0x1e0] sm:$0xff]
    %v177 = vld [vmem:[#allocation5 + $0x1e8] sm:$0xff]
    %v178 = vld [vmem:[#allocation5 + $0x1f0] sm:$0xff]
    %v179 = vld [vmem:[#allocation5 + $0x1f8] sm:$0xff]
    %v180 = vld [vmem:[#allocation5 + $0x210] sm:$0xff]
    %v181 = vld [vmem:[#allocation5 + $0x218] sm:$0xff]
    %v182 = vld [vmem:[#allocation5 + $0x220] sm:$0xff]
    %v183 = vld [vmem:[#allocation5 + $0x228] sm:$0xff]
    %v184 = vld [vmem:[#allocation5 + $0x230] sm:$0xff]
    %v185 = vld [vmem:[#allocation5 + $0x238] sm:$0xff]
    %v186 = vld [vmem:[#allocation5 + $0x240] sm:$0xff]
    %v187 = vld [vmem:[#allocation5 + $0x248] sm:$0xff]
    %v188 = vld [vmem:[#allocation5 + $0x250] sm:$0xff]
    %v189 = vld [vmem:[#allocation5 + $0x258] sm:$0xff]
    %v190 = vld [vmem:[#allocation5 + $0x270] sm:$0xff]
    %v191 = vld [vmem:[#allocation5 + $0x278] sm:$0xff]
    %v192 = vld [vmem:[#allocation5 + $0x280] sm:$0xff]
    %v193 = vld [vmem:[#allocation5 + $0x288] sm:$0xff]
    %v194 = vld [vmem:[#allocation5 + $0x290] sm:$0xff]
    %v195 = vld [vmem:[#allocation5 + $0x298] sm:$0xff]
    %v196 = vld [vmem:[#allocation5 + $0x2a0] sm:$0xff]
    %v197 = vld [vmem:[#allocation5 + $0x2a8] sm:$0xff]
    %v198 = vld [vmem:[#allocation5 + $0x2b0] sm:$0xff]
    %v199 = vld [vmem:[#allocation5 + $0x2b8] sm:$0xff]
    %v200 = vld [vmem:[#allocation5 + $0x2d0] sm:$0xff]
    %v201 = vld [vmem:[#allocation5 + $0x2d8] sm:$0xff]
    %v202 = vld [vmem:[#allocation5 + $0x2e0] sm:$0xff]
    %v203 = vld [vmem:[#allocation5 + $0x2e8] sm:$0xff]
    %v204 = vld [vmem:[#allocation5 + $0x2f0] sm:$0xff]
    %v205 = vld [vmem:[#allocation5 + $0x2f8] sm:$0xff]
    %v206 = vld [vmem:[#allocation5 + $0x300] sm:$0xff]
    %v207 = vld [vmem:[#allocation5 + $0x308] sm:$0xff]
    %v208 = vld [vmem:[#allocation5 + $0x310] sm:$0xff]
    %v209 = vld [vmem:[#allocation5 + $0x318] sm:$0xff]
    %v210 = vld [vmem:[#allocation5 + $0x330] sm:$0xff]
    %v211 = vld [vmem:[#allocation5 + $0x338] sm:$0xff]
    %v212 = vld [vmem:[#allocation5 + $0x340] sm:$0xff]
    %v213 = vld [vmem:[#allocation5 + $0x348] sm:$0xff]
    %v214 = vld [vmem:[#allocation5 + $0x350] sm:$0xff]
    %v215 = vld [vmem:[#allocation5 + $0x358] sm:$0xff]
    %v216 = vld [vmem:[#allocation5 + $0x360] sm:$0xff]
    %v217 = vld [vmem:[#allocation5 + $0x368] sm:$0xff]
    %v218 = vld [vmem:[#allocation5 + $0x370] sm:$0xff]
    %v219 = vld [vmem:[#allocation5 + $0x378] sm:$0xff]
    %v220 = vld [vmem:[#allocation5 + $0x390] sm:$0xff]
    %v221 = vld [vmem:[#allocation5 + $0x398] sm:$0xff]
    %v222 = vld [vmem:[#allocation5 + $0x3a0] sm:$0xff]
    %v223 = vld [vmem:[#allocation5 + $0x3a8] sm:$0xff]
    %v224 = vld [vmem:[#allocation5 + $0x3b0] sm:$0xff]
    %v225 = vld [vmem:[#allocation5 + $0x3b8] sm:$0xff]
    %v226 = vld [vmem:[#allocation5 + $0x3c0] sm:$0xff]
    %v227 = vld [vmem:[#allocation5 + $0x3c8] sm:$0xff]
    %v228 = vld [vmem:[#allocation5 + $0x3d0] sm:$0xff]
    %v229 = vld [vmem:[#allocation5 + $0x3d8] sm:$0xff]
    %v230 = vld [vmem:[#allocation5 + $0x3f0] sm:$0xff]
    %v231 = vld [vmem:[#allocation5 + $0x3f8] sm:$0xff]
    %v232 = vld [vmem:[#allocation5 + $0x400] sm:$0xff]
    %v233 = vld [vmem:[#allocation5 + $0x408] sm:$0xff]
    %v234 = vld [vmem:[#allocation5 + $0x410] sm:$0xff]
    %v235 = vld [vmem:[#allocation5 + $0x418] sm:$0xff]
    %v236 = vld [vmem:[#allocation5 + $0x420] sm:$0xff]
    %v237 = vld [vmem:[#allocation5 + $0x428] sm:$0xff]
    %v238 = vld [vmem:[#allocation5 + $0x430] sm:$0xff]
    %v239 = vld [vmem:[#allocation5 + $0x438] sm:$0xff]
    %v240 = vld [vmem:[#allocation5 + $0x450] sm:$0xff]
    %v241 = vld [vmem:[#allocation5 + $0x458] sm:$0xff]
    %v242 = vld [vmem:[#allocation5 + $0x460] sm:$0xff]
    %v243 = vld [vmem:[#allocation5 + $0x468] sm:$0xff]
    %v244 = vld [vmem:[#allocation5 + $0x470] sm:$0xff]
    %v245 = vld [vmem:[#allocation5 + $0x478] sm:$0xff]
    %v246 = vld [vmem:[#allocation5 + $0x480] sm:$0xff]
    %v247 = vld [vmem:[#allocation5 + $0x488] sm:$0xff]
    %v248 = vld [vmem:[#allocation5 + $0x490] sm:$0xff]
    %v249 = vld [vmem:[#allocation5 + $0x498] sm:$0xff]
    %v250 = vld [vmem:[#allocation5 + $0x4b0] sm:$0xff]
    %v251 = vld [vmem:[#allocation5 + $0x4b8] sm:$0xff]
    %v252 = vld [vmem:[#allocation5 + $0x4c0] sm:$0xff]
    %v253 = vld [vmem:[#allocation5 + $0x4c8] sm:$0xff]
    %v254 = vld [vmem:[#allocation5 + $0x4d0] sm:$0xff]
    %v255 = vld [vmem:[#allocation5 + $0x4d8] sm:$0xff]
    %v256 = vld [vmem:[#allocation5 + $0x4e0] sm:$0xff]
    %v257 = vld [vmem:[#allocation5 + $0x4e8] sm:$0xff]
    %v258 = vld [vmem:[#allocation5 + $0x4f0] sm:$0xff]
    %v259 = vld [vmem:[#allocation5 + $0x4f8] sm:$0xff]
    %v260 = vld [vmem:[#allocation5 + $0x510] sm:$0xff]
    %v261 = vld [vmem:[#allocation5 + $0x518] sm:$0xff]
    %v262 = vld [vmem:[#allocation5 + $0x520] sm:$0xff]
    %v263 = vld [vmem:[#allocation5 + $0x528] sm:$0xff]
    %v264 = vld [vmem:[#allocation5 + $0x530] sm:$0xff]
    %v265 = vld [vmem:[#allocation5 + $0x538] sm:$0xff]
    %v266 = vld [vmem:[#allocation5 + $0x540] sm:$0xff]
    %v267 = vld [vmem:[#allocation5 + $0x548] sm:$0xff]
    %v268 = vld [vmem:[#allocation5 + $0x550] sm:$0xff]
    %v269 = vld [vmem:[#allocation5 + $0x558] sm:$0xff]
    %v270 = vld [vmem:[#allocation5 + $0x570] sm:$0xff]
    %v271 = vld [vmem:[#allocation5 + $0x578] sm:$0xff]
    %v272 = vld [vmem:[#allocation5 + $0x580] sm:$0xff]
    %v273 = vld [vmem:[#allocation5 + $0x588] sm:$0xff]
    %v274 = vld [vmem:[#allocation5 + $0x590] sm:$0xff]
    %v275 = vld [vmem:[#allocation5 + $0x598] sm:$0xff]
    %v276 = vld [vmem:[#allocation5 + $0x5a0] sm:$0xff]
    %v277 = vld [vmem:[#allocation5 + $0x5a8] sm:$0xff]
    %v278 = vld [vmem:[#allocation5 + $0x5b0] sm:$0xff]
    %v279 = vld [vmem:[#allocation5 + $0x5b8] sm:$0xff]
    %v280 = vld [vmem:[#allocation5 + $0x5d0] sm:$0xff]
    %v281 = vld [vmem:[#allocation5 + $0x5d8] sm:$0xff]
    %v282 = vld [vmem:[#allocation5 + $0x5e0] sm:$0xff]
    %v283 = vld [vmem:[#allocation5 + $0x5e8] sm:$0xff]
    %v284 = vld [vmem:[#allocation5 + $0x5f0] sm:$0xff]
    %v285 = vld [vmem:[#allocation5 + $0x5f8] sm:$0xff]
    %v286 = vld [vmem:[#allocation5 + $0x600] sm:$0xff]
    %v287 = vld [vmem:[#allocation5 + $0x608] sm:$0xff]
    %v288 = vld [vmem:[#allocation5 + $0x610] sm:$0xff]
    %v289 = vld [vmem:[#allocation5 + $0x618] sm:$0xff]
    %v290 = vld [vmem:[#allocation5 + $0x630] sm:$0xff]
    %v291 = vld [vmem:[#allocation5 + $0x638] sm:$0xff]
    %v292 = vld [vmem:[#allocation5 + $0x640] sm:$0xff]
    %v293 = vld [vmem:[#allocation5 + $0x648] sm:$0xff]
    %v294 = vld [vmem:[#allocation5 + $0x650] sm:$0xff]
    %v295 = vld [vmem:[#allocation5 + $0x658] sm:$0xff]
    %v296 = vld [vmem:[#allocation5 + $0x660] sm:$0xff]
    %v297 = vld [vmem:[#allocation5 + $0x668] sm:$0xff]
    %v298 = vld [vmem:[#allocation5 + $0x670] sm:$0xff]
    %v299 = vld [vmem:[#allocation5 + $0x678] sm:$0xff]
    %v300 = vld [vmem:[#allocation5 + $0x690] sm:$0xff]
    %v301 = vld [vmem:[#allocation5 + $0x698] sm:$0xff]
    %v302 = vld [vmem:[#allocation5 + $0x6a0] sm:$0xff]
    %v303 = vld [vmem:[#allocation5 + $0x6a8] sm:$0xff]
    %v304 = vld [vmem:[#allocation5 + $0x6b0] sm:$0xff]
    %v305 = vld [vmem:[#allocation5 + $0x6b8] sm:$0xff]
    %v306 = vld [vmem:[#allocation5 + $0x6c0] sm:$0xff]
    %v307 = vld [vmem:[#allocation5 + $0x6c8] sm:$0xff]
    %v308 = vld [vmem:[#allocation5 + $0x6d0] sm:$0xff]
    %v309 = vld [vmem:[#allocation5 + $0x6d8] sm:$0xff]
    %v310 = vld [vmem:[#allocation5 + $0x6f0] sm:$0xff]
    %v311 = vld [vmem:[#allocation5 + $0x6f8] sm:$0xff]
    %v312 = vld [vmem:[#allocation5 + $0x700] sm:$0xff]
    %v313 = vld [vmem:[#allocation5 + $0x708] sm:$0xff]
    %v314 = vld [vmem:[#allocation5 + $0x710] sm:$0xff]
    %v315 = vld [vmem:[#allocation5 + $0x718] sm:$0xff]
    %v316 = vld [vmem:[#allocation5 + $0x720] sm:$0xff]
    %v317 = vld [vmem:[#allocation5 + $0x728] sm:$0xff]
    %v318 = vld [vmem:[#allocation5 + $0x730] sm:$0xff]
    %v319 = vld [vmem:[#allocation5 + $0x738] sm:$0xff]
    %v320 = vld [vmem:[#allocation5 + $0x750] sm:$0xff]
    %v321 = vld [vmem:[#allocation5 + $0x758] sm:$0xff]
    %v322 = vld [vmem:[#allocation5 + $0x760] sm:$0xff]
    %v323 = vld [vmem:[#allocation5 + $0x768] sm:$0xff]
    %v324 = vld [vmem:[#allocation5 + $0x770] sm:$0xff]
    %v325 = vld [vmem:[#allocation5 + $0x778] sm:$0xff]
    %v326 = vld [vmem:[#allocation5 + $0x780] sm:$0xff]
    %v327 = vld [vmem:[#allocation5 + $0x788] sm:$0xff]
    %v328 = vld [vmem:[#allocation5 + $0x790] sm:$0xff]
    %v329 = vld [vmem:[#allocation5 + $0x798] sm:$0xff]
    %v330 = vld [vmem:[#allocation5 + $0x7b0] sm:$0xff]
    %v331 = vld [vmem:[#allocation5 + $0x7b8] sm:$0xff]
    %v332 = vld [vmem:[#allocation5 + $0x7c0] sm:$0xff]
    %v333 = vld [vmem:[#allocation5 + $0x7c8] sm:$0xff]
    %v334 = vld [vmem:[#allocation5 + $0x7d0] sm:$0xff]
    %v335 = vld [vmem:[#allocation5 + $0x7d8] sm:$0xff]
    %v336 = vld [vmem:[#allocation5 + $0x7e0] sm:$0xff]
    %v337 = vld [vmem:[#allocation5 + $0x7e8] sm:$0xff]
    %v338 = vld [vmem:[#allocation5 + $0x7f0] sm:$0xff]
    %v339 = vld [vmem:[#allocation5 + $0x7f8] sm:$0xff]
    %v340 = vld [vmem:[#allocation5 + $0x810] sm:$0xff]
    %v341 = vld [vmem:[#allocation5 + $0x818] sm:$0xff]
    %v342 = vld [vmem:[#allocation5 + $0x820] sm:$0xff]
    %v343 = vld [vmem:[#allocation5 + $0x828] sm:$0xff]
    %v344 = vld [vmem:[#allocation5 + $0x830] sm:$0xff]
    %v345 = vld [vmem:[#allocation5 + $0x838] sm:$0xff]
    %v346 = vld [vmem:[#allocation5 + $0x840] sm:$0xff]
    %v347 = vld [vmem:[#allocation5 + $0x848] sm:$0xff]
    %v348 = vld [vmem:[#allocation5 + $0x850] sm:$0xff]
    %v349 = vld [vmem:[#allocation5 + $0x858] sm:$0xff]
    %v350 = vld [vmem:[#allocation5 + $0x870] sm:$0xff]
    %v351 = vld [vmem:[#allocation5 + $0x878] sm:$0xff]
    %v352 = vld [vmem:[#allocation5 + $0x880] sm:$0xff]
    %v353 = vld [vmem:[#allocation5 + $0x888] sm:$0xff]
    %v354 = vld [vmem:[#allocation5 + $0x890] sm:$0xff]
    %v355 = vld [vmem:[#allocation5 + $0x898] sm:$0xff]
    %v356 = vld [vmem:[#allocation5 + $0x8a0] sm:$0xff]
    %v357 = vld [vmem:[#allocation5 + $0x8a8] sm:$0xff]
    %v358 = vld [vmem:[#allocation5 + $0x8b0] sm:$0xff]
    %v359 = vld [vmem:[#allocation5 + $0x8b8] sm:$0xff]
    %v360 = vld [vmem:[#allocation5 + $0x8d0] sm:$0xff]
    %v361 = vld [vmem:[#allocation5 + $0x8d8] sm:$0xff]
    %v362 = vld [vmem:[#allocation5 + $0x8e0] sm:$0xff]
    %v363 = vld [vmem:[#allocation5 + $0x8e8] sm:$0xff]
    %v364 = vld [vmem:[#allocation5 + $0x8f0] sm:$0xff]
    %v365 = vld [vmem:[#allocation5 + $0x8f8] sm:$0xff]
    %v366 = vld [vmem:[#allocation5 + $0x900] sm:$0xff]
    %v367 = vld [vmem:[#allocation5 + $0x908] sm:$0xff]
    %v368 = vld [vmem:[#allocation5 + $0x910] sm:$0xff]
    %v369 = vld [vmem:[#allocation5 + $0x918] sm:$0xff]
    %v370 = vld [vmem:[#allocation5 + $0x930] sm:$0xff]
    %v371 = vld [vmem:[#allocation5 + $0x938] sm:$0xff]
    %v372 = vld [vmem:[#allocation5 + $0x940] sm:$0xff]
    %v373 = vld [vmem:[#allocation5 + $0x948] sm:$0xff]
    %v374 = vld [vmem:[#allocation5 + $0x950] sm:$0xff]
    %v375 = vld [vmem:[#allocation5 + $0x958] sm:$0xff]
    %v376 = vld [vmem:[#allocation5 + $0x960] sm:$0xff]
    %v377 = vld [vmem:[#allocation5 + $0x968] sm:$0xff]
    %v378 = vld [vmem:[#allocation5 + $0x970] sm:$0xff]
    %v379 = vld [vmem:[#allocation5 + $0x978] sm:$0xff]
    %v380 = vld [vmem:[#allocation5 + $0x990] sm:$0xff]
    %v381 = vld [vmem:[#allocation5 + $0x998] sm:$0xff]
    %v382 = vld [vmem:[#allocation5 + $0x9a0] sm:$0xff]
    %v383 = vld [vmem:[#allocation5 + $0x9a8] sm:$0xff]
    %v384 = vld [vmem:[#allocation5 + $0x9b0] sm:$0xff]
    %v385 = vld [vmem:[#allocation5 + $0x9b8] sm:$0xff]
    %v386 = vld [vmem:[#allocation5 + $0x9c0] sm:$0xff]
    %v387 = vld [vmem:[#allocation5 + $0x9c8] sm:$0xff]
    %v388 = vld [vmem:[#allocation5 + $0x9d0] sm:$0xff]
    %v389 = vld [vmem:[#allocation5 + $0x9d8] sm:$0xff]
    %v390 = vld [vmem:[#allocation5 + $0x9f0] sm:$0xff]
    %v391 = vld [vmem:[#allocation5 + $0x9f8] sm:$0xff]
    %v392 = vld [vmem:[#allocation5 + $0xa00] sm:$0xff]
    %v393 = vld [vmem:[#allocation5 + $0xa08] sm:$0xff]
    %v394 = vld [vmem:[#allocation5 + $0xa10] sm:$0xff]
    %v395 = vld [vmem:[#allocation5 + $0xa18] sm:$0xff]
    %v396 = vld [vmem:[#allocation5 + $0xa20] sm:$0xff]
    %v397 = vld [vmem:[#allocation5 + $0xa28] sm:$0xff]
    %v398 = vld [vmem:[#allocation5 + $0xa30] sm:$0xff]
    %v399 = vld [vmem:[#allocation5 + $0xa38] sm:$0xff]
    %v400 = vld [vmem:[#allocation5 + $0xa50] sm:$0xff]
    %v401 = vld [vmem:[#allocation5 + $0xa58] sm:$0xff]
    %v402 = vld [vmem:[#allocation5 + $0xa60] sm:$0xff]
    %v403 = vld [vmem:[#allocation5 + $0xa68] sm:$0xff]
    %v404 = vld [vmem:[#allocation5 + $0xa70] sm:$0xff]
    %v405 = vld [vmem:[#allocation5 + $0xa78] sm:$0xff]
    %v406 = vld [vmem:[#allocation5 + $0xa80] sm:$0xff]
    %v407 = vld [vmem:[#allocation5 + $0xa88] sm:$0xff]
    %v408 = vld [vmem:[#allocation5 + $0xa90] sm:$0xff]
    %v409 = vld [vmem:[#allocation5 + $0xa98] sm:$0xff]
    %v410 = vld [vmem:[#allocation5 + $0xab0] sm:$0xff]
    %v411 = vld [vmem:[#allocation5 + $0xab8] sm:$0xff]
    %v412 = vld [vmem:[#allocation5 + $0xac0] sm:$0xff]
    %v413 = vld [vmem:[#allocation5 + $0xac8] sm:$0xff]
    %v414 = vld [vmem:[#allocation5 + $0xad0] sm:$0xff]
    %v415 = vld [vmem:[#allocation5 + $0xad8] sm:$0xff]
    %v416 = vld [vmem:[#allocation5 + $0xae0] sm:$0xff]
    %v417 = vld [vmem:[#allocation5 + $0xae8] sm:$0xff]
    %v418 = vld [vmem:[#allocation5 + $0xaf0] sm:$0xff]
    %v419 = vld [vmem:[#allocation5 + $0xaf8] sm:$0xff]
    %v420 = vld [vmem:[#allocation5 + $0xb10] sm:$0xff]
    %v421 = vld [vmem:[#allocation5 + $0xb18] sm:$0xff]
    %v422 = vld [vmem:[#allocation5 + $0xb20] sm:$0xff]
    %v423 = vld [vmem:[#allocation5 + $0xb28] sm:$0xff]
    %v424 = vld [vmem:[#allocation5 + $0xb30] sm:$0xff]
    %v425 = vld [vmem:[#allocation5 + $0xb38] sm:$0xff]
    %v426 = vld [vmem:[#allocation5 + $0xb40] sm:$0xff]
    %v427 = vld [vmem:[#allocation5 + $0xb48] sm:$0xff]
    %v428 = vld [vmem:[#allocation5 + $0xb50] sm:$0xff]
    %v429 = vld [vmem:[#allocation5 + $0xb58] sm:$0xff]
    %v430 = vld [vmem:[#allocation5 + $0xb70] sm:$0xff]
    %v431 = vld [vmem:[#allocation5 + $0xb78] sm:$0xff]
    %v432 = vld [vmem:[#allocation5 + $0xb80] sm:$0xff]
    %v433 = vld [vmem:[#allocation5 + $0xb88] sm:$0xff]
    %v434 = vld [vmem:[#allocation5 + $0xb90] sm:$0xff]
    %v435 = vld [vmem:[#allocation5 + $0xb98] sm:$0xff]
    %v436 = vld [vmem:[#allocation5 + $0xba0] sm:$0xff]
    %v437 = vld [vmem:[#allocation5 + $0xba8] sm:$0xff]
    %v438 = vld [vmem:[#allocation5 + $0xbb0] sm:$0xff]
    %v439 = vld [vmem:[#allocation5 + $0xbb8] sm:$0xff]
    %v440 = vld [vmem:[#allocation5 + $0xbd0] sm:$0xff]
    %v441 = vld [vmem:[#allocation5 + $0xbd8] sm:$0xff]
    %v442 = vld [vmem:[#allocation5 + $0xbe0] sm:$0xff]
    %v443 = vld [vmem:[#allocation5 + $0xbe8] sm:$0xff]
    %v444 = vld [vmem:[#allocation5 + $0xbf0] sm:$0xff]
    %v445 = vld [vmem:[#allocation5 + $0xbf8] sm:$0xff]
    %v446 = vld [vmem:[#allocation5 + $0xc00] sm:$0xff]
    %v447 = vld [vmem:[#allocation5 + $0xc08] sm:$0xff]
    %v448 = vld [vmem:[#allocation5 + $0xc10] sm:$0xff]
    %v449 = vld [vmem:[#allocation5 + $0xc18] sm:$0xff]
    %v450 = vld [vmem:[#allocation5 + $0xc30] sm:$0xff]
    %v451 = vld [vmem:[#allocation5 + $0xc38] sm:$0xff]
    %v452 = vld [vmem:[#allocation5 + $0xc40] sm:$0xff]
    %v453 = vld [vmem:[#allocation5 + $0xc48] sm:$0xff]
    %v454 = vld [vmem:[#allocation5 + $0xc50] sm:$0xff]
    %v455 = vld [vmem:[#allocation5 + $0xc58] sm:$0xff]
    %v456 = vld [vmem:[#allocation5 + $0xc60] sm:$0xff]
    %v457 = vld [vmem:[#allocation5 + $0xc68] sm:$0xff]
    %v458 = vld [vmem:[#allocation5 + $0xc70] sm:$0xff]
    %v459 = vld [vmem:[#allocation5 + $0xc78] sm:$0xff]
    %v460 = vld [vmem:[#allocation5 + $0xc90] sm:$0xff]
    %v461 = vld [vmem:[#allocation5 + $0xc98] sm:$0xff]
    %v462 = vld [vmem:[#allocation5 + $0xca0] sm:$0xff]
    %v463 = vld [vmem:[#allocation5 + $0xca8] sm:$0xff]
    %v464 = vld [vmem:[#allocation5 + $0xcb0] sm:$0xff]
    %v465 = vld [vmem:[#allocation5 + $0xcb8] sm:$0xff]
    %v466 = vld [vmem:[#allocation5 + $0xcc0] sm:$0xff]
    %v467 = vld [vmem:[#allocation5 + $0xcc8] sm:$0xff]
    %v468 = vld [vmem:[#allocation5 + $0xcd0] sm:$0xff]
    %v469 = vld [vmem:[#allocation5 + $0xcd8] sm:$0xff]
    %v470 = vld [vmem:[#allocation5 + $0xcf0] sm:$0xff]
    %v471 = vld [vmem:[#allocation5 + $0xcf8] sm:$0xff]
    %v472 = vld [vmem:[#allocation5 + $0xd00] sm:$0xff]
    %v473 = vld [vmem:[#allocation5 + $0xd08] sm:$0xff]
    %v474 = vld [vmem:[#allocation5 + $0xd10] sm:$0xff]
    %v475 = vld [vmem:[#allocation5 + $0xd18] sm:$0xff]
    %v476 = vld [vmem:[#allocation5 + $0xd20] sm:$0xff]
    %v477 = vld [vmem:[#allocation5 + $0xd28] sm:$0xff]
    %v478 = vld [vmem:[#allocation5 + $0xd30] sm:$0xff]
    %v479 = vld [vmem:[#allocation5 + $0xd38] sm:$0xff]
    %v480 = vld [vmem:[#allocation5 + $0xd50] sm:$0xff]
    %v481 = vld [vmem:[#allocation5 + $0xd58] sm:$0xff]
    %v482 = vld [vmem:[#allocation5 + $0xd60] sm:$0xff]
    %v483 = vld [vmem:[#allocation5 + $0xd68] sm:$0xff]
    %v484 = vld [vmem:[#allocation5 + $0xd70] sm:$0xff]
    %v485 = vld [vmem:[#allocation5 + $0xd78] sm:$0xff]
    %v486 = vld [vmem:[#allocation5 + $0xd80] sm:$0xff]
    %v487 = vld [vmem:[#allocation5 + $0xd88] sm:$0xff]
    %v488 = vld [vmem:[#allocation5 + $0xd90] sm:$0xff]
    %v489 = vld [vmem:[#allocation5 + $0xd98] sm:$0xff]
    %v490 = vld [vmem:[#allocation5 + $0xdb0] sm:$0xff]
    %v491 = vld [vmem:[#allocation5 + $0xdb8] sm:$0xff]
    %v492 = vld [vmem:[#allocation5 + $0xdc0] sm:$0xff]
    %v493 = vld [vmem:[#allocation5 + $0xdc8] sm:$0xff]
    %v494 = vld [vmem:[#allocation5 + $0xdd0] sm:$0xff]
    %v495 = vld [vmem:[#allocation5 + $0xdd8] sm:$0xff]
    %v496 = vld [vmem:[#allocation5 + $0xde0] sm:$0xff]
    %v497 = vld [vmem:[#allocation5 + $0xde8] sm:$0xff]
    %v498 = vld [vmem:[#allocation5 + $0xdf0] sm:$0xff]
    %v499 = vld [vmem:[#allocation5 + $0xdf8] sm:$0xff]
    %v500 = vld [vmem:[#allocation5 + $0xe10] sm:$0xff]
    %v501 = vld [vmem:[#allocation5 + $0xe18] sm:$0xff]
    %v502 = vld [vmem:[#allocation5 + $0xe20] sm:$0xff]
    %v503 = vld [vmem:[#allocation5 + $0xe28] sm:$0xff]
    %v504 = vld [vmem:[#allocation5 + $0xe30] sm:$0xff]
    %v505 = vld [vmem:[#allocation5 + $0xe38] sm:$0xff]
    %v506 = vld [vmem:[#allocation5 + $0xe40] sm:$0xff]
    %v507 = vld [vmem:[#allocation5 + $0xe48] sm:$0xff]
    %v508 = vld [vmem:[#allocation5 + $0xe50] sm:$0xff]
    %v509 = vld [vmem:[#allocation5 + $0xe58] sm:$0xff]
    %v510 = vld [vmem:[#allocation5 + $0xe70] sm:$0xff]
    %v511 = vld [vmem:[#allocation5 + $0xe78] sm:$0xff]
    %v512 = vld [vmem:[#allocation5 + $0xe80] sm:$0xff]
    %v513 = vld [vmem:[#allocation5 + $0xe88] sm:$0xff]
    %v514 = vld [vmem:[#allocation5 + $0xe90] sm:$0xff]
    %v515 = vld [vmem:[#allocation5 + $0xe98] sm:$0xff]
    %v516 = vld [vmem:[#allocation5 + $0xea0] sm:$0xff]
    %v517 = vld [vmem:[#allocation5 + $0xea8] sm:$0xff]
    %v518 = vld [vmem:[#allocation5 + $0xeb0] sm:$0xff]
    %v519 = vld [vmem:[#allocation5 + $0xeb8] sm:$0xff]
    %v520 = vld [vmem:[#allocation5 + $0xed0] sm:$0xff]
    %v521 = vld [vmem:[#allocation5 + $0xed8] sm:$0xff]
    %v522 = vld [vmem:[#allocation5 + $0xee0] sm:$0xff]
    %v523 = vld [vmem:[#allocation5 + $0xee8] sm:$0xff]
    %v524 = vld [vmem:[#allocation5 + $0xef0] sm:$0xff]
    %v525 = vld [vmem:[#allocation5 + $0xef8] sm:$0xff]
    %v526 = vld [vmem:[#allocation5 + $0xf00] sm:$0xff]
    %v527 = vld [vmem:[#allocation5 + $0xf08] sm:$0xff]
    %v528 = vld [vmem:[#allocation5 + $0xf10] sm:$0xff]
    %v529 = vld [vmem:[#allocation5 + $0xf18] sm:$0xff]
    %v530 = vld [vmem:[#allocation5 + $0xf30] sm:$0xff]
    %v531 = vld [vmem:[#allocation5 + $0xf38] sm:$0xff]
    %v532 = vld [vmem:[#allocation5 + $0xf40] sm:$0xff]
    %v533 = vld [vmem:[#allocation5 + $0xf48] sm:$0xff]
    %v534 = vld [vmem:[#allocation5 + $0xf50] sm:$0xff]
    %v535 = vld [vmem:[#allocation5 + $0xf58] sm:$0xff]
    %v536 = vld [vmem:[#allocation5 + $0xf60] sm:$0xff]
    %v537 = vld [vmem:[#allocation5 + $0xf68] sm:$0xff]
    %v538 = vld [vmem:[#allocation5 + $0xf70] sm:$0xff]
    %v539 = vld [vmem:[#allocation5 + $0xf78] sm:$0xff]
    %v540 = vld [vmem:[#allocation5 + $0xf90] sm:$0xff]
    %v541 = vld [vmem:[#allocation5 + $0xf98] sm:$0xff]
    %v542 = vld [vmem:[#allocation5 + $0xfa0] sm:$0xff]
    %v543 = vld [vmem:[#allocation5 + $0xfa8] sm:$0xff]
    %v544 = vld [vmem:[#allocation5 + $0xfb0] sm:$0xff]
    %v545 = vld [vmem:[#allocation5 + $0xfb8] sm:$0xff]
    %v546 = vld [vmem:[#allocation5 + $0xfc0] sm:$0xff]
    %v547 = vld [vmem:[#allocation5 + $0xfc8] sm:$0xff]
    %v548 = vld [vmem:[#allocation5 + $0xfd0] sm:$0xff]
    %v549 = vld [vmem:[#allocation5 + $0xfd8] sm:$0xff]
    %v550 = vld [vmem:[#allocation5 + $0xff0] sm:$0xff]
    %v551 = vld [vmem:[#allocation5 + $0xff8] sm:$0xff]
    %v552 = vld [vmem:[#allocation5 + $0x1000] sm:$0xff]
    %v553 = vld [vmem:[#allocation5 + $0x1008] sm:$0xff]
    %v554 = vld [vmem:[#allocation5 + $0x1010] sm:$0xff]
    %v555 = vld [vmem:[#allocation5 + $0x1018] sm:$0xff]
    %v556 = vld [vmem:[#allocation5 + $0x1020] sm:$0xff]
    %v557 = vld [vmem:[#allocation5 + $0x1028] sm:$0xff]
    %v558 = vld [vmem:[#allocation5 + $0x1030] sm:$0xff]
    %v559 = vld [vmem:[#allocation5 + $0x1038] sm:$0xff]
    %v560 = vld [vmem:[#allocation5 + $0x1050] sm:$0xff]
    %v561 = vld [vmem:[#allocation5 + $0x1058] sm:$0xff]
    %v562 = vld [vmem:[#allocation5 + $0x1060] sm:$0xff]
    %v563 = vld [vmem:[#allocation5 + $0x1068] sm:$0xff]
    %v564 = vld [vmem:[#allocation5 + $0x1070] sm:$0xff]
    %v565 = vld [vmem:[#allocation5 + $0x1078] sm:$0xff]
    %v566 = vld [vmem:[#allocation5 + $0x1080] sm:$0xff]
    %v567 = vld [vmem:[#allocation5 + $0x1088] sm:$0xff]
    %v568 = vld [vmem:[#allocation5 + $0x1090] sm:$0xff]
    %v569 = vld [vmem:[#allocation5 + $0x1098] sm:$0xff]
    %v570 = vld [vmem:[#allocation5 + $0x10b0] sm:$0xff]
    %v571 = vld [vmem:[#allocation5 + $0x10b8] sm:$0xff]
    %v572 = vld [vmem:[#allocation5 + $0x10c0] sm:$0xff]
    %v573 = vld [vmem:[#allocation5 + $0x10c8] sm:$0xff]
    %v574 = vld [vmem:[#allocation5 + $0x10d0] sm:$0xff]
    %v575 = vld [vmem:[#allocation5 + $0x10d8] sm:$0xff]
    %v576 = vld [vmem:[#allocation5 + $0x10e0] sm:$0xff]
    %v577 = vld [vmem:[#allocation5 + $0x10e8] sm:$0xff]
    %v578 = vld [vmem:[#allocation5 + $0x10f0] sm:$0xff]
    %v579 = vld [vmem:[#allocation5 + $0x10f8] sm:$0xff]
    %v580 = vld [vmem:[#allocation5 + $0x1110] sm:$0xff]
    %v581 = vld [vmem:[#allocation5 + $0x1118] sm:$0xff]
    %v582 = vld [vmem:[#allocation5 + $0x1120] sm:$0xff]
    %v583 = vld [vmem:[#allocation5 + $0x1128] sm:$0xff]
    %v584 = vld [vmem:[#allocation5 + $0x1130] sm:$0xff]
    %v585 = vld [vmem:[#allocation5 + $0x1138] sm:$0xff]
    %v586 = vld [vmem:[#allocation5 + $0x1140] sm:$0xff]
    %v587 = vld [vmem:[#allocation5 + $0x1148] sm:$0xff]
    %v588 = vld [vmem:[#allocation5 + $0x1150] sm:$0xff]
    %v589 = vld [vmem:[#allocation5 + $0x1158] sm:$0xff]
    %v590 = vld [vmem:[#allocation5 + $0x1170] sm:$0xff]
    %v591 = vld [vmem:[#allocation5 + $0x1178] sm:$0xff]
    %v592 = vld [vmem:[#allocation5 + $0x1180] sm:$0xff]
    %v593 = vld [vmem:[#allocation5 + $0x1188] sm:$0xff]
    %v594 = vld [vmem:[#allocation5 + $0x1190] sm:$0xff]
    %v595 = vld [vmem:[#allocation5 + $0x1198] sm:$0xff]
    %v596 = vld [vmem:[#allocation5 + $0x11a0] sm:$0xff]
    %v597 = vld [vmem:[#allocation5 + $0x11a8] sm:$0xff]
    %v598 = vld [vmem:[#allocation5 + $0x11b0] sm:$0xff]
    %v599 = vld [vmem:[#allocation5 + $0x11b8] sm:$0xff]
    %v600 = vld [vmem:[#allocation5 + $0x11d0] sm:$0xff]
    %v601 = vld [vmem:[#allocation5 + $0x11d8] sm:$0xff]
    %v602 = vld [vmem:[#allocation5 + $0x11e0] sm:$0xff]
    %v603 = vld [vmem:[#allocation5 + $0x11e8] sm:$0xff]
    %v604 = vld [vmem:[#allocation5 + $0x11f0] sm:$0xff]
    %v605 = vld [vmem:[#allocation5 + $0x11f8] sm:$0xff]
    %v606 = vld [vmem:[#allocation5 + $0x1200] sm:$0xff]
    %v607 = vld [vmem:[#allocation5 + $0x1208] sm:$0xff]
    %v608 = vld [vmem:[#allocation5 + $0x1210] sm:$0xff]
    %v609 = vld [vmem:[#allocation5 + $0x1218] sm:$0xff]
    %v610 = vld [vmem:[#allocation5 + $0x1230] sm:$0xff]
    %v611 = vld [vmem:[#allocation5 + $0x1238] sm:$0xff]
    %v612 = vld [vmem:[#allocation5 + $0x1240] sm:$0xff]
    %v613 = vld [vmem:[#allocation5 + $0x1248] sm:$0xff]
    %v614 = vld [vmem:[#allocation5 + $0x1250] sm:$0xff]
    %v615 = vld [vmem:[#allocation5 + $0x1258] sm:$0xff]
    %v616 = vld [vmem:[#allocation5 + $0x1260] sm:$0xff]
    %v617 = vld [vmem:[#allocation5 + $0x1268] sm:$0xff]
    %v618 = vld [vmem:[#allocation5 + $0x1270] sm:$0xff]
    %v619 = vld [vmem:[#allocation5 + $0x1278] sm:$0xff]
    %v620 = vld [vmem:[#allocation5 + $0x1290] sm:$0xff]
    %v621 = vld [vmem:[#allocation5 + $0x1298] sm:$0xff]
    %v622 = vld [vmem:[#allocation5 + $0x12a0] sm:$0xff]
    %v623 = vld [vmem:[#allocation5 + $0x12a8] sm:$0xff]
    %v624 = vld [vmem:[#allocation5 + $0x12b0] sm:$0xff]
    %v625 = vld [vmem:[#allocation5 + $0x12b8] sm:$0xff]
    %v626 = vld [vmem:[#allocation5 + $0x12c0] sm:$0xff]
    %v627 = vld [vmem:[#allocation5 + $0x12c8] sm:$0xff]
    %v628 = vld [vmem:[#allocation5 + $0x12d0] sm:$0xff]
    %v629 = vld [vmem:[#allocation5 + $0x12d8] sm:$0xff]
    %v630 = vld [vmem:[#allocation5 + $0x12f0] sm:$0xff]
    %v631 = vld [vmem:[#allocation5 + $0x12f8] sm:$0xff]
    %v632 = vld [vmem:[#allocation5 + $0x1300] sm:$0xff]
    %v633 = vld [vmem:[#allocation5 + $0x1308] sm:$0xff]
    %v634 = vld [vmem:[#allocation5 + $0x1310] sm:$0xff]
    %v635 = vld [vmem:[#allocation5 + $0x1318] sm:$0xff]
    %v636 = vld [vmem:[#allocation5 + $0x1320] sm:$0xff]
    %v637 = vld [vmem:[#allocation5 + $0x1328] sm:$0xff]
    %v638 = vld [vmem:[#allocation5 + $0x1330] sm:$0xff]
    %v639 = vld [vmem:[#allocation5 + $0x1338] sm:$0xff]
    %v640 = vld [vmem:[#allocation5 + $0x1350] sm:$0xff]
    %v641 = vld [vmem:[#allocation5 + $0x1358] sm:$0xff]
    %v642 = vld [vmem:[#allocation5 + $0x1360] sm:$0xff]
    %v643 = vld [vmem:[#allocation5 + $0x1368] sm:$0xff]
    %v644 = vld [vmem:[#allocation5 + $0x1370] sm:$0xff]
    %v645 = vld [vmem:[#allocation5 + $0x1378] sm:$0xff]
    %v646 = vld [vmem:[#allocation5 + $0x1380] sm:$0xff]
    %v647 = vld [vmem:[#allocation5 + $0x1388] sm:$0xff]
    %v648 = vld [vmem:[#allocation5 + $0x1390] sm:$0xff]
    %v649 = vld [vmem:[#allocation5 + $0x1398] sm:$0xff]
    %v650 = vld [vmem:[#allocation5 + $0x13b0] sm:$0xff]
    %v651 = vld [vmem:[#allocation5 + $0x13b8] sm:$0xff]
    %v652 = vld [vmem:[#allocation5 + $0x13c0] sm:$0xff]
    %v653 = vld [vmem:[#allocation5 + $0x13c8] sm:$0xff]
    %v654 = vld [vmem:[#allocation5 + $0x13d0] sm:$0xff]
    %v655 = vld [vmem:[#allocation5 + $0x13d8] sm:$0xff]
    %v656 = vld [vmem:[#allocation5 + $0x13e0] sm:$0xff]
    %v657 = vld [vmem:[#allocation5 + $0x13e8] sm:$0xff]
    %v658 = vld [vmem:[#allocation5 + $0x13f0] sm:$0xff]
    %v659 = vld [vmem:[#allocation5 + $0x13f8] sm:$0xff]
    %v660 = vld [vmem:[#allocation5 + $0x1410] sm:$0xff]
    %v661 = vld [vmem:[#allocation5 + $0x1418] sm:$0xff]
    %v662 = vld [vmem:[#allocation5 + $0x1420] sm:$0xff]
    %v663 = vld [vmem:[#allocation5 + $0x1428] sm:$0xff]
    %v664 = vld [vmem:[#allocation5 + $0x1430] sm:$0xff]
    %v665 = vld [vmem:[#allocation5 + $0x1438] sm:$0xff]
    %v666 = vld [vmem:[#allocation5 + $0x1440] sm:$0xff]
    %v667 = vld [vmem:[#allocation5 + $0x1448] sm:$0xff]
    %v668 = vld [vmem:[#allocation5 + $0x1450] sm:$0xff]
    %v669 = vld [vmem:[#allocation5 + $0x1458] sm:$0xff]
    %v670 = vld [vmem:[#allocation5 + $0x1470] sm:$0xff]
    %v671 = vld [vmem:[#allocation5 + $0x1478] sm:$0xff]
    %v672 = vld [vmem:[#allocation5 + $0x1480] sm:$0xff]
    %v673 = vld [vmem:[#allocation5 + $0x1488] sm:$0xff]
    %v674 = vld [vmem:[#allocation5 + $0x1490] sm:$0xff]
    %v675 = vld [vmem:[#allocation5 + $0x1498] sm:$0xff]
    %v676 = vld [vmem:[#allocation5 + $0x14a0] sm:$0xff]
    %v677 = vld [vmem:[#allocation5 + $0x14a8] sm:$0xff]
    %v678 = vld [vmem:[#allocation5 + $0x14b0] sm:$0xff]
    %v679 = vld [vmem:[#allocation5 + $0x14b8] sm:$0xff]
    %v680 = vld [vmem:[#allocation5 + $0x14d0] sm:$0xff]
    %v681 = vld [vmem:[#allocation5 + $0x14d8] sm:$0xff]
    %v682 = vld [vmem:[#allocation5 + $0x14e0] sm:$0xff]
    %v683 = vld [vmem:[#allocation5 + $0x14e8] sm:$0xff]
    %v684 = vld [vmem:[#allocation5 + $0x14f0] sm:$0xff]
    %v685 = vld [vmem:[#allocation5 + $0x14f8] sm:$0xff]
    %v686 = vld [vmem:[#allocation5 + $0x1500] sm:$0xff]
    %v687 = vld [vmem:[#allocation5 + $0x1508] sm:$0xff]
    %v688 = vld [vmem:[#allocation5 + $0x1510] sm:$0xff]
    %v689 = vld [vmem:[#allocation5 + $0x1518] sm:$0xff]
    %v690 = vld [vmem:[#allocation5 + $0x1530] sm:$0xff]
    %v691 = vld [vmem:[#allocation5 + $0x1538] sm:$0xff]
    %v692 = vld [vmem:[#allocation5 + $0x1540] sm:$0xff]
    %v693 = vld [vmem:[#allocation5 + $0x1548] sm:$0xff]
    %v694 = vld [vmem:[#allocation5 + $0x1550] sm:$0xff]
    %v695 = vld [vmem:[#allocation5 + $0x1558] sm:$0xff]
    %v696 = vld [vmem:[#allocation5 + $0x1560] sm:$0xff]
    %v697 = vld [vmem:[#allocation5 + $0x1568] sm:$0xff]
    %v698 = vld [vmem:[#allocation5 + $0x1570] sm:$0xff]
    %v699 = vld [vmem:[#allocation5 + $0x1578] sm:$0xff]
    %v700 = vld [vmem:[#allocation5 + $0x1590] sm:$0xff]
    %v701 = vld [vmem:[#allocation5 + $0x1598] sm:$0xff]
    %v702 = vld [vmem:[#allocation5 + $0x15a0] sm:$0xff]
    %v703 = vld [vmem:[#allocation5 + $0x15a8] sm:$0xff]
    %v704 = vld [vmem:[#allocation5 + $0x15b0] sm:$0xff]
    %v705 = vld [vmem:[#allocation5 + $0x15b8] sm:$0xff]
    %v706 = vld [vmem:[#allocation5 + $0x15c0] sm:$0xff]
    %v707 = vld [vmem:[#allocation5 + $0x15c8] sm:$0xff]
    %v708 = vld [vmem:[#allocation5 + $0x15d0] sm:$0xff]
    %v709 = vld [vmem:[#allocation5 + $0x15d8] sm:$0xff]
    %v710 = vld [vmem:[#allocation5 + $0x15f0] sm:$0xff]
    %v711 = vld [vmem:[#allocation5 + $0x15f8] sm:$0xff]
    %v712 = vld [vmem:[#allocation5 + $0x1600] sm:$0xff]
    %v713 = vld [vmem:[#allocation5 + $0x1608] sm:$0xff]
    %v714 = vld [vmem:[#allocation5 + $0x1610] sm:$0xff]
    %v715 = vld [vmem:[#allocation5 + $0x1618] sm:$0xff]
    %v716 = vld [vmem:[#allocation5 + $0x1620] sm:$0xff]
    %v717 = vld [vmem:[#allocation5 + $0x1628] sm:$0xff]
    %v718 = vld [vmem:[#allocation5 + $0x1630] sm:$0xff]
    %v719 = vld [vmem:[#allocation5 + $0x1638] sm:$0xff]
    %v720 = vld [vmem:[#allocation5 + $0x1650] sm:$0xff]
    %v721 = vld [vmem:[#allocation5 + $0x1658] sm:$0xff]
    %v722 = vld [vmem:[#allocation5 + $0x1660] sm:$0xff]
    %v723 = vld [vmem:[#allocation5 + $0x1668] sm:$0xff]
    %v724 = vld [vmem:[#allocation5 + $0x1670] sm:$0xff]
    %v725 = vld [vmem:[#allocation5 + $0x1678] sm:$0xff]
    %v726 = vld [vmem:[#allocation5 + $0x1680] sm:$0xff]
    %v727 = vld [vmem:[#allocation5 + $0x1688] sm:$0xff]
    %v728 = vld [vmem:[#allocation5 + $0x1690] sm:$0xff]
    %v729 = vld [vmem:[#allocation5 + $0x1698] sm:$0xff]
    %v730 = vld [vmem:[#allocation5 + $0x16b0] sm:$0xff]
    %v731 = vld [vmem:[#allocation5 + $0x16b8] sm:$0xff]
    %v732 = vld [vmem:[#allocation5 + $0x16c0] sm:$0xff]
    %v733 = vld [vmem:[#allocation5 + $0x16c8] sm:$0xff]
    %v734 = vld [vmem:[#allocation5 + $0x16d0] sm:$0xff]
    %v735 = vld [vmem:[#allocation5 + $0x16d8] sm:$0xff]
    %v736 = vld [vmem:[#allocation5 + $0x16e0] sm:$0xff]
    %v737 = vld [vmem:[#allocation5 + $0x16e8] sm:$0xff]
    %v738 = vld [vmem:[#allocation5 + $0x16f0] sm:$0xff]
    %v739 = vld [vmem:[#allocation5 + $0x16f8] sm:$0xff]
    %v740 = vld [vmem:[#allocation5 + $0x1710] sm:$0xff]
    %v741 = vld [vmem:[#allocation5 + $0x1718] sm:$0xff]
    %v742 = vld [vmem:[#allocation5 + $0x1720] sm:$0xff]
    %v743 = vld [vmem:[#allocation5 + $0x1728] sm:$0xff]
    %v744 = vld [vmem:[#allocation5 + $0x1730] sm:$0xff]
    %v745 = vld [vmem:[#allocation5 + $0x1738] sm:$0xff]
    %v746 = vld [vmem:[#allocation5 + $0x1740] sm:$0xff]
    %v747 = vld [vmem:[#allocation5 + $0x1748] sm:$0xff]
    %v748 = vld [vmem:[#allocation5 + $0x1750] sm:$0xff]
    %v749 = vld [vmem:[#allocation5 + $0x1758] sm:$0xff]
    %v750 = vld [vmem:[#allocation5 + $0x1770] sm:$0xff]
    %v751 = vld [vmem:[#allocation5 + $0x1778] sm:$0xff]
    %v752 = vld [vmem:[#allocation5 + $0x1780] sm:$0xff]
    %v753 = vld [vmem:[#allocation5 + $0x1788] sm:$0xff]
    %v754 = vld [vmem:[#allocation5 + $0x1790] sm:$0xff]
    %v755 = vld [vmem:[#allocation5 + $0x1798] sm:$0xff]
    %v756 = vld [vmem:[#allocation5 + $0x17a0] sm:$0xff]
    %v757 = vld [vmem:[#allocation5 + $0x17a8] sm:$0xff]
    %v758 = vld [vmem:[#allocation5 + $0x17b0] sm:$0xff]
    %v759 = vld [vmem:[#allocation5 + $0x17b8] sm:$0xff]
    %v760 = vld [vmem:[#allocation5 + $0x17d0] sm:$0xff]
    %v761 = vld [vmem:[#allocation5 + $0x17d8] sm:$0xff]
    %v762 = vld [vmem:[#allocation5 + $0x17e0] sm:$0xff]
    %v763 = vld [vmem:[#allocation5 + $0x17e8] sm:$0xff]
    %v764 = vld [vmem:[#allocation5 + $0x17f0] sm:$0xff]
    %v765 = vld [vmem:[#allocation5 + $0x17f8] sm:$0xff]
    %v766 = vld [vmem:[#allocation5 + $0x1800] sm:$0xff]
    %v767 = vld [vmem:[#allocation5 + $0x1808] sm:$0xff]
    %v768 = vld [vmem:[#allocation5 + $0x1810] sm:$0xff]
    %v769 = vld [vmem:[#allocation5 + $0x1818] sm:$0xff]
    %v770 = vld [vmem:[#allocation5 + $0x1830] sm:$0xff]
    %v771 = vld [vmem:[#allocation5 + $0x1838] sm:$0xff]
    %v772 = vld [vmem:[#allocation5 + $0x1840] sm:$0xff]
    %v773 = vld [vmem:[#allocation5 + $0x1848] sm:$0xff]
    %v774 = vld [vmem:[#allocation5 + $0x1850] sm:$0xff]
    %v775 = vld [vmem:[#allocation5 + $0x1858] sm:$0xff]
    %v776 = vld [vmem:[#allocation5 + $0x1860] sm:$0xff]
    %v777 = vld [vmem:[#allocation5 + $0x1868] sm:$0xff]
    %v778 = vld [vmem:[#allocation5 + $0x1870] sm:$0xff]
    %v779 = vld [vmem:[#allocation5 + $0x1878] sm:$0xff]
    %v780 = vld [vmem:[#allocation5 + $0x1890] sm:$0xff]
    %v781 = vld [vmem:[#allocation5 + $0x1898] sm:$0xff]
    %v782 = vld [vmem:[#allocation5 + $0x18a0] sm:$0xff]
    %v783 = vld [vmem:[#allocation5 + $0x18a8] sm:$0xff]
    %v784 = vld [vmem:[#allocation5 + $0x18b0] sm:$0xff]
    %v785 = vld [vmem:[#allocation5 + $0x18b8] sm:$0xff]
    %v786 = vld [vmem:[#allocation5 + $0x18c0] sm:$0xff]
    %v787 = vld [vmem:[#allocation5 + $0x18c8] sm:$0xff]
    %v788 = vld [vmem:[#allocation5 + $0x18d0] sm:$0xff]
    %v789 = vld [vmem:[#allocation5 + $0x18d8] sm:$0xff]
    %v790 = vld [vmem:[#allocation5 + $0x18f0] sm:$0xff]
    %v791 = vld [vmem:[#allocation5 + $0x18f8] sm:$0xff]
    %v792 = vld [vmem:[#allocation5 + $0x1900] sm:$0xff]
    %v793 = vld [vmem:[#allocation5 + $0x1908] sm:$0xff]
    %v794 = vld [vmem:[#allocation5 + $0x1910] sm:$0xff]
    %v795 = vld [vmem:[#allocation5 + $0x1918] sm:$0xff]
    %v796 = vld [vmem:[#allocation5 + $0x1920] sm:$0xff]
    %v797 = vld [vmem:[#allocation5 + $0x1928] sm:$0xff]
    %v798 = vld [vmem:[#allocation5 + $0x1930] sm:$0xff]
    %v799 = vld [vmem:[#allocation5 + $0x1938] sm:$0xff]
    %v800 = vld [vmem:[#allocation5 + $0x1950] sm:$0xff]
    %v801 = vld [vmem:[#allocation5 + $0x1958] sm:$0xff]
    %v802 = vld [vmem:[#allocation5 + $0x1960] sm:$0xff]
    %v803 = vld [vmem:[#allocation5 + $0x1968] sm:$0xff]
    %v804 = vld [vmem:[#allocation5 + $0x1970] sm:$0xff]
    %v805 = vld [vmem:[#allocation5 + $0x1978] sm:$0xff]
    %v806 = vld [vmem:[#allocation5 + $0x1980] sm:$0xff]
    %v807 = vld [vmem:[#allocation5 + $0x1988] sm:$0xff]
    %v808 = vld [vmem:[#allocation5 + $0x1990] sm:$0xff]
    %v809 = vld [vmem:[#allocation5 + $0x1998] sm:$0xff]
    %v810 = vld [vmem:[#allocation5 + $0x19b0] sm:$0xff]
    %v811 = vld [vmem:[#allocation5 + $0x19b8] sm:$0xff]
    %v812 = vld [vmem:[#allocation5 + $0x19c0] sm:$0xff]
    %v813 = vld [vmem:[#allocation5 + $0x19c8] sm:$0xff]
    %v814 = vld [vmem:[#allocation5 + $0x19d0] sm:$0xff]
    %v815 = vld [vmem:[#allocation5 + $0x19d8] sm:$0xff]
    %v816 = vld [vmem:[#allocation5 + $0x19e0] sm:$0xff]
    %v817 = vld [vmem:[#allocation5 + $0x19e8] sm:$0xff]
    %v818 = vld [vmem:[#allocation5 + $0x19f0] sm:$0xff]
    %v819 = vld [vmem:[#allocation5 + $0x19f8] sm:$0xff]
    %v820 = vld [vmem:[#allocation5 + $0x1a10] sm:$0xff]
    %v821 = vld [vmem:[#allocation5 + $0x1a18] sm:$0xff]
    %v822 = vld [vmem:[#allocation5 + $0x1a20] sm:$0xff]
    %v823 = vld [vmem:[#allocation5 + $0x1a28] sm:$0xff]
    %v824 = vld [vmem:[#allocation5 + $0x1a30] sm:$0xff]
    %v825 = vld [vmem:[#allocation5 + $0x1a38] sm:$0xff]
    %v826 = vld [vmem:[#allocation5 + $0x1a40] sm:$0xff]
    %v827 = vld [vmem:[#allocation5 + $0x1a48] sm:$0xff]
    %v828 = vld [vmem:[#allocation5 + $0x1a50] sm:$0xff]
    %v829 = vld [vmem:[#allocation5 + $0x1a58] sm:$0xff]
    %v830 = vld [vmem:[#allocation5 + $0x1a70] sm:$0xff]
    %v831 = vld [vmem:[#allocation5 + $0x1a78] sm:$0xff]
    %v832 = vld [vmem:[#allocation5 + $0x1a80] sm:$0xff]
    %v833 = vld [vmem:[#allocation5 + $0x1a88] sm:$0xff]
    %v834 = vld [vmem:[#allocation5 + $0x1a90] sm:$0xff]
    %v835 = vld [vmem:[#allocation5 + $0x1a98] sm:$0xff]
    %v836 = vld [vmem:[#allocation5 + $0x1aa0] sm:$0xff]
    %v837 = vld [vmem:[#allocation5 + $0x1aa8] sm:$0xff]
    %v838 = vld [vmem:[#allocation5 + $0x1ab0] sm:$0xff]
    %v839 = vld [vmem:[#allocation5 + $0x1ab8] sm:$0xff]
    %v840 = vld [vmem:[#allocation5 + $0x1ad0] sm:$0xff]
    %v841 = vld [vmem:[#allocation5 + $0x1ad8] sm:$0xff]
    %v842 = vld [vmem:[#allocation5 + $0x1ae0] sm:$0xff]
    %v843 = vld [vmem:[#allocation5 + $0x1ae8] sm:$0xff]
    %v844 = vld [vmem:[#allocation5 + $0x1af0] sm:$0xff]
    %v845 = vld [vmem:[#allocation5 + $0x1af8] sm:$0xff]
    %v846 = vld [vmem:[#allocation5 + $0x1b00] sm:$0xff]
    %v847 = vld [vmem:[#allocation5 + $0x1b08] sm:$0xff]
    %v848 = vld [vmem:[#allocation5 + $0x1b10] sm:$0xff]
    %v849 = vld [vmem:[#allocation5 + $0x1b18] sm:$0xff]
    %v850 = vld [vmem:[#allocation5 + $0x1b30] sm:$0xff]
    %v851 = vld [vmem:[#allocation5 + $0x1b38] sm:$0xff]
    %v852 = vld [vmem:[#allocation5 + $0x1b40] sm:$0xff]
    %v853 = vld [vmem:[#allocation5 + $0x1b48] sm:$0xff]
    %v854 = vld [vmem:[#allocation5 + $0x1b50] sm:$0xff]
    %v855 = vld [vmem:[#allocation5 + $0x1b58] sm:$0xff]
    %v856 = vld [vmem:[#allocation5 + $0x1b60] sm:$0xff]
    %v857 = vld [vmem:[#allocation5 + $0x1b68] sm:$0xff]
    %v858 = vld [vmem:[#allocation5 + $0x1b70] sm:$0xff]
    %v859 = vld [vmem:[#allocation5 + $0x1b78] sm:$0xff]
    %v860 = vld [vmem:[#allocation5 + $0x1b90] sm:$0xff]
    %v861 = vld [vmem:[#allocation5 + $0x1b98] sm:$0xff]
    %v862 = vld [vmem:[#allocation5 + $0x1ba0] sm:$0xff]
    %v863 = vld [vmem:[#allocation5 + $0x1ba8] sm:$0xff]
    %v864 = vld [vmem:[#allocation5 + $0x1bb0] sm:$0xff]
    %v865 = vld [vmem:[#allocation5 + $0x1bb8] sm:$0xff]
    %v866 = vld [vmem:[#allocation5 + $0x1bc0] sm:$0xff]
    %v867 = vld [vmem:[#allocation5 + $0x1bc8] sm:$0xff]
    %v868 = vld [vmem:[#allocation5 + $0x1bd0] sm:$0xff]
    %v869 = vld [vmem:[#allocation5 + $0x1bd8] sm:$0xff]
    %v870 = vld [vmem:[#allocation5 + $0x1bf0] sm:$0xff]
    %v871 = vld [vmem:[#allocation5 + $0x1bf8] sm:$0xff]
    %v872 = vld [vmem:[#allocation5 + $0x1c00] sm:$0xff]
    %v873 = vld [vmem:[#allocation5 + $0x1c08] sm:$0xff]
    %v874 = vld [vmem:[#allocation5 + $0x1c10] sm:$0xff]
    %v875 = vld [vmem:[#allocation5 + $0x1c18] sm:$0xff]
    %v876 = vld [vmem:[#allocation5 + $0x1c20] sm:$0xff]
    %v877 = vld [vmem:[#allocation5 + $0x1c28] sm:$0xff]
    %v878 = vld [vmem:[#allocation5 + $0x1c30] sm:$0xff]
    %v879 = vld [vmem:[#allocation5 + $0x1c38] sm:$0xff]
    %v880 = vld [vmem:[#allocation5 + $0x1c50] sm:$0xff]
    %v881 = vld [vmem:[#allocation5 + $0x1c58] sm:$0xff]
    %v882 = vld [vmem:[#allocation5 + $0x1c60] sm:$0xff]
    %v883 = vld [vmem:[#allocation5 + $0x1c68] sm:$0xff]
    %v884 = vld [vmem:[#allocation5 + $0x1c70] sm:$0xff]
    %v885 = vld [vmem:[#allocation5 + $0x1c78] sm:$0xff]
    %v886 = vld [vmem:[#allocation5 + $0x1c80] sm:$0xff]
    %v887 = vld [vmem:[#allocation5 + $0x1c88] sm:$0xff]
    %v888 = vld [vmem:[#allocation5 + $0x1c90] sm:$0xff]
    %v889 = vld [vmem:[#allocation5 + $0x1c98] sm:$0xff]
    %v890 = vld [vmem:[#allocation5 + $0x1cb0] sm:$0xff]
    %v891 = vld [vmem:[#allocation5 + $0x1cb8] sm:$0xff]
    %v892 = vld [vmem:[#allocation5 + $0x1cc0] sm:$0xff]
    %v893 = vld [vmem:[#allocation5 + $0x1cc8] sm:$0xff]
    %v894 = vld [vmem:[#allocation5 + $0x1cd0] sm:$0xff]
    %v895 = vld [vmem:[#allocation5 + $0x1cd8] sm:$0xff]
    %v896 = vld [vmem:[#allocation5 + $0x1ce0] sm:$0xff]
    %v897 = vld [vmem:[#allocation5 + $0x1ce8] sm:$0xff]
    %v898 = vld [vmem:[#allocation5 + $0x1cf0] sm:$0xff]
    %v899 = vld [vmem:[#allocation5 + $0x1cf8] sm:$0xff]
    %v900 = vld [vmem:[#allocation5 + $0x1d10] sm:$0xff]
    %v901 = vld [vmem:[#allocation5 + $0x1d18] sm:$0xff]
    %v902 = vld [vmem:[#allocation5 + $0x1d20] sm:$0xff]
    %v903 = vld [vmem:[#allocation5 + $0x1d28] sm:$0xff]
    %v904 = vld [vmem:[#allocation5 + $0x1d30] sm:$0xff]
    %v905 = vld [vmem:[#allocation5 + $0x1d38] sm:$0xff]
    %v906 = vld [vmem:[#allocation5 + $0x1d40] sm:$0xff]
    %v907 = vld [vmem:[#allocation5 + $0x1d48] sm:$0xff]
    %v908 = vld [vmem:[#allocation5 + $0x1d50] sm:$0xff]
    %v909 = vld [vmem:[#allocation5 + $0x1d58] sm:$0xff]
    %v910 = vld [vmem:[#allocation5 + $0x1d70] sm:$0xff]
    %v911 = vld [vmem:[#allocation5 + $0x1d78] sm:$0xff]
    %v912 = vld [vmem:[#allocation5 + $0x1d80] sm:$0xff]
    %v913 = vld [vmem:[#allocation5 + $0x1d88] sm:$0xff]
    %v914 = vld [vmem:[#allocation5 + $0x1d90] sm:$0xff]
    %v915 = vld [vmem:[#allocation5 + $0x1d98] sm:$0xff]
    %v916 = vld [vmem:[#allocation5 + $0x1da0] sm:$0xff]
    %v917 = vld [vmem:[#allocation5 + $0x1da8] sm:$0xff]
    %v918 = vld [vmem:[#allocation5 + $0x1db0] sm:$0xff]
    %v919 = vld [vmem:[#allocation5 + $0x1db8] sm:$0xff]
    %v920 = vld [vmem:[#allocation5 + $0x1dd0] sm:$0xff]
    %v921 = vld [vmem:[#allocation5 + $0x1dd8] sm:$0xff]
    %v922 = vld [vmem:[#allocation5 + $0x1de0] sm:$0xff]
    %v923 = vld [vmem:[#allocation5 + $0x1de8] sm:$0xff]
    %v924 = vld [vmem:[#allocation5 + $0x1df0] sm:$0xff]
    %v925 = vld [vmem:[#allocation5 + $0x1df8] sm:$0xff]
    %v926 = vld [vmem:[#allocation5 + $0x1e00] sm:$0xff]
    %v927 = vld [vmem:[#allocation5 + $0x1e08] sm:$0xff]
    %v928 = vld [vmem:[#allocation5 + $0x1e10] sm:$0xff]
    %v929 = vld [vmem:[#allocation5 + $0x1e18] sm:$0xff]
    %v930 = vld [vmem:[#allocation5 + $0x1e30] sm:$0xff]
    %v931 = vld [vmem:[#allocation5 + $0x1e38] sm:$0xff]
    %v932 = vld [vmem:[#allocation5 + $0x1e40] sm:$0xff]
    %v933 = vld [vmem:[#allocation5 + $0x1e48] sm:$0xff]
    %v934 = vld [vmem:[#allocation5 + $0x1e50] sm:$0xff]
    %v935 = vld [vmem:[#allocation5 + $0x1e58] sm:$0xff]
    %v936 = vld [vmem:[#allocation5 + $0x1e60] sm:$0xff]
    %v937 = vld [vmem:[#allocation5 + $0x1e68] sm:$0xff]
    %v938 = vld [vmem:[#allocation5 + $0x1e70] sm:$0xff]
    %v939 = vld [vmem:[#allocation5 + $0x1e78] sm:$0xff]
    %v940 = vld [vmem:[#allocation5 + $0x1e90] sm:$0xff]
    %v941 = vld [vmem:[#allocation5 + $0x1e98] sm:$0xff]
    %v942 = vld [vmem:[#allocation5 + $0x1ea0] sm:$0xff]
    %v943 = vld [vmem:[#allocation5 + $0x1ea8] sm:$0xff]
    %v944 = vld [vmem:[#allocation5 + $0x1eb0] sm:$0xff]
    %v945 = vld [vmem:[#allocation5 + $0x1eb8] sm:$0xff]
    %v946 = vld [vmem:[#allocation5 + $0x1ec0] sm:$0xff]
    %v947 = vld [vmem:[#allocation5 + $0x1ec8] sm:$0xff]
    %v948 = vld [vmem:[#allocation5 + $0x1ed0] sm:$0xff]
    %v949 = vld [vmem:[#allocation5 + $0x1ed8] sm:$0xff]
    %v950 = vld [vmem:[#allocation5 + $0x1ef0] sm:$0xff]
    %v951 = vld [vmem:[#allocation5 + $0x1ef8] sm:$0xff]
    %v952 = vld [vmem:[#allocation5 + $0x1f00] sm:$0xff]
    %v953 = vld [vmem:[#allocation5 + $0x1f08] sm:$0xff]
    %v954 = vld [vmem:[#allocation5 + $0x1f10] sm:$0xff]
    %v955 = vld [vmem:[#allocation5 + $0x1f18] sm:$0xff]
    %v956 = vld [vmem:[#allocation5 + $0x1f20] sm:$0xff]
    %v957 = vld [vmem:[#allocation5 + $0x1f28] sm:$0xff]
    %v958 = vld [vmem:[#allocation5 + $0x1f30] sm:$0xff]
    %v959 = vld [vmem:[#allocation5 + $0x1f38] sm:$0xff]
    %v960 = vld [vmem:[#allocation5 + $0x1f50] sm:$0xff]
    %v961 = vld [vmem:[#allocation5 + $0x1f58] sm:$0xff]
    %v962 = vld [vmem:[#allocation5 + $0x1f60] sm:$0xff]
    %v963 = vld [vmem:[#allocation5 + $0x1f68] sm:$0xff]
    %v964 = vld [vmem:[#allocation5 + $0x1f70] sm:$0xff]
    %v965 = vld [vmem:[#allocation5 + $0x1f78] sm:$0xff]
    %v966 = vld [vmem:[#allocation5 + $0x1f80] sm:$0xff]
    %v967 = vld [vmem:[#allocation5 + $0x1f88] sm:$0xff]
    %v968 = vld [vmem:[#allocation5 + $0x1f90] sm:$0xff]
    %v969 = vld [vmem:[#allocation5 + $0x1f98] sm:$0xff]
    %v970 = vld [vmem:[#allocation5 + $0x1fb0] sm:$0xff]
    %v971 = vld [vmem:[#allocation5 + $0x1fb8] sm:$0xff]
    %v972 = vld [vmem:[#allocation5 + $0x1fc0] sm:$0xff]
    %v973 = vld [vmem:[#allocation5 + $0x1fc8] sm:$0xff]
    %v974 = vld [vmem:[#allocation5 + $0x1fd0] sm:$0xff]
    %v975 = vld [vmem:[#allocation5 + $0x1fd8] sm:$0xff]
    %v976 = vld [vmem:[#allocation5 + $0x1fe0] sm:$0xff]
    %v977 = vld [vmem:[#allocation5 + $0x1fe8] sm:$0xff]
    %v978 = vld [vmem:[#allocation5 + $0x1ff0] sm:$0xff]
    %v979 = vld [vmem:[#allocation5 + $0x1ff8] sm:$0xff]
    %v980 = vld [vmem:[#allocation5 + $0x2010] sm:$0xff]
    %v981 = vld [vmem:[#allocation5 + $0x2018] sm:$0xff]
    %v982 = vld [vmem:[#allocation5 + $0x2020] sm:$0xff]
    %v983 = vld [vmem:[#allocation5 + $0x2028] sm:$0xff]
    %v984 = vld [vmem:[#allocation5 + $0x2030] sm:$0xff]
    %v985 = vld [vmem:[#allocation5 + $0x2038] sm:$0xff]
    %v986 = vld [vmem:[#allocation5 + $0x2040] sm:$0xff]
    %v987 = vld [vmem:[#allocation5 + $0x2048] sm:$0xff]
    %v988 = vld [vmem:[#allocation5 + $0x2050] sm:$0xff]
    %v989 = vld [vmem:[#allocation5 + $0x2058] sm:$0xff]
    %v990 = vld [vmem:[#allocation5 + $0x2070] sm:$0xff]
    %v991 = vld [vmem:[#allocation5 + $0x2078] sm:$0xff]
    %v992 = vld [vmem:[#allocation5 + $0x2080] sm:$0xff]
    %v993 = vld [vmem:[#allocation5 + $0x2088] sm:$0xff]
    %v994 = vld [vmem:[#allocation5 + $0x2090] sm:$0xff]
    %v995 = vld [vmem:[#allocation5 + $0x2098] sm:$0xff]
    %v996 = vld [vmem:[#allocation5 + $0x20a0] sm:$0xff]
    %v997 = vld [vmem:[#allocation5 + $0x20a8] sm:$0xff]
    %v998 = vld [vmem:[#allocation5 + $0x20b0] sm:$0xff]
    %v999 = vld [vmem:[#allocation5 + $0x20b8] sm:$0xff]
    %v1000 = vld [vmem:[#allocation5 + $0x20d0] sm:$0xff]
    %v1001 = vld [vmem:[#allocation5 + $0x20d8] sm:$0xff]
    %v1002 = vld [vmem:[#allocation5 + $0x20e0] sm:$0xff]
    %v1003 = vld [vmem:[#allocation5 + $0x20e8] sm:$0xff]
    %v1004 = vld [vmem:[#allocation5 + $0x20f0] sm:$0xff]
    %v1005 = vld [vmem:[#allocation5 + $0x20f8] sm:$0xff]
    %v1006 = vld [vmem:[#allocation5 + $0x2100] sm:$0xff]
    %v1007 = vld [vmem:[#allocation5 + $0x2108] sm:$0xff]
    %v1008 = vld [vmem:[#allocation5 + $0x2110] sm:$0xff]
    %v1009 = vld [vmem:[#allocation5 + $0x2118] sm:$0xff]
    %v1010 = vld [vmem:[#allocation5 + $0x2130] sm:$0xff]
    %v1011 = vld [vmem:[#allocation5 + $0x2138] sm:$0xff]
    %v1012 = vld [vmem:[#allocation5 + $0x2140] sm:$0xff]
    %v1013 = vld [vmem:[#allocation5 + $0x2148] sm:$0xff]
    %v1014 = vld [vmem:[#allocation5 + $0x2150] sm:$0xff]
    %v1015 = vld [vmem:[#allocation5 + $0x2158] sm:$0xff]
    %v1016 = vld [vmem:[#allocation5 + $0x2160] sm:$0xff]
    %v1017 = vld [vmem:[#allocation5 + $0x2168] sm:$0xff]
    %v1018 = vld [vmem:[#allocation5 + $0x2170] sm:$0xff]
    %v1019 = vld [vmem:[#allocation5 + $0x2178] sm:$0xff]
    %v1020 = vld [vmem:[#allocation5 + $0x2190] sm:$0xff]
    %v1021 = vld [vmem:[#allocation5 + $0x2198] sm:$0xff]
    %v1022 = vld [vmem:[#allocation5 + $0x21a0] sm:$0xff]
    %v1023 = vld [vmem:[#allocation5 + $0x21a8] sm:$0xff]
    %v1024 = vld [vmem:[#allocation5 + $0x21b0] sm:$0xff]
    %v1025 = vld [vmem:[#allocation5 + $0x21b8] sm:$0xff]
    %v1026 = vld [vmem:[#allocation5 + $0x21c0] sm:$0xff]
    %v1027 = vld [vmem:[#allocation5 + $0x21c8] sm:$0xff]
    %v1028 = vld [vmem:[#allocation5 + $0x21d0] sm:$0xff]
    %v1029 = vld [vmem:[#allocation5 + $0x21d8] sm:$0xff]
    %v1030 = vld [vmem:[#allocation5 + $0x21f0] sm:$0xff]
    %v1031 = vld [vmem:[#allocation5 + $0x21f8] sm:$0xff]
    %v1032 = vld [vmem:[#allocation5 + $0x2200] sm:$0xff]
    %v1033 = vld [vmem:[#allocation5 + $0x2208] sm:$0xff]
    %v1034 = vld [vmem:[#allocation5 + $0x2210] sm:$0xff]
    %v1035 = vld [vmem:[#allocation5 + $0x2218] sm:$0xff]
    %v1036 = vld [vmem:[#allocation5 + $0x2220] sm:$0xff]
    %v1037 = vld [vmem:[#allocation5 + $0x2228] sm:$0xff]
    %v1038 = vld [vmem:[#allocation5 + $0x2230] sm:$0xff]
    %v1039 = vld [vmem:[#allocation5 + $0x2238] sm:$0xff]
    %v1040 = vld [vmem:[#allocation5 + $0x2250] sm:$0xff]
    %v1041 = vld [vmem:[#allocation5 + $0x2258] sm:$0xff]
    %v1042 = vld [vmem:[#allocation5 + $0x2260] sm:$0xff]
    %v1043 = vld [vmem:[#allocation5 + $0x2268] sm:$0xff]
    %v1044 = vld [vmem:[#allocation5 + $0x2270] sm:$0xff]
    %v1045 = vld [vmem:[#allocation5 + $0x2278] sm:$0xff]
    %v1046 = vld [vmem:[#allocation5 + $0x2280] sm:$0xff]
    %v1047 = vld [vmem:[#allocation5 + $0x2288] sm:$0xff]
    %v1048 = vld [vmem:[#allocation5 + $0x2290] sm:$0xff]
    %v1049 = vld [vmem:[#allocation5 + $0x2298] sm:$0xff]
    %v1050 = vld [vmem:[#allocation5 + $0x22b0] sm:$0xff]
    %v1051 = vld [vmem:[#allocation5 + $0x22b8] sm:$0xff]
    %v1052 = vld [vmem:[#allocation5 + $0x22c0] sm:$0xff]
    %v1053 = vld [vmem:[#allocation5 + $0x22c8] sm:$0xff]
    %v1054 = vld [vmem:[#allocation5 + $0x22d0] sm:$0xff]
    %v1055 = vld [vmem:[#allocation5 + $0x22d8] sm:$0xff]
    %v1056 = vld [vmem:[#allocation5 + $0x22e0] sm:$0xff]
    %v1057 = vld [vmem:[#allocation5 + $0x22e8] sm:$0xff]
    %v1058 = vld [vmem:[#allocation5 + $0x22f0] sm:$0xff]
    %v1059 = vld [vmem:[#allocation5 + $0x22f8] sm:$0xff]
    %v1060 = vld [vmem:[#allocation5 + $0x2310] sm:$0xff]
    %v1061 = vld [vmem:[#allocation5 + $0x2318] sm:$0xff]
    %v1062 = vld [vmem:[#allocation5 + $0x2320] sm:$0xff]
    %v1063 = vld [vmem:[#allocation5 + $0x2328] sm:$0xff]
    %v1064 = vld [vmem:[#allocation5 + $0x2330] sm:$0xff]
    %v1065 = vld [vmem:[#allocation5 + $0x2338] sm:$0xff]
    %v1066 = vld [vmem:[#allocation5 + $0x2340] sm:$0xff]
    %v1067 = vld [vmem:[#allocation5 + $0x2348] sm:$0xff]
    %v1068 = vld [vmem:[#allocation5 + $0x2350] sm:$0xff]
    %v1069 = vld [vmem:[#allocation5 + $0x2358] sm:$0xff]
    %v1070 = vld [vmem:[#allocation5 + $0x2370] sm:$0xff]
    %v1071 = vld [vmem:[#allocation5 + $0x2378] sm:$0xff]
    %v1072 = vld [vmem:[#allocation5 + $0x2380] sm:$0xff]
    %v1073 = vld [vmem:[#allocation5 + $0x2388] sm:$0xff]
    %v1074 = vld [vmem:[#allocation5 + $0x2390] sm:$0xff]
    %v1075 = vld [vmem:[#allocation5 + $0x2398] sm:$0xff]
    %v1076 = vld [vmem:[#allocation5 + $0x23a0] sm:$0xff]
    %v1077 = vld [vmem:[#allocation5 + $0x23a8] sm:$0xff]
    %v1078 = vld [vmem:[#allocation5 + $0x23b0] sm:$0xff]
    %v1079 = vld [vmem:[#allocation5 + $0x23b8] sm:$0xff]
    %v1080 = vld [vmem:[#allocation5 + $0x23d0] sm:$0xff]
    %v1081 = vld [vmem:[#allocation5 + $0x23d8] sm:$0xff]
    %v1082 = vld [vmem:[#allocation5 + $0x23e0] sm:$0xff]
    %v1083 = vld [vmem:[#allocation5 + $0x23e8] sm:$0xff]
    %v1084 = vld [vmem:[#allocation5 + $0x23f0] sm:$0xff]
    %v1085 = vld [vmem:[#allocation5 + $0x23f8] sm:$0xff]
    %v1086 = vld [vmem:[#allocation7] sm:$0xff]
    %v1087 = vld [vmem:[#allocation7 + $0x8] sm:$0xf]
    %v1090 = vlaneseq
    %v1091 = vshrl.u32 %v1090, 7
    %v1092 = vsub.s32 0, %v1091
    %v1093 = vrot.slane %v1086, %v1092
    %v1094 = vlaneseq
    %v1095 = vshrl.u32 %v1094, 7
    %v1096 = vsub.s32 1, %v1095
    %v1097 = vrot.slane %v1086, %v1096
    %v1098 = vlaneseq
    %v1099 = vshrl.u32 %v1098, 7
    %v1100 = vsub.s32 2, %v1099
    %v1101 = vrot.slane %v1086, %v1100
    %v1102 = vlaneseq
    %v1103 = vshrl.u32 %v1102, 7
    %v1104 = vsub.s32 6, %v1103
    %v1105 = vrot.slane %v1086, %v1104
    %v1106 = vlaneseq
    %v1107 = vshrl.u32 %v1106, 7
    %v1108 = vsub.s32 7, %v1107
    %v1109 = vrot.slane %v1086, %v1108
    %v1110 = vlaneseq
    %v1111 = vshrl.u32 %v1110, 7
    %v1112 = vsub.s32 0, %v1111
    %v1113 = vrot.slane %v1087, %v1112
    %v1114 = vlaneseq
    %v1115 = vshrl.u32 %v1114, 7
    %v1116 = vsub.s32 1, %v1115
    %v1117 = vrot.slane %v1087, %v1116
    %v1118 = vlaneseq
    %v1119 = vshrl.u32 %v1118, 7
    %v1120 = vsub.s32 2, %v1119
    %v1121 = vrot.slane %v1087, %v1120
    %v1122 = vlaneseq
    %v1123 = vshrl.u32 %v1122, 7
    %v1124 = vsub.s32 3, %v1123
    %v1125 = vrot.slane %v1087, %v1124
    %1135 = vmatprep.subr.mxu0 %v277
    %1136 = vmatpush1.msra.mxu0 %v276
    %1137 = vmatprep.subr.mxu0 %v267
    %1138 = vmatpush1.msra.mxu0 %v266
    %1139 = vmatprep.subr.mxu0 %v257
    %1140 = vmatpush1.msra.mxu0 %v256
    %1141 = vmatprep.subr.mxu0 %v247
    %1142 = vmatpush1.msra.mxu0 %v246
    %1143 = vmatprep.subr.mxu0 %v237
    %1144 = vmatpush1.msra.mxu0 %v236
    %1145 = vmatprep.subr.mxu0 %v227
    %1146 = vmatpush1.msra.mxu0 %v226
    %1147 = vmatprep.subr.mxu0 %v217
    %1148 = vmatpush1.msra.mxu0 %v216
    %1149 = vmatprep.subr.mxu0 %v207
    %1150 = vmatpush1.msra.mxu0 %v206
    %1151 = vmatprep.subr.mxu0 %v197
    %1152 = vmatpush1.msra.mxu0 %v196
    %1153 = vmatprep.subr.mxu0 %v187
    %1154 = vmatpush1.msra.mxu0 %v186
    %1155 = vmatprep.subr.mxu0 %v177
    %1156 = vmatpush1.msra.mxu0 %v176
    %1157 = vmatprep.subr.mxu0 %v167
    %1158 = vmatpush1.msra.mxu0 %v166
    %1159 = vmatprep.subr.mxu0 %v157
    %1160 = vmatpush1.msra.mxu0 %v156
    %1161 = vmatprep.subr.mxu0 %v147
    %1162 = vmatpush1.msra.mxu0 %v146
    %1163 = vmatprep.subr.mxu0 %v137
    %1164 = vmatpush1.msra.mxu0 %v136
    %1165 = vmatprep.subr.mxu0 %v127
    %1166 = vmatpush1.msra.mxu0 %v126
    %1167 = vmatprep.subr.mxu0 %v437
    %1168 = vmatpush2.msra.mxu0 %v436
    %1169 = vmatprep.subr.mxu0 %v427
    %1170 = vmatpush2.msra.mxu0 %v426
    %1171 = vmatprep.subr.mxu0 %v417
    %1172 = vmatpush2.msra.mxu0 %v416
    %1173 = vmatprep.subr.mxu0 %v407
    %1174 = vmatpush2.msra.mxu0 %v406
    %1175 = vmatprep.subr.mxu0 %v397
    %1176 = vmatpush2.msra.mxu0 %v396
    %1177 = vmatprep.subr.mxu0 %v387
    %1178 = vmatpush2.msra.mxu0 %v386
    %1179 = vmatprep.subr.mxu0 %v377
    %1180 = vmatpush2.msra.mxu0 %v376
    %1181 = vmatprep.subr.mxu0 %v367
    %1182 = vmatpush2.msra.mxu0 %v366
    %1183 = vmatprep.subr.mxu0 %v357
    %1184 = vmatpush2.msra.mxu0 %v356
    %1185 = vmatprep.subr.mxu0 %v347
    %1186 = vmatpush2.msra.mxu0 %v346
    %1187 = vmatprep.subr.mxu0 %v337
    %1188 = vmatpush2.msra.mxu0 %v336
    %1189 = vmatprep.subr.mxu0 %v327
    %1190 = vmatpush2.msra.mxu0 %v326
    %1191 = vmatprep.subr.mxu0 %v317
    %1192 = vmatpush2.msra.mxu0 %v316
    %1193 = vmatprep.subr.mxu0 %v307
    %1194 = vmatpush2.msra.mxu0 %v306
    %1195 = vmatprep.subr.mxu0 %v297
    %1196 = vmatpush2.msra.mxu0 %v296
    %1197 = vmatprep.subr.mxu0 %v287
    %1198 = vmatpush2.msra.mxu0 %v286
    %1199 = vmatprep.mubr.f32.mxu0 %v121
    %1200 = vmatmul.mubr.f32.gmra.mxu0 %v120
    %v1201 = vpop.f32.mrf.mxu0
    %v1202 = vadd.f32 %v1093, %v1201
    %v1203 = vpop.f32.mrf.mxu0
    %v1204 = vadd.f32 %v1097, %v1203
    %1205 = vdwg.mxu0
    %1206 = vmatprep.subr.mxu0 %v597
    %1207 = vmatpush1.msra.mxu0 %v596
    %1208 = vmatprep.subr.mxu0 %v587
    %1209 = vmatpush1.msra.mxu0 %v586
    %1210 = vmatprep.subr.mxu0 %v577
    %1211 = vmatpush1.msra.mxu0 %v576
    %1212 = vmatprep.subr.mxu0 %v567
    %1213 = vmatpush1.msra.mxu0 %v566
    %1214 = vmatprep.subr.mxu0 %v557
    %1215 = vmatpush1.msra.mxu0 %v556
    %1216 = vmatprep.subr.mxu0 %v547
    %1217 = vmatpush1.msra.mxu0 %v546
    %1218 = vmatprep.subr.mxu0 %v537
    %1219 = vmatpush1.msra.mxu0 %v536
    %1220 = vmatprep.subr.mxu0 %v527
    %1221 = vmatpush1.msra.mxu0 %v526
    %1222 = vmatprep.subr.mxu0 %v517
    %1223 = vmatpush1.msra.mxu0 %v516
    %1224 = vmatprep.subr.mxu0 %v507
    %1225 = vmatpush1.msra.mxu0 %v506
    %1226 = vmatprep.subr.mxu0 %v497
    %1227 = vmatpush1.msra.mxu0 %v496
    %1228 = vmatprep.subr.mxu0 %v487
    %1229 = vmatpush1.msra.mxu0 %v486
    %1230 = vmatprep.subr.mxu0 %v477
    %1231 = vmatpush1.msra.mxu0 %v476
    %1232 = vmatprep.subr.mxu0 %v467
    %1233 = vmatpush1.msra.mxu0 %v466
    %1234 = vmatprep.subr.mxu0 %v457
    %1235 = vmatpush1.msra.mxu0 %v456
    %1236 = vmatprep.subr.mxu0 %v447
    %1237 = vmatpush1.msra.mxu0 %v446
    %1238 = vmatprep.subr.mxu0 %v757
    %1239 = vmatpush2.msra.mxu0 %v756
    %1240 = vmatprep.subr.mxu0 %v747
    %1241 = vmatpush2.msra.mxu0 %v746
    %1242 = vmatprep.subr.mxu0 %v737
    %1243 = vmatpush2.msra.mxu0 %v736
    %1244 = vmatprep.subr.mxu0 %v727
    %1245 = vmatpush2.msra.mxu0 %v726
    %1246 = vmatprep.subr.mxu0 %v717
    %1247 = vmatpush2.msra.mxu0 %v716
    %1248 = vmatprep.subr.mxu0 %v707
    %1249 = vmatpush2.msra.mxu0 %v706
    %1250 = vmatprep.subr.mxu0 %v697
    %1251 = vmatpush2.msra.mxu0 %v696
    %1252 = vmatprep.subr.mxu0 %v687
    %1253 = vmatpush2.msra.mxu0 %v686
    %1254 = vmatprep.subr.mxu0 %v677
    %1255 = vmatpush2.msra.mxu0 %v676
    %1256 = vmatprep.subr.mxu0 %v667
    %1257 = vmatpush2.msra.mxu0 %v666
    %1258 = vmatprep.subr.mxu0 %v657
    %1259 = vmatpush2.msra.mxu0 %v656
    %1260 = vmatprep.subr.mxu0 %v647
    %1261 = vmatpush2.msra.mxu0 %v646
    %1262 = vmatprep.subr.mxu0 %v637
    %1263 = vmatpush2.msra.mxu0 %v636
    %1264 = vmatprep.subr.mxu0 %v627
    %1265 = vmatpush2.msra.mxu0 %v626
    %1266 = vmatprep.subr.mxu0 %v617
    %1267 = vmatpush2.msra.mxu0 %v616
    %1268 = vmatprep.subr.mxu0 %v607
    %1269 = vmatpush2.msra.mxu0 %v606
    %1270 = vmatprep.mubr.f32.mxu0 %v123
    %1271 = vmatmul.mubr.f32.gmra.mxu0 %v122
    %v1272 = vpop.f32.mrf.mxu0
    %v1273 = vadd.f32 %v1202, %v1272
    %v1274 = vpop.f32.mrf.mxu0
    %v1275 = vadd.f32 %v1204, %v1274
    %1276 = vdwg.mxu0
    %1277 = vmatprep.subr.mxu0 %v917
    %1278 = vmatpush1.msra.mxu0 %v916
    %1279 = vmatprep.subr.mxu0 %v907
    %1280 = vmatpush1.msra.mxu0 %v906
    %1281 = vmatprep.subr.mxu0 %v897
    %1282 = vmatpush1.msra.mxu0 %v896
    %1283 = vmatprep.subr.mxu0 %v887
    %1284 = vmatpush1.msra.mxu0 %v886
    %1285 = vmatprep.subr.mxu0 %v877
    %1286 = vmatpush1.msra.mxu0 %v876
    %1287 = vmatprep.subr.mxu0 %v867
    %1288 = vmatpush1.msra.mxu0 %v866
    %1289 = vmatprep.subr.mxu0 %v857
    %1290 = vmatpush1.msra.mxu0 %v856
    %1291 = vmatprep.subr.mxu0 %v847
    %1292 = vmatpush1.msra.mxu0 %v846
    %1293 = vmatprep.subr.mxu0 %v837
    %1294 = vmatpush1.msra.mxu0 %v836
    %1295 = vmatprep.subr.mxu0 %v827
    %1296 = vmatpush1.msra.mxu0 %v826
    %1297 = vmatprep.subr.mxu0 %v817
    %1298 = vmatpush1.msra.mxu0 %v816
    %1299 = vmatprep.subr.mxu0 %v807
    %1300 = vmatpush1.msra.mxu0 %v806
    %1301 = vmatprep.subr.mxu0 %v797
    %1302 = vmatpush1.msra.mxu0 %v796
    %1303 = vmatprep.subr.mxu0 %v787
    %1304 = vmatpush1.msra.mxu0 %v786
    %1305 = vmatprep.subr.mxu0 %v777
    %1306 = vmatpush1.msra.mxu0 %v776
    %1307 = vmatprep.subr.mxu0 %v767
    %1308 = vmatpush1.msra.mxu0 %v766
    %1309 = vmatprep.subr.mxu0 %v1077
    %1310 = vmatpush2.msra.mxu0 %v1076
    %1311 = vmatprep.subr.mxu0 %v1067
    %1312 = vmatpush2.msra.mxu0 %v1066
    %1313 = vmatprep.subr.mxu0 %v1057
    %1314 = vmatpush2.msra.mxu0 %v1056
    %1315 = vmatprep.subr.mxu0 %v1047
    %1316 = vmatpush2.msra.mxu0 %v1046
    %1317 = vmatprep.subr.mxu0 %v1037
    %1318 = vmatpush2.msra.mxu0 %v1036
    %1319 = vmatprep.subr.mxu0 %v1027
    %1320 = vmatpush2.msra.mxu0 %v1026
    %1321 = vmatprep.subr.mxu0 %v1017
    %1322 = vmatpush2.msra.mxu0 %v1016
    %1323 = vmatprep.subr.mxu0 %v1007
    %1324 = vmatpush2.msra.mxu0 %v1006
    %1325 = vmatprep.subr.mxu0 %v997
    %1326 = vmatpush2.msra.mxu0 %v996
    %1327 = vmatprep.subr.mxu0 %v987
    %1328 = vmatpush2.msra.mxu0 %v986
    %1329 = vmatprep.subr.mxu0 %v977
    %1330 = vmatpush2.msra.mxu0 %v976
    %1331 = vmatprep.subr.mxu0 %v967
    %1332 = vmatpush2.msra.mxu0 %v966
    %1333 = vmatprep.subr.mxu0 %v957
    %1334 = vmatpush2.msra.mxu0 %v956
    %1335 = vmatprep.subr.mxu0 %v947
    %1336 = vmatpush2.msra.mxu0 %v946
    %1337 = vmatprep.subr.mxu0 %v937
    %1338 = vmatpush2.msra.mxu0 %v936
    %1339 = vmatprep.subr.mxu0 %v927
    %1340 = vmatpush2.msra.mxu0 %v926
    %1341 = vmatprep.mubr.f32.mxu0 %v125
    %1342 = vmatmul.mubr.f32.gmra.mxu0 %v124
    %v1343 = vpop.f32.mrf.mxu0
    %v1344 = vadd.f32 %v1273, %v1343
    %v1345 = vpop.f32.mrf.mxu0
    %v1346 = vadd.f32 %v1275, %v1345
    %1347 = vdwg.mxu0
    %1348 = vmatprep.subr.mxu0 %v279
    %1349 = vmatpush1.msra.mxu0 %v278
    %1350 = vmatprep.subr.mxu0 %v269
    %1351 = vmatpush1.msra.mxu0 %v268
    %1352 = vmatprep.subr.mxu0 %v259
    %1353 = vmatpush1.msra.mxu0 %v258
    %1354 = vmatprep.subr.mxu0 %v249
    %1355 = vmatpush1.msra.mxu0 %v248
    %1356 = vmatprep.subr.mxu0 %v239
    %1357 = vmatpush1.msra.mxu0 %v238
    %1358 = vmatprep.subr.mxu0 %v229
    %1359 = vmatpush1.msra.mxu0 %v228
    %1360 = vmatprep.subr.mxu0 %v219
    %1361 = vmatpush1.msra.mxu0 %v218
    %1362 = vmatprep.subr.mxu0 %v209
    %1363 = vmatpush1.msra.mxu0 %v208
    %1364 = vmatprep.subr.mxu0 %v199
    %1365 = vmatpush1.msra.mxu0 %v198
    %1366 = vmatprep.subr.mxu0 %v189
    %1367 = vmatpush1.msra.mxu0 %v188
    %1368 = vmatprep.subr.mxu0 %v179
    %1369 = vmatpush1.msra.mxu0 %v178
    %1370 = vmatprep.subr.mxu0 %v169
    %1371 = vmatpush1.msra.mxu0 %v168
    %1372 = vmatprep.subr.mxu0 %v159
    %1373 = vmatpush1.msra.mxu0 %v158
    %1374 = vmatprep.subr.mxu0 %v149
    %1375 = vmatpush1.msra.mxu0 %v148
    %1376 = vmatprep.subr.mxu0 %v139
    %1377 = vmatpush1.msra.mxu0 %v138
    %1378 = vmatprep.subr.mxu0 %v129
    %1379 = vmatpush1.msra.mxu0 %v128
    %1380 = vmatprep.subr.mxu0 %v439
    %1381 = vmatpush2.msra.mxu0 %v438
    %1382 = vmatprep.subr.mxu0 %v429
    %1383 = vmatpush2.msra.mxu0 %v428
    %1384 = vmatprep.subr.mxu0 %v419
    %1385 = vmatpush2.msra.mxu0 %v418
    %1386 = vmatprep.subr.mxu0 %v409
    %1387 = vmatpush2.msra.mxu0 %v408
    %1388 = vmatprep.subr.mxu0 %v399
    %1389 = vmatpush2.msra.mxu0 %v398
    %1390 = vmatprep.subr.mxu0 %v389
    %1391 = vmatpush2.msra.mxu0 %v388
    %1392 = vmatprep.subr.mxu0 %v379
    %1393 = vmatpush2.msra.mxu0 %v378
    %1394 = vmatprep.subr.mxu0 %v369
    %1395 = vmatpush2.msra.mxu0 %v368
    %1396 = vmatprep.subr.mxu0 %v359
    %1397 = vmatpush2.msra.mxu0 %v358
    %1398 = vmatprep.subr.mxu0 %v349
    %1399 = vmatpush2.msra.mxu0 %v348
    %1400 = vmatprep.subr.mxu0 %v339
    %1401 = vmatpush2.msra.mxu0 %v338
    %1402 = vmatprep.subr.mxu0 %v329
    %1403 = vmatpush2.msra.mxu0 %v328
    %1404 = vmatprep.subr.mxu0 %v319
    %1405 = vmatpush2.msra.mxu0 %v318
    %1406 = vmatprep.subr.mxu0 %v309
    %1407 = vmatpush2.msra.mxu0 %v308
    %1408 = vmatprep.subr.mxu0 %v299
    %1409 = vmatpush2.msra.mxu0 %v298
    %1410 = vmatprep.subr.mxu0 %v289
    %1411 = vmatpush2.msra.mxu0 %v288
    %1412 = vmatprep.mubr.f32.mxu0 %v121
    %1413 = vmatmul.mubr.f32.gmra.mxu0 %v120
    %v1414 = vpop.f32.mrf.mxu0
    %v1415 = vadd.f32 %v1101, %v1414
    %v1416 = vpop.f32.mrf.mxu0
    %1417 = vdwg.mxu0
    %1418 = vmatprep.subr.mxu0 %v599
    %1419 = vmatpush1.msra.mxu0 %v598
    %1420 = vmatprep.subr.mxu0 %v589
    %1421 = vmatpush1.msra.mxu0 %v588
    %1422 = vmatprep.subr.mxu0 %v579
    %1423 = vmatpush1.msra.mxu0 %v578
    %1424 = vmatprep.subr.mxu0 %v569
    %1425 = vmatpush1.msra.mxu0 %v568
    %1426 = vmatprep.subr.mxu0 %v559
    %1427 = vmatpush1.msra.mxu0 %v558
    %1428 = vmatprep.subr.mxu0 %v549
    %1429 = vmatpush1.msra.mxu0 %v548
    %1430 = vmatprep.subr.mxu0 %v539
    %1431 = vmatpush1.msra.mxu0 %v538
    %1432 = vmatprep.subr.mxu0 %v529
    %1433 = vmatpush1.msra.mxu0 %v528
    %1434 = vmatprep.subr.mxu0 %v519
    %1435 = vmatpush1.msra.mxu0 %v518
    %1436 = vmatprep.subr.mxu0 %v509
    %1437 = vmatpush1.msra.mxu0 %v508
    %1438 = vmatprep.subr.mxu0 %v499
    %1439 = vmatpush1.msra.mxu0 %v498
    %1440 = vmatprep.subr.mxu0 %v489
    %1441 = vmatpush1.msra.mxu0 %v488
    %1442 = vmatprep.subr.mxu0 %v479
    %1443 = vmatpush1.msra.mxu0 %v478
    %1444 = vmatprep.subr.mxu0 %v469
    %1445 = vmatpush1.msra.mxu0 %v468
    %1446 = vmatprep.subr.mxu0 %v459
    %1447 = vmatpush1.msra.mxu0 %v458
    %1448 = vmatprep.subr.mxu0 %v449
    %1449 = vmatpush1.msra.mxu0 %v448
    %1450 = vmatprep.subr.mxu0 %v759
    %1451 = vmatpush2.msra.mxu0 %v758
    %1452 = vmatprep.subr.mxu0 %v749
    %1453 = vmatpush2.msra.mxu0 %v748
    %1454 = vmatprep.subr.mxu0 %v739
    %1455 = vmatpush2.msra.mxu0 %v738
    %1456 = vmatprep.subr.mxu0 %v729
    %1457 = vmatpush2.msra.mxu0 %v728
    %1458 = vmatprep.subr.mxu0 %v719
    %1459 = vmatpush2.msra.mxu0 %v718
    %1460 = vmatprep.subr.mxu0 %v709
    %1461 = vmatpush2.msra.mxu0 %v708
    %1462 = vmatprep.subr.mxu0 %v699
    %1463 = vmatpush2.msra.mxu0 %v698
    %1464 = vmatprep.subr.mxu0 %v689
    %1465 = vmatpush2.msra.mxu0 %v688
    %1466 = vmatprep.subr.mxu0 %v679
    %1467 = vmatpush2.msra.mxu0 %v678
    %1468 = vmatprep.subr.mxu0 %v669
    %1469 = vmatpush2.msra.mxu0 %v668
    %1470 = vmatprep.subr.mxu0 %v659
    %1471 = vmatpush2.msra.mxu0 %v658
    %1472 = vmatprep.subr.mxu0 %v649
    %1473 = vmatpush2.msra.mxu0 %v648
    %1474 = vmatprep.subr.mxu0 %v639
    %1475 = vmatpush2.msra.mxu0 %v638
    %1476 = vmatprep.subr.mxu0 %v629
    %1477 = vmatpush2.msra.mxu0 %v628
    %1478 = vmatprep.subr.mxu0 %v619
    %1479 = vmatpush2.msra.mxu0 %v618
    %1480 = vmatprep.subr.mxu0 %v609
    %1481 = vmatpush2.msra.mxu0 %v608
    %1482 = vmatprep.mubr.f32.mxu0 %v123
    %1483 = vmatmul.mubr.f32.gmra.mxu0 %v122
    %v1484 = vpop.f32.mrf.mxu0
    %v1485 = vadd.f32 %v1415, %v1484
    %v1486 = vpop.f32.mrf.mxu0
    %1487 = vdwg.mxu0
    %1488 = vmatprep.subr.mxu0 %v919
    %1489 = vmatpush1.msra.mxu0 %v918
    %1490 = vmatprep.subr.mxu0 %v909
    %1491 = vmatpush1.msra.mxu0 %v908
    %1492 = vmatprep.subr.mxu0 %v899
    %1493 = vmatpush1.msra.mxu0 %v898
    %1494 = vmatprep.subr.mxu0 %v889
    %1495 = vmatpush1.msra.mxu0 %v888
    %1496 = vmatprep.subr.mxu0 %v879
    %1497 = vmatpush1.msra.mxu0 %v878
    %1498 = vmatprep.subr.mxu0 %v869
    %1499 = vmatpush1.msra.mxu0 %v868
    %1500 = vmatprep.subr.mxu0 %v859
    %1501 = vmatpush1.msra.mxu0 %v858
    %1502 = vmatprep.subr.mxu0 %v849
    %1503 = vmatpush1.msra.mxu0 %v848
    %1504 = vmatprep.subr.mxu0 %v839
    %1505 = vmatpush1.msra.mxu0 %v838
    %1506 = vmatprep.subr.mxu0 %v829
    %1507 = vmatpush1.msra.mxu0 %v828
    %1508 = vmatprep.subr.mxu0 %v819
    %1509 = vmatpush1.msra.mxu0 %v818
    %1510 = vmatprep.subr.mxu0 %v809
    %1511 = vmatpush1.msra.mxu0 %v808
    %1512 = vmatprep.subr.mxu0 %v799
    %1513 = vmatpush1.msra.mxu0 %v798
    %1514 = vmatprep.subr.mxu0 %v789
    %1515 = vmatpush1.msra.mxu0 %v788
    %1516 = vmatprep.subr.mxu0 %v779
    %1517 = vmatpush1.msra.mxu0 %v778
    %1518 = vmatprep.subr.mxu0 %v769
    %1519 = vmatpush1.msra.mxu0 %v768
    %1520 = vmatprep.subr.mxu0 %v1079
    %1521 = vmatpush2.msra.mxu0 %v1078
    %1522 = vmatprep.subr.mxu0 %v1069
    %1523 = vmatpush2.msra.mxu0 %v1068
    %1524 = vmatprep.subr.mxu0 %v1059
    %1525 = vmatpush2.msra.mxu0 %v1058
    %1526 = vmatprep.subr.mxu0 %v1049
    %1527 = vmatpush2.msra.mxu0 %v1048
    %1528 = vmatprep.subr.mxu0 %v1039
    %1529 = vmatpush2.msra.mxu0 %v1038
    %1530 = vmatprep.subr.mxu0 %v1029
    %1531 = vmatpush2.msra.mxu0 %v1028
    %1532 = vmatprep.subr.mxu0 %v1019
    %1533 = vmatpush2.msra.mxu0 %v1018
    %1534 = vmatprep.subr.mxu0 %v1009
    %1535 = vmatpush2.msra.mxu0 %v1008
    %1536 = vmatprep.subr.mxu0 %v999
    %1537 = vmatpush2.msra.mxu0 %v998
    %1538 = vmatprep.subr.mxu0 %v989
    %1539 = vmatpush2.msra.mxu0 %v988
    %1540 = vmatprep.subr.mxu0 %v979
    %1541 = vmatpush2.msra.mxu0 %v978
    %1542 = vmatprep.subr.mxu0 %v969
    %1543 = vmatpush2.msra.mxu0 %v968
    %1544 = vmatprep.subr.mxu0 %v959
    %1545 = vmatpush2.msra.mxu0 %v958
    %1546 = vmatprep.subr.mxu0 %v949
    %1547 = vmatpush2.msra.mxu0 %v948
    %1548 = vmatprep.subr.mxu0 %v939
    %1549 = vmatpush2.msra.mxu0 %v938
    %1550 = vmatprep.subr.mxu0 %v929
    %1551 = vmatpush2.msra.mxu0 %v928
    %1552 = vmatprep.mubr.f32.mxu0 %v125
    %1553 = vmatmul.mubr.f32.gmra.mxu0 %v124
    %v1554 = vpop.f32.mrf.mxu0
    %v1555 = vadd.f32 %v1485, %v1554
    %v1556 = vpop.f32.mrf.mxu0
    %1557 = vdwg.mxu0
    %1558 = vmatprep.subr.mxu0 %v281
    %1559 = vmatpush1.msra.mxu0 %v280
    %1560 = vmatprep.subr.mxu0 %v271
    %1561 = vmatpush1.msra.mxu0 %v270
    %1562 = vmatprep.subr.mxu0 %v261
    %1563 = vmatpush1.msra.mxu0 %v260
    %1564 = vmatprep.subr.mxu0 %v251
    %1565 = vmatpush1.msra.mxu0 %v250
    %1566 = vmatprep.subr.mxu0 %v241
    %1567 = vmatpush1.msra.mxu0 %v240
    %1568 = vmatprep.subr.mxu0 %v231
    %1569 = vmatpush1.msra.mxu0 %v230
    %1570 = vmatprep.subr.mxu0 %v221
    %1571 = vmatpush1.msra.mxu0 %v220
    %1572 = vmatprep.subr.mxu0 %v211
    %1573 = vmatpush1.msra.mxu0 %v210
    %1574 = vmatprep.subr.mxu0 %v201
    %1575 = vmatpush1.msra.mxu0 %v200
    %1576 = vmatprep.subr.mxu0 %v191
    %1577 = vmatpush1.msra.mxu0 %v190
    %1578 = vmatprep.subr.mxu0 %v181
    %1579 = vmatpush1.msra.mxu0 %v180
    %1580 = vmatprep.subr.mxu0 %v171
    %1581 = vmatpush1.msra.mxu0 %v170
    %1582 = vmatprep.subr.mxu0 %v161
    %1583 = vmatpush1.msra.mxu0 %v160
    %1584 = vmatprep.subr.mxu0 %v151
    %1585 = vmatpush1.msra.mxu0 %v150
    %1586 = vmatprep.subr.mxu0 %v141
    %1587 = vmatpush1.msra.mxu0 %v140
    %1588 = vmatprep.subr.mxu0 %v131
    %1589 = vmatpush1.msra.mxu0 %v130
    %1590 = vmatprep.subr.mxu0 %v441
    %1591 = vmatpush2.msra.mxu0 %v440
    %1592 = vmatprep.subr.mxu0 %v431
    %1593 = vmatpush2.msra.mxu0 %v430
    %1594 = vmatprep.subr.mxu0 %v421
    %1595 = vmatpush2.msra.mxu0 %v420
    %1596 = vmatprep.subr.mxu0 %v411
    %1597 = vmatpush2.msra.mxu0 %v410
    %1598 = vmatprep.subr.mxu0 %v401
    %1599 = vmatpush2.msra.mxu0 %v400
    %1600 = vmatprep.subr.mxu0 %v391
    %1601 = vmatpush2.msra.mxu0 %v390
    %1602 = vmatprep.subr.mxu0 %v381
    %1603 = vmatpush2.msra.mxu0 %v380
    %1604 = vmatprep.subr.mxu0 %v371
    %1605 = vmatpush2.msra.mxu0 %v370
    %1606 = vmatprep.subr.mxu0 %v361
    %1607 = vmatpush2.msra.mxu0 %v360
    %1608 = vmatprep.subr.mxu0 %v351
    %1609 = vmatpush2.msra.mxu0 %v350
    %1610 = vmatprep.subr.mxu0 %v341
    %1611 = vmatpush2.msra.mxu0 %v340
    %1612 = vmatprep.subr.mxu0 %v331
    %1613 = vmatpush2.msra.mxu0 %v330
    %1614 = vmatprep.subr.mxu0 %v321
    %1615 = vmatpush2.msra.mxu0 %v320
    %1616 = vmatprep.subr.mxu0 %v311
    %1617 = vmatpush2.msra.mxu0 %v310
    %1618 = vmatprep.subr.mxu0 %v301
    %1619 = vmatpush2.msra.mxu0 %v300
    %1620 = vmatprep.subr.mxu0 %v291
    %1621 = vmatpush2.msra.mxu0 %v290
    %1622 = vmatprep.mubr.f32.mxu0 %v121
    %1623 = vmatmul.mubr.f32.gmra.mxu0 %v120
    %v1624 = vpop.f32.mrf.mxu0
    %v1625 = vadd.f32 %v1105, %v1624
    %v1626 = vpop.f32.mrf.mxu0
    %v1627 = vadd.f32 %v1109, %v1626
    %1628 = vdwg.mxu0
    %1629 = vmatprep.subr.mxu0 %v601
    %1630 = vmatpush1.msra.mxu0 %v600
    %1631 = vmatprep.subr.mxu0 %v591
    %1632 = vmatpush1.msra.mxu0 %v590
    %1633 = vmatprep.subr.mxu0 %v581
    %1634 = vmatpush1.msra.mxu0 %v580
    %1635 = vmatprep.subr.mxu0 %v571
    %1636 = vmatpush1.msra.mxu0 %v570
    %1637 = vmatprep.subr.mxu0 %v561
    %1638 = vmatpush1.msra.mxu0 %v560
    %1639 = vmatprep.subr.mxu0 %v551
    %1640 = vmatpush1.msra.mxu0 %v550
    %1641 = vmatprep.subr.mxu0 %v541
    %1642 = vmatpush1.msra.mxu0 %v540
    %1643 = vmatprep.subr.mxu0 %v531
    %1644 = vmatpush1.msra.mxu0 %v530
    %1645 = vmatprep.subr.mxu0 %v521
    %1646 = vmatpush1.msra.mxu0 %v520
    %1647 = vmatprep.subr.mxu0 %v511
    %1648 = vmatpush1.msra.mxu0 %v510
    %1649 = vmatprep.subr.mxu0 %v501
    %1650 = vmatpush1.msra.mxu0 %v500
    %1651 = vmatprep.subr.mxu0 %v491
    %1652 = vmatpush1.msra.mxu0 %v490
    %1653 = vmatprep.subr.mxu0 %v481
    %1654 = vmatpush1.msra.mxu0 %v480
    %1655 = vmatprep.subr.mxu0 %v471
    %1656 = vmatpush1.msra.mxu0 %v470
    %1657 = vmatprep.subr.mxu0 %v461
    %1658 = vmatpush1.msra.mxu0 %v460
    %1659 = vmatprep.subr.mxu0 %v451
    %1660 = vmatpush1.msra.mxu0 %v450
    %1661 = vmatprep.subr.mxu0 %v761
    %1662 = vmatpush2.msra.mxu0 %v760
    %1663 = vmatprep.subr.mxu0 %v751
    %1664 = vmatpush2.msra.mxu0 %v750
    %1665 = vmatprep.subr.mxu0 %v741
    %1666 = vmatpush2.msra.mxu0 %v740
    %1667 = vmatprep.subr.mxu0 %v731
    %1668 = vmatpush2.msra.mxu0 %v730
    %1669 = vmatprep.subr.mxu0 %v721
    %1670 = vmatpush2.msra.mxu0 %v720
    %1671 = vmatprep.subr.mxu0 %v711
    %1672 = vmatpush2.msra.mxu0 %v710
    %1673 = vmatprep.subr.mxu0 %v701
    %1674 = vmatpush2.msra.mxu0 %v700
    %1675 = vmatprep.subr.mxu0 %v691
    %1676 = vmatpush2.msra.mxu0 %v690
    %1677 = vmatprep.subr.mxu0 %v681
    %1678 = vmatpush2.msra.mxu0 %v680
    %1679 = vmatprep.subr.mxu0 %v671
    %1680 = vmatpush2.msra.mxu0 %v670
    %1681 = vmatprep.subr.mxu0 %v661
    %1682 = vmatpush2.msra.mxu0 %v660
    %1683 = vmatprep.subr.mxu0 %v651
    %1684 = vmatpush2.msra.mxu0 %v650
    %1685 = vmatprep.subr.mxu0 %v641
    %1686 = vmatpush2.msra.mxu0 %v640
    %1687 = vmatprep.subr.mxu0 %v631
    %1688 = vmatpush2.msra.mxu0 %v630
    %1689 = vmatprep.subr.mxu0 %v621
    %1690 = vmatpush2.msra.mxu0 %v620
    %1691 = vmatprep.subr.mxu0 %v611
    %1692 = vmatpush2.msra.mxu0 %v610
    %1693 = vmatprep.mubr.f32.mxu0 %v123
    %1694 = vmatmul.mubr.f32.gmra.mxu0 %v122
    %v1695 = vpop.f32.mrf.mxu0
    %v1696 = vadd.f32 %v1625, %v1695
    %v1697 = vpop.f32.mrf.mxu0
    %v1698 = vadd.f32 %v1627, %v1697
    %1699 = vdwg.mxu0
    %1700 = vmatprep.subr.mxu0 %v921
    %1701 = vmatpush1.msra.mxu0 %v920
    %1702 = vmatprep.subr.mxu0 %v911
    %1703 = vmatpush1.msra.mxu0 %v910
    %1704 = vmatprep.subr.mxu0 %v901
    %1705 = vmatpush1.msra.mxu0 %v900
    %1706 = vmatprep.subr.mxu0 %v891
    %1707 = vmatpush1.msra.mxu0 %v890
    %1708 = vmatprep.subr.mxu0 %v881
    %1709 = vmatpush1.msra.mxu0 %v880
    %1710 = vmatprep.subr.mxu0 %v871
    %1711 = vmatpush1.msra.mxu0 %v870
    %1712 = vmatprep.subr.mxu0 %v861
    %1713 = vmatpush1.msra.mxu0 %v860
    %1714 = vmatprep.subr.mxu0 %v851
    %1715 = vmatpush1.msra.mxu0 %v850
    %1716 = vmatprep.subr.mxu0 %v841
    %1717 = vmatpush1.msra.mxu0 %v840
    %1718 = vmatprep.subr.mxu0 %v831
    %1719 = vmatpush1.msra.mxu0 %v830
    %1720 = vmatprep.subr.mxu0 %v821
    %1721 = vmatpush1.msra.mxu0 %v820
    %1722 = vmatprep.subr.mxu0 %v811
    %1723 = vmatpush1.msra.mxu0 %v810
    %1724 = vmatprep.subr.mxu0 %v801
    %1725 = vmatpush1.msra.mxu0 %v800
    %1726 = vmatprep.subr.mxu0 %v791
    %1727 = vmatpush1.msra.mxu0 %v790
    %1728 = vmatprep.subr.mxu0 %v781
    %1729 = vmatpush1.msra.mxu0 %v780
    %1730 = vmatprep.subr.mxu0 %v771
    %1731 = vmatpush1.msra.mxu0 %v770
    %1732 = vmatprep.subr.mxu0 %v1081
    %1733 = vmatpush2.msra.mxu0 %v1080
    %1734 = vmatprep.subr.mxu0 %v1071
    %1735 = vmatpush2.msra.mxu0 %v1070
    %1736 = vmatprep.subr.mxu0 %v1061
    %1737 = vmatpush2.msra.mxu0 %v1060
    %1738 = vmatprep.subr.mxu0 %v1051
    %1739 = vmatpush2.msra.mxu0 %v1050
    %1740 = vmatprep.subr.mxu0 %v1041
    %1741 = vmatpush2.msra.mxu0 %v1040
    %1742 = vmatprep.subr.mxu0 %v1031
    %1743 = vmatpush2.msra.mxu0 %v1030
    %1744 = vmatprep.subr.mxu0 %v1021
    %1745 = vmatpush2.msra.mxu0 %v1020
    %1746 = vmatprep.subr.mxu0 %v1011
    %1747 = vmatpush2.msra.mxu0 %v1010
    %1748 = vmatprep.subr.mxu0 %v1001
    %1749 = vmatpush2.msra.mxu0 %v1000
    %1750 = vmatprep.subr.mxu0 %v991
    %1751 = vmatpush2.msra.mxu0 %v990
    %1752 = vmatprep.subr.mxu0 %v981
    %1753 = vmatpush2.msra.mxu0 %v980
    %1754 = vmatprep.subr.mxu0 %v971
    %1755 = vmatpush2.msra.mxu0 %v970
    %1756 = vmatprep.subr.mxu0 %v961
    %1757 = vmatpush2.msra.mxu0 %v960
    %1758 = vmatprep.subr.mxu0 %v951
    %1759 = vmatpush2.msra.mxu0 %v950
    %1760 = vmatprep.subr.mxu0 %v941
    %1761 = vmatpush2.msra.mxu0 %v940
    %1762 = vmatprep.subr.mxu0 %v931
    %1763 = vmatpush2.msra.mxu0 %v930
    %1764 = vmatprep.mubr.f32.mxu0 %v125
    %1765 = vmatmul.mubr.f32.gmra.mxu0 %v124
    %v1766 = vpop.f32.mrf.mxu0
    %v1767 = vadd.f32 %v1696, %v1766
    %v1768 = vpop.f32.mrf.mxu0
    %v1769 = vadd.f32 %v1698, %v1768
    %1770 = vdwg.mxu0
    %1771 = vmatprep.subr.mxu0 %v283
    %1772 = vmatpush1.msra.mxu0 %v282
    %1773 = vmatprep.subr.mxu0 %v273
    %1774 = vmatpush1.msra.mxu0 %v272
    %1775 = vmatprep.subr.mxu0 %v263
    %1776 = vmatpush1.msra.mxu0 %v262
    %1777 = vmatprep.subr.mxu0 %v253
    %1778 = vmatpush1.msra.mxu0 %v252
    %1779 = vmatprep.subr.mxu0 %v243
    %1780 = vmatpush1.msra.mxu0 %v242
    %1781 = vmatprep.subr.mxu0 %v233
    %1782 = vmatpush1.msra.mxu0 %v232
    %1783 = vmatprep.subr.mxu0 %v223
    %1784 = vmatpush1.msra.mxu0 %v222
    %1785 = vmatprep.subr.mxu0 %v213
    %1786 = vmatpush1.msra.mxu0 %v212
    %1787 = vmatprep.subr.mxu0 %v203
    %1788 = vmatpush1.msra.mxu0 %v202
    %1789 = vmatprep.subr.mxu0 %v193
    %1790 = vmatpush1.msra.mxu0 %v192
    %1791 = vmatprep.subr.mxu0 %v183
    %1792 = vmatpush1.msra.mxu0 %v182
    %1793 = vmatprep.subr.mxu0 %v173
    %1794 = vmatpush1.msra.mxu0 %v172
    %1795 = vmatprep.subr.mxu0 %v163
    %1796 = vmatpush1.msra.mxu0 %v162
    %1797 = vmatprep.subr.mxu0 %v153
    %1798 = vmatpush1.msra.mxu0 %v152
    %1799 = vmatprep.subr.mxu0 %v143
    %1800 = vmatpush1.msra.mxu0 %v142
    %1801 = vmatprep.subr.mxu0 %v133
    %1802 = vmatpush1.msra.mxu0 %v132
    %1803 = vmatprep.subr.mxu0 %v443
    %1804 = vmatpush2.msra.mxu0 %v442
    %1805 = vmatprep.subr.mxu0 %v433
    %1806 = vmatpush2.msra.mxu0 %v432
    %1807 = vmatprep.subr.mxu0 %v423
    %1808 = vmatpush2.msra.mxu0 %v422
    %1809 = vmatprep.subr.mxu0 %v413
    %1810 = vmatpush2.msra.mxu0 %v412
    %1811 = vmatprep.subr.mxu0 %v403
    %1812 = vmatpush2.msra.mxu0 %v402
    %1813 = vmatprep.subr.mxu0 %v393
    %1814 = vmatpush2.msra.mxu0 %v392
    %1815 = vmatprep.subr.mxu0 %v383
    %1816 = vmatpush2.msra.mxu0 %v382
    %1817 = vmatprep.subr.mxu0 %v373
    %1818 = vmatpush2.msra.mxu0 %v372
    %1819 = vmatprep.subr.mxu0 %v363
    %1820 = vmatpush2.msra.mxu0 %v362
    %1821 = vmatprep.subr.mxu0 %v353
    %1822 = vmatpush2.msra.mxu0 %v352
    %1823 = vmatprep.subr.mxu0 %v343
    %1824 = vmatpush2.msra.mxu0 %v342
    %1825 = vmatprep.subr.mxu0 %v333
    %1826 = vmatpush2.msra.mxu0 %v332
    %1827 = vmatprep.subr.mxu0 %v323
    %1828 = vmatpush2.msra.mxu0 %v322
    %1829 = vmatprep.subr.mxu0 %v313
    %1830 = vmatpush2.msra.mxu0 %v312
    %1831 = vmatprep.subr.mxu0 %v303
    %1832 = vmatpush2.msra.mxu0 %v302
    %1833 = vmatprep.subr.mxu0 %v293
    %1834 = vmatpush2.msra.mxu0 %v292
    %1835 = vmatprep.mubr.f32.mxu0 %v121
    %1836 = vmatmul.mubr.f32.gmra.mxu0 %v120
    %v1837 = vpop.f32.mrf.mxu0
    %v1838 = vadd.f32 %v1113, %v1837
    %v1839 = vpop.f32.mrf.mxu0
    %v1840 = vadd.f32 %v1117, %v1839
    %1841 = vdwg.mxu0
    %1842 = vmatprep.subr.mxu0 %v603
    %1843 = vmatpush1.msra.mxu0 %v602
    %1844 = vmatprep.subr.mxu0 %v593
    %1845 = vmatpush1.msra.mxu0 %v592
    %1846 = vmatprep.subr.mxu0 %v583
    %1847 = vmatpush1.msra.mxu0 %v582
    %1848 = vmatprep.subr.mxu0 %v573
    %1849 = vmatpush1.msra.mxu0 %v572
    %1850 = vmatprep.subr.mxu0 %v563
    %1851 = vmatpush1.msra.mxu0 %v562
    %1852 = vmatprep.subr.mxu0 %v553
    %1853 = vmatpush1.msra.mxu0 %v552
    %1854 = vmatprep.subr.mxu0 %v543
    %1855 = vmatpush1.msra.mxu0 %v542
    %1856 = vmatprep.subr.mxu0 %v533
    %1857 = vmatpush1.msra.mxu0 %v532
    %1858 = vmatprep.subr.mxu0 %v523
    %1859 = vmatpush1.msra.mxu0 %v522
    %1860 = vmatprep.subr.mxu0 %v513
    %1861 = vmatpush1.msra.mxu0 %v512
    %1862 = vmatprep.subr.mxu0 %v503
    %1863 = vmatpush1.msra.mxu0 %v502
    %1864 = vmatprep.subr.mxu0 %v493
    %1865 = vmatpush1.msra.mxu0 %v492
    %1866 = vmatprep.subr.mxu0 %v483
    %1867 = vmatpush1.msra.mxu0 %v482
    %1868 = vmatprep.subr.mxu0 %v473
    %1869 = vmatpush1.msra.mxu0 %v472
    %1870 = vmatprep.subr.mxu0 %v463
    %1871 = vmatpush1.msra.mxu0 %v462
    %1872 = vmatprep.subr.mxu0 %v453
    %1873 = vmatpush1.msra.mxu0 %v452
    %1874 = vmatprep.subr.mxu0 %v763
    %1875 = vmatpush2.msra.mxu0 %v762
    %1876 = vmatprep.subr.mxu0 %v753
    %1877 = vmatpush2.msra.mxu0 %v752
    %1878 = vmatprep.subr.mxu0 %v743
    %1879 = vmatpush2.msra.mxu0 %v742
    %1880 = vmatprep.subr.mxu0 %v733
    %1881 = vmatpush2.msra.mxu0 %v732
    %1882 = vmatprep.subr.mxu0 %v723
    %1883 = vmatpush2.msra.mxu0 %v722
    %1884 = vmatprep.subr.mxu0 %v713
    %1885 = vmatpush2.msra.mxu0 %v712
    %1886 = vmatprep.subr.mxu0 %v703
    %1887 = vmatpush2.msra.mxu0 %v702
    %1888 = vmatprep.subr.mxu0 %v693
    %1889 = vmatpush2.msra.mxu0 %v692
    %1890 = vmatprep.subr.mxu0 %v683
    %1891 = vmatpush2.msra.mxu0 %v682
    %1892 = vmatprep.subr.mxu0 %v673
    %1893 = vmatpush2.msra.mxu0 %v672
    %1894 = vmatprep.subr.mxu0 %v663
    %1895 = vmatpush2.msra.mxu0 %v662
    %1896 = vmatprep.subr.mxu0 %v653
    %1897 = vmatpush2.msra.mxu0 %v652
    %1898 = vmatprep.subr.mxu0 %v643
    %1899 = vmatpush2.msra.mxu0 %v642
    %1900 = vmatprep.subr.mxu0 %v633
    %1901 = vmatpush2.msra.mxu0 %v632
    %1902 = vmatprep.subr.mxu0 %v623
    %1903 = vmatpush2.msra.mxu0 %v622
    %1904 = vmatprep.subr.mxu0 %v613
    %1905 = vmatpush2.msra.mxu0 %v612
    %1906 = vmatprep.mubr.f32.mxu0 %v123
    %1907 = vmatmul.mubr.f32.gmra.mxu0 %v122
    %v1908 = vpop.f32.mrf.mxu0
    %v1909 = vadd.f32 %v1838, %v1908
    %v1910 = vpop.f32.mrf.mxu0
    %v1911 = vadd.f32 %v1840, %v1910
    %1912 = vdwg.mxu0
    %1913 = vmatprep.subr.mxu0 %v923
    %1914 = vmatpush1.msra.mxu0 %v922
    %1915 = vmatprep.subr.mxu0 %v913
    %1916 = vmatpush1.msra.mxu0 %v912
    %1917 = vmatprep.subr.mxu0 %v903
    %1918 = vmatpush1.msra.mxu0 %v902
    %1919 = vmatprep.subr.mxu0 %v893
    %1920 = vmatpush1.msra.mxu0 %v892
    %1921 = vmatprep.subr.mxu0 %v883
    %1922 = vmatpush1.msra.mxu0 %v882
    %1923 = vmatprep.subr.mxu0 %v873
    %1924 = vmatpush1.msra.mxu0 %v872
    %1925 = vmatprep.subr.mxu0 %v863
    %1926 = vmatpush1.msra.mxu0 %v862
    %1927 = vmatprep.subr.mxu0 %v853
    %1928 = vmatpush1.msra.mxu0 %v852
    %1929 = vmatprep.subr.mxu0 %v843
    %1930 = vmatpush1.msra.mxu0 %v842
    %1931 = vmatprep.subr.mxu0 %v833
    %1932 = vmatpush1.msra.mxu0 %v832
    %1933 = vmatprep.subr.mxu0 %v823
    %1934 = vmatpush1.msra.mxu0 %v822
    %1935 = vmatprep.subr.mxu0 %v813
    %1936 = vmatpush1.msra.mxu0 %v812
    %1937 = vmatprep.subr.mxu0 %v803
    %1938 = vmatpush1.msra.mxu0 %v802
    %1939 = vmatprep.subr.mxu0 %v793
    %1940 = vmatpush1.msra.mxu0 %v792
    %1941 = vmatprep.subr.mxu0 %v783
    %1942 = vmatpush1.msra.mxu0 %v782
    %1943 = vmatprep.subr.mxu0 %v773
    %1944 = vmatpush1.msra.mxu0 %v772
    %1945 = vmatprep.subr.mxu0 %v1083
    %1946 = vmatpush2.msra.mxu0 %v1082
    %1947 = vmatprep.subr.mxu0 %v1073
    %1948 = vmatpush2.msra.mxu0 %v1072
    %1949 = vmatprep.subr.mxu0 %v1063
    %1950 = vmatpush2.msra.mxu0 %v1062
    %1951 = vmatprep.subr.mxu0 %v1053
    %1952 = vmatpush2.msra.mxu0 %v1052
    %1953 = vmatprep.subr.mxu0 %v1043
    %1954 = vmatpush2.msra.mxu0 %v1042
    %1955 = vmatprep.subr.mxu0 %v1033
    %1956 = vmatpush2.msra.mxu0 %v1032
    %1957 = vmatprep.subr.mxu0 %v1023
    %1958 = vmatpush2.msra.mxu0 %v1022
    %1959 = vmatprep.subr.mxu0 %v1013
    %1960 = vmatpush2.msra.mxu0 %v1012
    %1961 = vmatprep.subr.mxu0 %v1003
    %1962 = vmatpush2.msra.mxu0 %v1002
    %1963 = vmatprep.subr.mxu0 %v993
    %1964 = vmatpush2.msra.mxu0 %v992
    %1965 = vmatprep.subr.mxu0 %v983
    %1966 = vmatpush2.msra.mxu0 %v982
    %1967 = vmatprep.subr.mxu0 %v973
    %1968 = vmatpush2.msra.mxu0 %v972
    %1969 = vmatprep.subr.mxu0 %v963
    %1970 = vmatpush2.msra.mxu0 %v962
    %1971 = vmatprep.subr.mxu0 %v953
    %1972 = vmatpush2.msra.mxu0 %v952
    %1973 = vmatprep.subr.mxu0 %v943
    %1974 = vmatpush2.msra.mxu0 %v942
    %1975 = vmatprep.subr.mxu0 %v933
    %1976 = vmatpush2.msra.mxu0 %v932
    %1977 = vmatprep.mubr.f32.mxu0 %v125
    %1978 = vmatmul.mubr.f32.gmra.mxu0 %v124
    %v1979 = vpop.f32.mrf.mxu0
    %v1980 = vadd.f32 %v1909, %v1979
    %v1981 = vpop.f32.mrf.mxu0
    %v1982 = vadd.f32 %v1911, %v1981
    %1983 = vdwg.mxu0
    %1984 = vmatprep.subr.mxu0 %v285
    %1985 = vmatpush1.msra.mxu0 %v284
    %1986 = vmatprep.subr.mxu0 %v275
    %1987 = vmatpush1.msra.mxu0 %v274
    %1988 = vmatprep.subr.mxu0 %v265
    %1989 = vmatpush1.msra.mxu0 %v264
    %1990 = vmatprep.subr.mxu0 %v255
    %1991 = vmatpush1.msra.mxu0 %v254
    %1992 = vmatprep.subr.mxu0 %v245
    %1993 = vmatpush1.msra.mxu0 %v244
    %1994 = vmatprep.subr.mxu0 %v235
    %1995 = vmatpush1.msra.mxu0 %v234
    %1996 = vmatprep.subr.mxu0 %v225
    %1997 = vmatpush1.msra.mxu0 %v224
    %1998 = vmatprep.subr.mxu0 %v215
    %1999 = vmatpush1.msra.mxu0 %v214
    %2000 = vmatprep.subr.mxu0 %v205
    %2001 = vmatpush1.msra.mxu0 %v204
    %2002 = vmatprep.subr.mxu0 %v195
    %2003 = vmatpush1.msra.mxu0 %v194
    %2004 = vmatprep.subr.mxu0 %v185
    %2005 = vmatpush1.msra.mxu0 %v184
    %2006 = vmatprep.subr.mxu0 %v175
    %2007 = vmatpush1.msra.mxu0 %v174
    %2008 = vmatprep.subr.mxu0 %v165
    %2009 = vmatpush1.msra.mxu0 %v164
    %2010 = vmatprep.subr.mxu0 %v155
    %2011 = vmatpush1.msra.mxu0 %v154
    %2012 = vmatprep.subr.mxu0 %v145
    %2013 = vmatpush1.msra.mxu0 %v144
    %2014 = vmatprep.subr.mxu0 %v135
    %2015 = vmatpush1.msra.mxu0 %v134
    %2016 = vmatprep.subr.mxu0 %v445
    %2017 = vmatpush2.msra.mxu0 %v444
    %2018 = vmatprep.subr.mxu0 %v435
    %2019 = vmatpush2.msra.mxu0 %v434
    %2020 = vmatprep.subr.mxu0 %v425
    %2021 = vmatpush2.msra.mxu0 %v424
    %2022 = vmatprep.subr.mxu0 %v415
    %2023 = vmatpush2.msra.mxu0 %v414
    %2024 = vmatprep.subr.mxu0 %v405
    %2025 = vmatpush2.msra.mxu0 %v404
    %2026 = vmatprep.subr.mxu0 %v395
    %2027 = vmatpush2.msra.mxu0 %v394
    %2028 = vmatprep.subr.mxu0 %v385
    %2029 = vmatpush2.msra.mxu0 %v384
    %2030 = vmatprep.subr.mxu0 %v375
    %2031 = vmatpush2.msra.mxu0 %v374
    %2032 = vmatprep.subr.mxu0 %v365
    %2033 = vmatpush2.msra.mxu0 %v364
    %2034 = vmatprep.subr.mxu0 %v355
    %2035 = vmatpush2.msra.mxu0 %v354
    %2036 = vmatprep.subr.mxu0 %v345
    %2037 = vmatpush2.msra.mxu0 %v344
    %2038 = vmatprep.subr.mxu0 %v335
    %2039 = vmatpush2.msra.mxu0 %v334
    %2040 = vmatprep.subr.mxu0 %v325
    %2041 = vmatpush2.msra.mxu0 %v324
    %2042 = vmatprep.subr.mxu0 %v315
    %2043 = vmatpush2.msra.mxu0 %v314
    %2044 = vmatprep.subr.mxu0 %v305
    %2045 = vmatpush2.msra.mxu0 %v304
    %2046 = vmatprep.subr.mxu0 %v295
    %2047 = vmatpush2.msra.mxu0 %v294
    %2048 = vmatprep.mubr.f32.mxu0 %v121
    %2049 = vmatmul.mubr.f32.gmra.mxu0 %v120
    %v2050 = vpop.f32.mrf.mxu0
    %v2051 = vadd.f32 %v1121, %v2050
    %v2052 = vpop.f32.mrf.mxu0
    %v2053 = vadd.f32 %v1125, %v2052
    %2054 = vdwg.mxu0
    %2055 = vmatprep.subr.mxu0 %v605
    %2056 = vmatpush1.msra.mxu0 %v604
    %2057 = vmatprep.subr.mxu0 %v595
    %2058 = vmatpush1.msra.mxu0 %v594
    %2059 = vmatprep.subr.mxu0 %v585
    %2060 = vmatpush1.msra.mxu0 %v584
    %2061 = vmatprep.subr.mxu0 %v575
    %2062 = vmatpush1.msra.mxu0 %v574
    %2063 = vmatprep.subr.mxu0 %v565
    %2064 = vmatpush1.msra.mxu0 %v564
    %2065 = vmatprep.subr.mxu0 %v555
    %2066 = vmatpush1.msra.mxu0 %v554
    %2067 = vmatprep.subr.mxu0 %v545
    %2068 = vmatpush1.msra.mxu0 %v544
    %2069 = vmatprep.subr.mxu0 %v535
    %2070 = vmatpush1.msra.mxu0 %v534
    %2071 = vmatprep.subr.mxu0 %v525
    %2072 = vmatpush1.msra.mxu0 %v524
    %2073 = vmatprep.subr.mxu0 %v515
    %2074 = vmatpush1.msra.mxu0 %v514
    %2075 = vmatprep.subr.mxu0 %v505
    %2076 = vmatpush1.msra.mxu0 %v504
    %2077 = vmatprep.subr.mxu0 %v495
    %2078 = vmatpush1.msra.mxu0 %v494
    %2079 = vmatprep.subr.mxu0 %v485
    %2080 = vmatpush1.msra.mxu0 %v484
    %2081 = vmatprep.subr.mxu0 %v475
    %2082 = vmatpush1.msra.mxu0 %v474
    %2083 = vmatprep.subr.mxu0 %v465
    %2084 = vmatpush1.msra.mxu0 %v464
    %2085 = vmatprep.subr.mxu0 %v455
    %2086 = vmatpush1.msra.mxu0 %v454
    %2087 = vmatprep.subr.mxu0 %v765
    %2088 = vmatpush2.msra.mxu0 %v764
    %2089 = vmatprep.subr.mxu0 %v755
    %2090 = vmatpush2.msra.mxu0 %v754
    %2091 = vmatprep.subr.mxu0 %v745
    %2092 = vmatpush2.msra.mxu0 %v744
    %2093 = vmatprep.subr.mxu0 %v735
    %2094 = vmatpush2.msra.mxu0 %v734
    %2095 = vmatprep.subr.mxu0 %v725
    %2096 = vmatpush2.msra.mxu0 %v724
    %2097 = vmatprep.subr.mxu0 %v715
    %2098 = vmatpush2.msra.mxu0 %v714
    %2099 = vmatprep.subr.mxu0 %v705
    %2100 = vmatpush2.msra.mxu0 %v704
    %2101 = vmatprep.subr.mxu0 %v695
    %2102 = vmatpush2.msra.mxu0 %v694
    %2103 = vmatprep.subr.mxu0 %v685
    %2104 = vmatpush2.msra.mxu0 %v684
    %2105 = vmatprep.subr.mxu0 %v675
    %2106 = vmatpush2.msra.mxu0 %v674
    %2107 = vmatprep.subr.mxu0 %v665
    %2108 = vmatpush2.msra.mxu0 %v664
    %2109 = vmatprep.subr.mxu0 %v655
    %2110 = vmatpush2.msra.mxu0 %v654
    %2111 = vmatprep.subr.mxu0 %v645
    %2112 = vmatpush2.msra.mxu0 %v644
    %2113 = vmatprep.subr.mxu0 %v635
    %2114 = vmatpush2.msra.mxu0 %v634
    %2115 = vmatprep.subr.mxu0 %v625
    %2116 = vmatpush2.msra.mxu0 %v624
    %2117 = vmatprep.subr.mxu0 %v615
    %2118 = vmatpush2.msra.mxu0 %v614
    %2119 = vmatprep.mubr.f32.mxu0 %v123
    %2120 = vmatmul.mubr.f32.gmra.mxu0 %v122
    %v2121 = vpop.f32.mrf.mxu0
    %v2122 = vadd.f32 %v2051, %v2121
    %v2123 = vpop.f32.mrf.mxu0
    %v2124 = vadd.f32 %v2053, %v2123
    %2125 = vdwg.mxu0
    %2126 = vmatprep.subr.mxu0 %v925
    %2127 = vmatpush1.msra.mxu0 %v924
    %2128 = vmatprep.subr.mxu0 %v915
    %2129 = vmatpush1.msra.mxu0 %v914
    %2130 = vmatprep.subr.mxu0 %v905
    %2131 = vmatpush1.msra.mxu0 %v904
    %2132 = vmatprep.subr.mxu0 %v895
    %2133 = vmatpush1.msra.mxu0 %v894
    %2134 = vmatprep.subr.mxu0 %v885
    %2135 = vmatpush1.msra.mxu0 %v884
    %2136 = vmatprep.subr.mxu0 %v875
    %2137 = vmatpush1.msra.mxu0 %v874
    %2138 = vmatprep.subr.mxu0 %v865
    %2139 = vmatpush1.msra.mxu0 %v864
    %2140 = vmatprep.subr.mxu0 %v855
    %2141 = vmatpush1.msra.mxu0 %v854
    %2142 = vmatprep.subr.mxu0 %v845
    %2143 = vmatpush1.msra.mxu0 %v844
    %2144 = vmatprep.subr.mxu0 %v835
    %2145 = vmatpush1.msra.mxu0 %v834
    %2146 = vmatprep.subr.mxu0 %v825
    %2147 = vmatpush1.msra.mxu0 %v824
    %2148 = vmatprep.subr.mxu0 %v815
    %2149 = vmatpush1.msra.mxu0 %v814
    %2150 = vmatprep.subr.mxu0 %v805
    %2151 = vmatpush1.msra.mxu0 %v804
    %2152 = vmatprep.subr.mxu0 %v795
    %2153 = vmatpush1.msra.mxu0 %v794
    %2154 = vmatprep.subr.mxu0 %v785
    %2155 = vmatpush1.msra.mxu0 %v784
    %2156 = vmatprep.subr.mxu0 %v775
    %2157 = vmatpush1.msra.mxu0 %v774
    %2158 = vmatprep.subr.mxu0 %v1085
    %2159 = vmatpush2.msra.mxu0 %v1084
    %2160 = vmatprep.subr.mxu0 %v1075
    %2161 = vmatpush2.msra.mxu0 %v1074
    %2162 = vmatprep.subr.mxu0 %v1065
    %2163 = vmatpush2.msra.mxu0 %v1064
    %2164 = vmatprep.subr.mxu0 %v1055
    %2165 = vmatpush2.msra.mxu0 %v1054
    %2166 = vmatprep.subr.mxu0 %v1045
    %2167 = vmatpush2.msra.mxu0 %v1044
    %2168 = vmatprep.subr.mxu0 %v1035
    %2169 = vmatpush2.msra.mxu0 %v1034
    %2170 = vmatprep.subr.mxu0 %v1025
    %2171 = vmatpush2.msra.mxu0 %v1024
    %2172 = vmatprep.subr.mxu0 %v1015
    %2173 = vmatpush2.msra.mxu0 %v1014
    %2174 = vmatprep.subr.mxu0 %v1005
    %2175 = vmatpush2.msra.mxu0 %v1004
    %2176 = vmatprep.subr.mxu0 %v995
    %2177 = vmatpush2.msra.mxu0 %v994
    %2178 = vmatprep.subr.mxu0 %v985
    %2179 = vmatpush2.msra.mxu0 %v984
    %2180 = vmatprep.subr.mxu0 %v975
    %2181 = vmatpush2.msra.mxu0 %v974
    %2182 = vmatprep.subr.mxu0 %v965
    %2183 = vmatpush2.msra.mxu0 %v964
    %2184 = vmatprep.subr.mxu0 %v955
    %2185 = vmatpush2.msra.mxu0 %v954
    %2186 = vmatprep.subr.mxu0 %v945
    %2187 = vmatpush2.msra.mxu0 %v944
    %2188 = vmatprep.subr.mxu0 %v935
    %2189 = vmatpush2.msra.mxu0 %v934
    %2190 = vmatprep.mubr.f32.mxu0 %v125
    %2191 = vmatmul.mubr.f32.gmra.mxu0 %v124
    %v2192 = vpop.f32.mrf.mxu0
    %v2193 = vadd.f32 %v2122, %v2192
    %v2194 = vpop.f32.mrf.mxu0
    %v2195 = vadd.f32 %v2124, %v2194
    %2196 = vdwg.mxu0
    %v2197 = vxor.u32 %v1344, 2147483648
    %v2198 = vxor.u32 %v1346, 2147483648
    %v2199 = vxor.u32 %v1555, 2147483648
    %v2200 = vmul.f32 %v2197, 1.442695
    %v2201 = vpow.pop %v2200
    %v2202 = vmul.f32 %v2198, 1.442695
    %v2203 = vpow.pop %v2202
    %v2204 = vmul.f32 %v2199, 1.442695
    %v2205 = vpow.pop %v2204
    %v2206 = vadd.f32 %v2201, 1.0
    %v2207 = vadd.f32 %v2203, 1.0
    %v2208 = vadd.f32 %v2205, 1.0
    %v2209 = vrcp.pop %v2206
    %v2210 = vmul.f32 1.0, %v2209
    %v2211 = vrcp.pop %v2207
    %v2212 = vmul.f32 1.0, %v2211
    %v2213 = vrcp.pop %v2208
    %v2214 = vmul.f32 1.0, %v2213
    %v2215 = vtanh.pop %v1767
    %v2216 = vtanh.pop %v1769
    %v2217 = vtanh.pop %v1980
    %v2218 = vmul.f32 %v2210, %v2215
    %v2219 = vmul.f32 %v2212, %v2216
    %v2220 = vmul.f32 %v2214, %v2217
    %v2221 = vxor.u32 %v1982, 2147483648
    %v2222 = vxor.u32 %v2193, 2147483648
    %v2223 = vxor.u32 %v2195, 2147483648
    %v2224 = vmul.f32 %v2221, 1.442695
    %v2225 = vpow.pop %v2224
    %v2226 = vmul.f32 %v2222, 1.442695
    %v2227 = vpow.pop %v2226
    %v2228 = vmul.f32 %v2223, 1.442695
    %v2229 = vpow.pop %v2228
    %v2230 = vadd.f32 %v2225, 1.0
    %v2231 = vadd.f32 %v2227, 1.0
    %v2232 = vadd.f32 %v2229, 1.0
    %v2233 = vrcp.pop %v2230
    %v2234 = vmul.f32 1.0, %v2233
    %v2235 = vrcp.pop %v2231
    %v2236 = vmul.f32 1.0, %v2235
    %v2237 = vrcp.pop %v2232
    %v2238 = vmul.f32 1.0, %v2237
    %v2239 = vtanh.pop %v2218
    %v2240 = vtanh.pop %v2219
    %v2241 = vtanh.pop %v2220
    %v2242 = vmul.f32 %v2234, %v2239
    %v2243 = vmul.f32 %v2236, %v2240
    %v2244 = vmul.f32 %v2238, %v2241
    %v2245 = vld [vmem:[#allocation8] sm:$0xff]
    %v2246 = vld [vmem:[#allocation8 + $0x8] sm:$0xff]
    %v2247 = vld [vmem:[#allocation8 + $0x10] sm:$0xff]
    %v2248 = vld [vmem:[#allocation8 + $0x18] sm:$0xff]
    %v2249 = vld [vmem:[#allocation8 + $0x30] sm:$0xff]
    %v2250 = vld [vmem:[#allocation8 + $0x38] sm:$0xff]
    %v2251 = vld [vmem:[#allocation8 + $0x40] sm:$0xff]
    %v2252 = vld [vmem:[#allocation8 + $0x48] sm:$0xff]
    %v2253 = vld [vmem:[#allocation8 + $0x50] sm:$0xff]
    %v2254 = vld [vmem:[#allocation8 + $0x58] sm:$0xff]
    %v2255 = vld [vmem:[#allocation8 + $0x60] sm:$0xff]
    %v2256 = vld [vmem:[#allocation8 + $0x68] sm:$0xff]
    %v2257 = vld [vmem:[#allocation8 + $0x70] sm:$0xff]
    %v2258 = vld [vmem:[#allocation8 + $0x78] sm:$0xff]
    %v2259 = vld [vmem:[#allocation8 + $0x90] sm:$0xff]
    %v2260 = vld [vmem:[#allocation8 + $0x98] sm:$0xff]
    %v2261 = vld [vmem:[#allocation8 + $0xa0] sm:$0xff]
    %v2262 = vld [vmem:[#allocation8 + $0xa8] sm:$0xff]
    %v2263 = vld [vmem:[#allocation8 + $0xb0] sm:$0xff]
    %v2264 = vld [vmem:[#allocation8 + $0xb8] sm:$0xff]
    %v2265 = vld [vmem:[#allocation8 + $0xc0] sm:$0xff]
    %v2266 = vld [vmem:[#allocation8 + $0xc8] sm:$0xff]
    %v2267 = vld [vmem:[#allocation8 + $0xd0] sm:$0xff]
    %v2268 = vld [vmem:[#allocation8 + $0xd8] sm:$0xff]
    %v2269 = vld [vmem:[#allocation8 + $0xf0] sm:$0xff]
    %v2270 = vld [vmem:[#allocation8 + $0xf8] sm:$0xff]
    %v2271 = vld [vmem:[#allocation8 + $0x100] sm:$0xff]
    %v2272 = vld [vmem:[#allocation8 + $0x108] sm:$0xff]
    %v2273 = vld [vmem:[#allocation8 + $0x110] sm:$0xff]
    %v2274 = vld [vmem:[#allocation8 + $0x118] sm:$0xff]
    %v2275 = vld [vmem:[#allocation8 + $0x120] sm:$0xff]
    %v2276 = vld [vmem:[#allocation8 + $0x128] sm:$0xff]
    %v2277 = vld [vmem:[#allocation8 + $0x130] sm:$0xff]
    %v2278 = vld [vmem:[#allocation8 + $0x138] sm:$0xff]
    %v2279 = vld [vmem:[#allocation8 + $0x150] sm:$0xff]
    %v2280 = vld [vmem:[#allocation8 + $0x158] sm:$0xff]
    %v2281 = vld [vmem:[#allocation8 + $0x160] sm:$0xff]
    %v2282 = vld [vmem:[#allocation8 + $0x168] sm:$0xff]
    %v2283 = vld [vmem:[#allocation8 + $0x170] sm:$0xff]
    %v2284 = vld [vmem:[#allocation8 + $0x178] sm:$0xff]
    %v2285 = vld [vmem:[#allocation8 + $0x180] sm:$0xff]
    %v2286 = vld [vmem:[#allocation8 + $0x188] sm:$0xff]
    %v2287 = vld [vmem:[#allocation8 + $0x190] sm:$0xff]
    %v2288 = vld [vmem:[#allocation8 + $0x198] sm:$0xff]
    %v2289 = vld [vmem:[#allocation8 + $0x1b0] sm:$0xff]
    %v2290 = vld [vmem:[#allocation8 + $0x1b8] sm:$0xff]
    %v2291 = vld [vmem:[#allocation8 + $0x1c0] sm:$0xff]
    %v2292 = vld [vmem:[#allocation8 + $0x1c8] sm:$0xff]
    %v2293 = vld [vmem:[#allocation8 + $0x1d0] sm:$0xff]
    %v2294 = vld [vmem:[#allocation8 + $0x1d8] sm:$0xff]
    %v2295 = vld [vmem:[#allocation8 + $0x1e0] sm:$0xff]
    %v2296 = vld [vmem:[#allocation8 + $0x1e8] sm:$0xff]
    %v2297 = vld [vmem:[#allocation8 + $0x1f0] sm:$0xff]
    %v2298 = vld [vmem:[#allocation8 + $0x1f8] sm:$0xff]
    %v2299 = vld [vmem:[#allocation8 + $0x210] sm:$0xff]
    %v2300 = vld [vmem:[#allocation8 + $0x218] sm:$0xff]
    %v2301 = vld [vmem:[#allocation8 + $0x220] sm:$0xff]
    %v2302 = vld [vmem:[#allocation8 + $0x228] sm:$0xff]
    %v2303 = vld [vmem:[#allocation8 + $0x230] sm:$0xff]
    %v2304 = vld [vmem:[#allocation8 + $0x238] sm:$0xff]
    %v2305 = vld [vmem:[#allocation8 + $0x240] sm:$0xff]
    %v2306 = vld [vmem:[#allocation8 + $0x248] sm:$0xff]
    %v2307 = vld [vmem:[#allocation8 + $0x250] sm:$0xff]
    %v2308 = vld [vmem:[#allocation8 + $0x258] sm:$0xff]
    %v2309 = vld [vmem:[#allocation8 + $0x270] sm:$0xff]
    %v2310 = vld [vmem:[#allocation8 + $0x278] sm:$0xff]
    %v2311 = vld [vmem:[#allocation8 + $0x280] sm:$0xff]
    %v2312 = vld [vmem:[#allocation8 + $0x288] sm:$0xff]
    %v2313 = vld [vmem:[#allocation8 + $0x290] sm:$0xff]
    %v2314 = vld [vmem:[#allocation8 + $0x298] sm:$0xff]
    %v2315 = vld [vmem:[#allocation8 + $0x2a0] sm:$0xff]
    %v2316 = vld [vmem:[#allocation8 + $0x2a8] sm:$0xff]
    %v2317 = vld [vmem:[#allocation8 + $0x2b0] sm:$0xff]
    %v2318 = vld [vmem:[#allocation8 + $0x2b8] sm:$0xff]
    %v2319 = vld [vmem:[#allocation8 + $0x2d0] sm:$0xff]
    %v2320 = vld [vmem:[#allocation8 + $0x2d8] sm:$0xff]
    %v2321 = vld [vmem:[#allocation8 + $0x2e0] sm:$0xff]
    %v2322 = vld [vmem:[#allocation8 + $0x2e8] sm:$0xff]
    %v2323 = vld [vmem:[#allocation8 + $0x2f0] sm:$0xff]
    %v2324 = vld [vmem:[#allocation8 + $0x2f8] sm:$0xff]
    %v2325 = vld [vmem:[#allocation8 + $0x300] sm:$0xff]
    %v2326 = vld [vmem:[#allocation8 + $0x308] sm:$0xff]
    %v2327 = vld [vmem:[#allocation8 + $0x310] sm:$0xff]
    %v2328 = vld [vmem:[#allocation8 + $0x318] sm:$0xff]
    %v2329 = vld [vmem:[#allocation8 + $0x330] sm:$0xff]
    %v2330 = vld [vmem:[#allocation8 + $0x338] sm:$0xff]
    %v2331 = vld [vmem:[#allocation8 + $0x340] sm:$0xff]
    %v2332 = vld [vmem:[#allocation8 + $0x348] sm:$0xff]
    %v2333 = vld [vmem:[#allocation8 + $0x350] sm:$0xff]
    %v2334 = vld [vmem:[#allocation8 + $0x358] sm:$0xff]
    %v2335 = vld [vmem:[#allocation8 + $0x360] sm:$0xff]
    %v2336 = vld [vmem:[#allocation8 + $0x368] sm:$0xff]
    %v2337 = vld [vmem:[#allocation8 + $0x370] sm:$0xff]
    %v2338 = vld [vmem:[#allocation8 + $0x378] sm:$0xff]
    %v2339 = vld [vmem:[#allocation8 + $0x390] sm:$0xff]
    %v2340 = vld [vmem:[#allocation8 + $0x398] sm:$0xff]
    %v2341 = vld [vmem:[#allocation8 + $0x3a0] sm:$0xff]
    %v2342 = vld [vmem:[#allocation8 + $0x3a8] sm:$0xff]
    %v2343 = vld [vmem:[#allocation8 + $0x3b0] sm:$0xff]
    %v2344 = vld [vmem:[#allocation8 + $0x3b8] sm:$0xff]
    %v2345 = vld [vmem:[#allocation8 + $0x3c0] sm:$0xff]
    %v2346 = vld [vmem:[#allocation8 + $0x3c8] sm:$0xff]
    %v2347 = vld [vmem:[#allocation8 + $0x3d0] sm:$0xff]
    %v2348 = vld [vmem:[#allocation8 + $0x3d8] sm:$0xff]
    %v2349 = vld [vmem:[#allocation8 + $0x3f0] sm:$0xff]
    %v2350 = vld [vmem:[#allocation8 + $0x3f8] sm:$0xff]
    %v2351 = vld [vmem:[#allocation8 + $0x400] sm:$0xff]
    %v2352 = vld [vmem:[#allocation8 + $0x408] sm:$0xff]
    %v2353 = vld [vmem:[#allocation8 + $0x410] sm:$0xff]
    %v2354 = vld [vmem:[#allocation8 + $0x418] sm:$0xff]
    %v2355 = vld [vmem:[#allocation8 + $0x420] sm:$0xff]
    %v2356 = vld [vmem:[#allocation8 + $0x428] sm:$0xff]
    %v2357 = vld [vmem:[#allocation8 + $0x430] sm:$0xff]
    %v2358 = vld [vmem:[#allocation8 + $0x438] sm:$0xff]
    %v2359 = vld [vmem:[#allocation8 + $0x450] sm:$0xff]
    %v2360 = vld [vmem:[#allocation8 + $0x458] sm:$0xff]
    %v2361 = vld [vmem:[#allocation8 + $0x460] sm:$0xff]
    %v2362 = vld [vmem:[#allocation8 + $0x468] sm:$0xff]
    %v2363 = vld [vmem:[#allocation8 + $0x470] sm:$0xff]
    %v2364 = vld [vmem:[#allocation8 + $0x478] sm:$0xff]
    %v2365 = vld [vmem:[#allocation8 + $0x480] sm:$0xff]
    %v2366 = vld [vmem:[#allocation8 + $0x488] sm:$0xff]
    %v2367 = vld [vmem:[#allocation8 + $0x490] sm:$0xff]
    %v2368 = vld [vmem:[#allocation8 + $0x498] sm:$0xff]
    %v2369 = vld [vmem:[#allocation8 + $0x4b0] sm:$0xff]
    %v2370 = vld [vmem:[#allocation8 + $0x4b8] sm:$0xff]
    %v2371 = vld [vmem:[#allocation8 + $0x4c0] sm:$0xff]
    %v2372 = vld [vmem:[#allocation8 + $0x4c8] sm:$0xff]
    %v2373 = vld [vmem:[#allocation8 + $0x4d0] sm:$0xff]
    %v2374 = vld [vmem:[#allocation8 + $0x4d8] sm:$0xff]
    %v2375 = vld [vmem:[#allocation8 + $0x4e0] sm:$0xff]
    %v2376 = vld [vmem:[#allocation8 + $0x4e8] sm:$0xff]
    %v2377 = vld [vmem:[#allocation8 + $0x4f0] sm:$0xff]
    %v2378 = vld [vmem:[#allocation8 + $0x4f8] sm:$0xff]
    %v2379 = vld [vmem:[#allocation8 + $0x510] sm:$0xff]
    %v2380 = vld [vmem:[#allocation8 + $0x518] sm:$0xff]
    %v2381 = vld [vmem:[#allocation8 + $0x520] sm:$0xff]
    %v2382 = vld [vmem:[#allocation8 + $0x528] sm:$0xff]
    %v2383 = vld [vmem:[#allocation8 + $0x530] sm:$0xff]
    %v2384 = vld [vmem:[#allocation8 + $0x538] sm:$0xff]
    %v2385 = vld [vmem:[#allocation8 + $0x540] sm:$0xff]
    %v2386 = vld [vmem:[#allocation8 + $0x548] sm:$0xff]
    %v2387 = vld [vmem:[#allocation8 + $0x550] sm:$0xff]
    %v2388 = vld [vmem:[#allocation8 + $0x558] sm:$0xff]
    %v2389 = vld [vmem:[#allocation8 + $0x570] sm:$0xff]
    %v2390 = vld [vmem:[#allocation8 + $0x578] sm:$0xff]
    %v2391 = vld [vmem:[#allocation8 + $0x580] sm:$0xff]
    %v2392 = vld [vmem:[#allocation8 + $0x588] sm:$0xff]
    %v2393 = vld [vmem:[#allocation8 + $0x590] sm:$0xff]
    %v2394 = vld [vmem:[#allocation8 + $0x598] sm:$0xff]
    %v2395 = vld [vmem:[#allocation8 + $0x5a0] sm:$0xff]
    %v2396 = vld [vmem:[#allocation8 + $0x5a8] sm:$0xff]
    %v2397 = vld [vmem:[#allocation8 + $0x5b0] sm:$0xff]
    %v2398 = vld [vmem:[#allocation8 + $0x5b8] sm:$0xff]
    %v2399 = vld [vmem:[#allocation8 + $0x5d0] sm:$0xff]
    %v2400 = vld [vmem:[#allocation8 + $0x5d8] sm:$0xff]
    %v2401 = vld [vmem:[#allocation8 + $0x5e0] sm:$0xff]
    %v2402 = vld [vmem:[#allocation8 + $0x5e8] sm:$0xff]
    %v2403 = vld [vmem:[#allocation8 + $0x5f0] sm:$0xff]
    %v2404 = vld [vmem:[#allocation8 + $0x5f8] sm:$0xff]
    %v2405 = vld [vmem:[#allocation8 + $0x600] sm:$0xff]
    %v2406 = vld [vmem:[#allocation8 + $0x608] sm:$0xff]
    %v2407 = vld [vmem:[#allocation8 + $0x610] sm:$0xff]
    %v2408 = vld [vmem:[#allocation8 + $0x618] sm:$0xff]
    %v2409 = vld [vmem:[#allocation8 + $0x630] sm:$0xff]
    %v2410 = vld [vmem:[#allocation8 + $0x638] sm:$0xff]
    %v2411 = vld [vmem:[#allocation8 + $0x640] sm:$0xff]
    %v2412 = vld [vmem:[#allocation8 + $0x648] sm:$0xff]
    %v2413 = vld [vmem:[#allocation8 + $0x650] sm:$0xff]
    %v2414 = vld [vmem:[#allocation8 + $0x658] sm:$0xff]
    %v2415 = vld [vmem:[#allocation8 + $0x660] sm:$0xff]
    %v2416 = vld [vmem:[#allocation8 + $0x668] sm:$0xff]
    %v2417 = vld [vmem:[#allocation8 + $0x670] sm:$0xff]
    %v2418 = vld [vmem:[#allocation8 + $0x678] sm:$0xff]
    %v2419 = vld [vmem:[#allocation8 + $0x690] sm:$0xff]
    %v2420 = vld [vmem:[#allocation8 + $0x698] sm:$0xff]
    %v2421 = vld [vmem:[#allocation8 + $0x6a0] sm:$0xff]
    %v2422 = vld [vmem:[#allocation8 + $0x6a8] sm:$0xff]
    %v2423 = vld [vmem:[#allocation8 + $0x6b0] sm:$0xff]
    %v2424 = vld [vmem:[#allocation8 + $0x6b8] sm:$0xff]
    %v2425 = vld [vmem:[#allocation8 + $0x6c0] sm:$0xff]
    %v2426 = vld [vmem:[#allocation8 + $0x6c8] sm:$0xff]
    %v2427 = vld [vmem:[#allocation8 + $0x6d0] sm:$0xff]
    %v2428 = vld [vmem:[#allocation8 + $0x6d8] sm:$0xff]
    %v2429 = vld [vmem:[#allocation8 + $0x6f0] sm:$0xff]
    %v2430 = vld [vmem:[#allocation8 + $0x6f8] sm:$0xff]
    %v2431 = vld [vmem:[#allocation8 + $0x700] sm:$0xff]
    %v2432 = vld [vmem:[#allocation8 + $0x708] sm:$0xff]
    %v2433 = vld [vmem:[#allocation8 + $0x710] sm:$0xff]
    %v2434 = vld [vmem:[#allocation8 + $0x718] sm:$0xff]
    %v2435 = vld [vmem:[#allocation8 + $0x720] sm:$0xff]
    %v2436 = vld [vmem:[#allocation8 + $0x728] sm:$0xff]
    %v2437 = vld [vmem:[#allocation8 + $0x730] sm:$0xff]
    %v2438 = vld [vmem:[#allocation8 + $0x738] sm:$0xff]
    %v2439 = vld [vmem:[#allocation8 + $0x750] sm:$0xff]
    %v2440 = vld [vmem:[#allocation8 + $0x758] sm:$0xff]
    %v2441 = vld [vmem:[#allocation8 + $0x760] sm:$0xff]
    %v2442 = vld [vmem:[#allocation8 + $0x768] sm:$0xff]
    %v2443 = vld [vmem:[#allocation8 + $0x770] sm:$0xff]
    %v2444 = vld [vmem:[#allocation8 + $0x778] sm:$0xff]
    %v2445 = vld [vmem:[#allocation8 + $0x780] sm:$0xff]
    %v2446 = vld [vmem:[#allocation8 + $0x788] sm:$0xff]
    %v2447 = vld [vmem:[#allocation8 + $0x790] sm:$0xff]
    %v2448 = vld [vmem:[#allocation8 + $0x798] sm:$0xff]
    %v2449 = vld [vmem:[#allocation8 + $0x7b0] sm:$0xff]
    %v2450 = vld [vmem:[#allocation8 + $0x7b8] sm:$0xff]
    %v2451 = vld [vmem:[#allocation8 + $0x7c0] sm:$0xff]
    %v2452 = vld [vmem:[#allocation8 + $0x7c8] sm:$0xff]
    %v2453 = vld [vmem:[#allocation8 + $0x7d0] sm:$0xff]
    %v2454 = vld [vmem:[#allocation8 + $0x7d8] sm:$0xff]
    %v2455 = vld [vmem:[#allocation8 + $0x7e0] sm:$0xff]
    %v2456 = vld [vmem:[#allocation8 + $0x7e8] sm:$0xff]
    %v2457 = vld [vmem:[#allocation8 + $0x7f0] sm:$0xff]
    %v2458 = vld [vmem:[#allocation8 + $0x7f8] sm:$0xff]
    %v2459 = vld [vmem:[#allocation8 + $0x810] sm:$0xff]
    %v2460 = vld [vmem:[#allocation8 + $0x818] sm:$0xff]
    %v2461 = vld [vmem:[#allocation8 + $0x820] sm:$0xff]
    %v2462 = vld [vmem:[#allocation8 + $0x828] sm:$0xff]
    %v2463 = vld [vmem:[#allocation8 + $0x830] sm:$0xff]
    %v2464 = vld [vmem:[#allocation8 + $0x838] sm:$0xff]
    %v2465 = vld [vmem:[#allocation8 + $0x840] sm:$0xff]
    %v2466 = vld [vmem:[#allocation8 + $0x848] sm:$0xff]
    %v2467 = vld [vmem:[#allocation8 + $0x850] sm:$0xff]
    %v2468 = vld [vmem:[#allocation8 + $0x858] sm:$0xff]
    %v2469 = vld [vmem:[#allocation8 + $0x870] sm:$0xff]
    %v2470 = vld [vmem:[#allocation8 + $0x878] sm:$0xff]
    %v2471 = vld [vmem:[#allocation8 + $0x880] sm:$0xff]
    %v2472 = vld [vmem:[#allocation8 + $0x888] sm:$0xff]
    %v2473 = vld [vmem:[#allocation8 + $0x890] sm:$0xff]
    %v2474 = vld [vmem:[#allocation8 + $0x898] sm:$0xff]
    %v2475 = vld [vmem:[#allocation8 + $0x8a0] sm:$0xff]
    %v2476 = vld [vmem:[#allocation8 + $0x8a8] sm:$0xff]
    %v2477 = vld [vmem:[#allocation8 + $0x8b0] sm:$0xff]
    %v2478 = vld [vmem:[#allocation8 + $0x8b8] sm:$0xff]
    %v2479 = vld [vmem:[#allocation8 + $0x8d0] sm:$0xff]
    %v2480 = vld [vmem:[#allocation8 + $0x8d8] sm:$0xff]
    %v2481 = vld [vmem:[#allocation8 + $0x8e0] sm:$0xff]
    %v2482 = vld [vmem:[#allocation8 + $0x8e8] sm:$0xff]
    %v2483 = vld [vmem:[#allocation8 + $0x8f0] sm:$0xff]
    %v2484 = vld [vmem:[#allocation8 + $0x8f8] sm:$0xff]
    %v2485 = vld [vmem:[#allocation8 + $0x900] sm:$0xff]
    %v2486 = vld [vmem:[#allocation8 + $0x908] sm:$0xff]
    %v2487 = vld [vmem:[#allocation8 + $0x910] sm:$0xff]
    %v2488 = vld [vmem:[#allocation8 + $0x918] sm:$0xff]
    %v2489 = vld [vmem:[#allocation8 + $0x930] sm:$0xff]
    %v2490 = vld [vmem:[#allocation8 + $0x938] sm:$0xff]
    %v2491 = vld [vmem:[#allocation8 + $0x940] sm:$0xff]
    %v2492 = vld [vmem:[#allocation8 + $0x948] sm:$0xff]
    %v2493 = vld [vmem:[#allocation8 + $0x950] sm:$0xff]
    %v2494 = vld [vmem:[#allocation8 + $0x958] sm:$0xff]
    %v2495 = vld [vmem:[#allocation8 + $0x960] sm:$0xff]
    %v2496 = vld [vmem:[#allocation8 + $0x968] sm:$0xff]
    %v2497 = vld [vmem:[#allocation8 + $0x970] sm:$0xff]
    %v2498 = vld [vmem:[#allocation8 + $0x978] sm:$0xff]
    %v2499 = vld [vmem:[#allocation8 + $0x990] sm:$0xff]
    %v2500 = vld [vmem:[#allocation8 + $0x998] sm:$0xff]
    %v2501 = vld [vmem:[#allocation8 + $0x9a0] sm:$0xff]
    %v2502 = vld [vmem:[#allocation8 + $0x9a8] sm:$0xff]
    %v2503 = vld [vmem:[#allocation8 + $0x9b0] sm:$0xff]
    %v2504 = vld [vmem:[#allocation8 + $0x9b8] sm:$0xff]
    %v2505 = vld [vmem:[#allocation8 + $0x9c0] sm:$0xff]
    %v2506 = vld [vmem:[#allocation8 + $0x9c8] sm:$0xff]
    %v2507 = vld [vmem:[#allocation8 + $0x9d0] sm:$0xff]
    %v2508 = vld [vmem:[#allocation8 + $0x9d8] sm:$0xff]
    %v2509 = vld [vmem:[#allocation8 + $0x9f0] sm:$0xff]
    %v2510 = vld [vmem:[#allocation8 + $0x9f8] sm:$0xff]
    %v2511 = vld [vmem:[#allocation8 + $0xa00] sm:$0xff]
    %v2512 = vld [vmem:[#allocation8 + $0xa08] sm:$0xff]
    %v2513 = vld [vmem:[#allocation8 + $0xa10] sm:$0xff]
    %v2514 = vld [vmem:[#allocation8 + $0xa18] sm:$0xff]
    %v2515 = vld [vmem:[#allocation8 + $0xa20] sm:$0xff]
    %v2516 = vld [vmem:[#allocation8 + $0xa28] sm:$0xff]
    %v2517 = vld [vmem:[#allocation8 + $0xa30] sm:$0xff]
    %v2518 = vld [vmem:[#allocation8 + $0xa38] sm:$0xff]
    %v2519 = vld [vmem:[#allocation8 + $0xa50] sm:$0xff]
    %v2520 = vld [vmem:[#allocation8 + $0xa58] sm:$0xff]
    %v2521 = vld [vmem:[#allocation8 + $0xa60] sm:$0xff]
    %v2522 = vld [vmem:[#allocation8 + $0xa68] sm:$0xff]
    %v2523 = vld [vmem:[#allocation8 + $0xa70] sm:$0xff]
    %v2524 = vld [vmem:[#allocation8 + $0xa78] sm:$0xff]
    %v2525 = vld [vmem:[#allocation8 + $0xa80] sm:$0xff]
    %v2526 = vld [vmem:[#allocation8 + $0xa88] sm:$0xff]
    %v2527 = vld [vmem:[#allocation8 + $0xa90] sm:$0xff]
    %v2528 = vld [vmem:[#allocation8 + $0xa98] sm:$0xff]
    %v2529 = vld [vmem:[#allocation8 + $0xab0] sm:$0xff]
    %v2530 = vld [vmem:[#allocation8 + $0xab8] sm:$0xff]
    %v2531 = vld [vmem:[#allocation8 + $0xac0] sm:$0xff]
    %v2532 = vld [vmem:[#allocation8 + $0xac8] sm:$0xff]
    %v2533 = vld [vmem:[#allocation8 + $0xad0] sm:$0xff]
    %v2534 = vld [vmem:[#allocation8 + $0xad8] sm:$0xff]
    %v2535 = vld [vmem:[#allocation8 + $0xae0] sm:$0xff]
    %v2536 = vld [vmem:[#allocation8 + $0xae8] sm:$0xff]
    %v2537 = vld [vmem:[#allocation8 + $0xaf0] sm:$0xff]
    %v2538 = vld [vmem:[#allocation8 + $0xaf8] sm:$0xff]
    %v2539 = vld [vmem:[#allocation8 + $0xb10] sm:$0xff]
    %v2540 = vld [vmem:[#allocation8 + $0xb18] sm:$0xff]
    %v2541 = vld [vmem:[#allocation8 + $0xb20] sm:$0xff]
    %v2542 = vld [vmem:[#allocation8 + $0xb28] sm:$0xff]
    %v2543 = vld [vmem:[#allocation8 + $0xb30] sm:$0xff]
    %v2544 = vld [vmem:[#allocation8 + $0xb38] sm:$0xff]
    %v2545 = vld [vmem:[#allocation8 + $0xb40] sm:$0xff]
    %v2546 = vld [vmem:[#allocation8 + $0xb48] sm:$0xff]
    %v2547 = vld [vmem:[#allocation8 + $0xb50] sm:$0xff]
    %v2548 = vld [vmem:[#allocation8 + $0xb58] sm:$0xff]
    %v2549 = vld [vmem:[#allocation8 + $0xb70] sm:$0xff]
    %v2550 = vld [vmem:[#allocation8 + $0xb78] sm:$0xff]
    %v2551 = vld [vmem:[#allocation8 + $0xb80] sm:$0xff]
    %v2552 = vld [vmem:[#allocation8 + $0xb88] sm:$0xff]
    %v2553 = vld [vmem:[#allocation8 + $0xb90] sm:$0xff]
    %v2554 = vld [vmem:[#allocation8 + $0xb98] sm:$0xff]
    %v2555 = vld [vmem:[#allocation8 + $0xba0] sm:$0xff]
    %v2556 = vld [vmem:[#allocation8 + $0xba8] sm:$0xff]
    %v2557 = vld [vmem:[#allocation8 + $0xbb0] sm:$0xff]
    %v2558 = vld [vmem:[#allocation8 + $0xbb8] sm:$0xff]
    %v2559 = vld [vmem:[#allocation8 + $0xbd0] sm:$0xff]
    %v2560 = vld [vmem:[#allocation8 + $0xbd8] sm:$0xff]
    %v2561 = vld [vmem:[#allocation8 + $0xbe0] sm:$0xff]
    %v2562 = vld [vmem:[#allocation8 + $0xbe8] sm:$0xff]
    %v2563 = vld [vmem:[#allocation8 + $0xbf0] sm:$0xff]
    %v2564 = vld [vmem:[#allocation8 + $0xbf8] sm:$0xff]
    %v2565 = vld [vmem:[#allocation8 + $0xc00] sm:$0xff]
    %v2566 = vld [vmem:[#allocation8 + $0xc08] sm:$0xff]
    %v2567 = vld [vmem:[#allocation8 + $0xc10] sm:$0xff]
    %v2568 = vld [vmem:[#allocation8 + $0xc18] sm:$0xff]
    %v2569 = vld [vmem:[#allocation8 + $0xc30] sm:$0xff]
    %v2570 = vld [vmem:[#allocation8 + $0xc38] sm:$0xff]
    %v2571 = vld [vmem:[#allocation8 + $0xc40] sm:$0xff]
    %v2572 = vld [vmem:[#allocation8 + $0xc48] sm:$0xff]
    %v2573 = vld [vmem:[#allocation8 + $0xc50] sm:$0xff]
    %v2574 = vld [vmem:[#allocation8 + $0xc58] sm:$0xff]
    %v2575 = vld [vmem:[#allocation8 + $0xc60] sm:$0xff]
    %v2576 = vld [vmem:[#allocation8 + $0xc68] sm:$0xff]
    %v2577 = vld [vmem:[#allocation8 + $0xc70] sm:$0xff]
    %v2578 = vld [vmem:[#allocation8 + $0xc78] sm:$0xff]
    %v2579 = vld [vmem:[#allocation8 + $0xc90] sm:$0xff]
    %v2580 = vld [vmem:[#allocation8 + $0xc98] sm:$0xff]
    %v2581 = vld [vmem:[#allocation8 + $0xca0] sm:$0xff]
    %v2582 = vld [vmem:[#allocation8 + $0xca8] sm:$0xff]
    %v2583 = vld [vmem:[#allocation8 + $0xcb0] sm:$0xff]
    %v2584 = vld [vmem:[#allocation8 + $0xcb8] sm:$0xff]
    %v2585 = vld [vmem:[#allocation8 + $0xcc0] sm:$0xff]
    %v2586 = vld [vmem:[#allocation8 + $0xcc8] sm:$0xff]
    %v2587 = vld [vmem:[#allocation8 + $0xcd0] sm:$0xff]
    %v2588 = vld [vmem:[#allocation8 + $0xcd8] sm:$0xff]
    %v2589 = vld [vmem:[#allocation8 + $0xcf0] sm:$0xff]
    %v2590 = vld [vmem:[#allocation8 + $0xcf8] sm:$0xff]
    %v2591 = vld [vmem:[#allocation8 + $0xd00] sm:$0xff]
    %v2592 = vld [vmem:[#allocation8 + $0xd08] sm:$0xff]
    %v2593 = vld [vmem:[#allocation8 + $0xd10] sm:$0xff]
    %v2594 = vld [vmem:[#allocation8 + $0xd18] sm:$0xff]
    %v2595 = vld [vmem:[#allocation8 + $0xd20] sm:$0xff]
    %v2596 = vld [vmem:[#allocation8 + $0xd28] sm:$0xff]
    %v2597 = vld [vmem:[#allocation8 + $0xd30] sm:$0xff]
    %v2598 = vld [vmem:[#allocation8 + $0xd38] sm:$0xff]
    %v2599 = vld [vmem:[#allocation8 + $0xd50] sm:$0xff]
    %v2600 = vld [vmem:[#allocation8 + $0xd58] sm:$0xff]
    %v2601 = vld [vmem:[#allocation8 + $0xd60] sm:$0xff]
    %v2602 = vld [vmem:[#allocation8 + $0xd68] sm:$0xff]
    %v2603 = vld [vmem:[#allocation8 + $0xd70] sm:$0xff]
    %v2604 = vld [vmem:[#allocation8 + $0xd78] sm:$0xff]
    %v2605 = vld [vmem:[#allocation8 + $0xd80] sm:$0xff]
    %v2606 = vld [vmem:[#allocation8 + $0xd88] sm:$0xff]
    %v2607 = vld [vmem:[#allocation8 + $0xd90] sm:$0xff]
    %v2608 = vld [vmem:[#allocation8 + $0xd98] sm:$0xff]
    %v2609 = vld [vmem:[#allocation8 + $0xdb0] sm:$0xff]
    %v2610 = vld [vmem:[#allocation8 + $0xdb8] sm:$0xff]
    %v2611 = vld [vmem:[#allocation8 + $0xdc0] sm:$0xff]
    %v2612 = vld [vmem:[#allocation8 + $0xdc8] sm:$0xff]
    %v2613 = vld [vmem:[#allocation8 + $0xdd0] sm:$0xff]
    %v2614 = vld [vmem:[#allocation8 + $0xdd8] sm:$0xff]
    %v2615 = vld [vmem:[#allocation8 + $0xde0] sm:$0xff]
    %v2616 = vld [vmem:[#allocation8 + $0xde8] sm:$0xff]
    %v2617 = vld [vmem:[#allocation8 + $0xdf0] sm:$0xff]
    %v2618 = vld [vmem:[#allocation8 + $0xdf8] sm:$0xff]
    %v2619 = vld [vmem:[#allocation8 + $0xe10] sm:$0xff]
    %v2620 = vld [vmem:[#allocation8 + $0xe18] sm:$0xff]
    %v2621 = vld [vmem:[#allocation8 + $0xe20] sm:$0xff]
    %v2622 = vld [vmem:[#allocation8 + $0xe28] sm:$0xff]
    %v2623 = vld [vmem:[#allocation8 + $0xe30] sm:$0xff]
    %v2624 = vld [vmem:[#allocation8 + $0xe38] sm:$0xff]
    %v2625 = vld [vmem:[#allocation8 + $0xe40] sm:$0xff]
    %v2626 = vld [vmem:[#allocation8 + $0xe48] sm:$0xff]
    %v2627 = vld [vmem:[#allocation8 + $0xe50] sm:$0xff]
    %v2628 = vld [vmem:[#allocation8 + $0xe58] sm:$0xff]
    %v2629 = vld [vmem:[#allocation8 + $0xe70] sm:$0xff]
    %v2630 = vld [vmem:[#allocation8 + $0xe78] sm:$0xff]
    %v2631 = vld [vmem:[#allocation8 + $0xe80] sm:$0xff]
    %v2632 = vld [vmem:[#allocation8 + $0xe88] sm:$0xff]
    %v2633 = vld [vmem:[#allocation8 + $0xe90] sm:$0xff]
    %v2634 = vld [vmem:[#allocation8 + $0xe98] sm:$0xff]
    %v2635 = vld [vmem:[#allocation8 + $0xea0] sm:$0xff]
    %v2636 = vld [vmem:[#allocation8 + $0xea8] sm:$0xff]
    %v2637 = vld [vmem:[#allocation8 + $0xeb0] sm:$0xff]
    %v2638 = vld [vmem:[#allocation8 + $0xeb8] sm:$0xff]
    %v2639 = vld [vmem:[#allocation8 + $0xed0] sm:$0xff]
    %v2640 = vld [vmem:[#allocation8 + $0xed8] sm:$0xff]
    %v2641 = vld [vmem:[#allocation8 + $0xee0] sm:$0xff]
    %v2642 = vld [vmem:[#allocation8 + $0xee8] sm:$0xff]
    %v2643 = vld [vmem:[#allocation8 + $0xef0] sm:$0xff]
    %v2644 = vld [vmem:[#allocation8 + $0xef8] sm:$0xff]
    %v2645 = vld [vmem:[#allocation8 + $0xf00] sm:$0xff]
    %v2646 = vld [vmem:[#allocation8 + $0xf08] sm:$0xff]
    %v2647 = vld [vmem:[#allocation8 + $0xf10] sm:$0xff]
    %v2648 = vld [vmem:[#allocation8 + $0xf18] sm:$0xff]
    %v2649 = vld [vmem:[#allocation8 + $0xf30] sm:$0xff]
    %v2650 = vld [vmem:[#allocation8 + $0xf38] sm:$0xff]
    %v2651 = vld [vmem:[#allocation8 + $0xf40] sm:$0xff]
    %v2652 = vld [vmem:[#allocation8 + $0xf48] sm:$0xff]
    %v2653 = vld [vmem:[#allocation8 + $0xf50] sm:$0xff]
    %v2654 = vld [vmem:[#allocation8 + $0xf58] sm:$0xff]
    %v2655 = vld [vmem:[#allocation8 + $0xf60] sm:$0xff]
    %v2656 = vld [vmem:[#allocation8 + $0xf68] sm:$0xff]
    %v2657 = vld [vmem:[#allocation8 + $0xf70] sm:$0xff]
    %v2658 = vld [vmem:[#allocation8 + $0xf78] sm:$0xff]
    %v2659 = vld [vmem:[#allocation8 + $0xf90] sm:$0xff]
    %v2660 = vld [vmem:[#allocation8 + $0xf98] sm:$0xff]
    %v2661 = vld [vmem:[#allocation8 + $0xfa0] sm:$0xff]
    %v2662 = vld [vmem:[#allocation8 + $0xfa8] sm:$0xff]
    %v2663 = vld [vmem:[#allocation8 + $0xfb0] sm:$0xff]
    %v2664 = vld [vmem:[#allocation8 + $0xfb8] sm:$0xff]
    %v2665 = vld [vmem:[#allocation8 + $0xfc0] sm:$0xff]
    %v2666 = vld [vmem:[#allocation8 + $0xfc8] sm:$0xff]
    %v2667 = vld [vmem:[#allocation8 + $0xfd0] sm:$0xff]
    %v2668 = vld [vmem:[#allocation8 + $0xfd8] sm:$0xff]
    %v2669 = vld [vmem:[#allocation8 + $0xff0] sm:$0xff]
    %v2670 = vld [vmem:[#allocation8 + $0xff8] sm:$0xff]
    %v2671 = vld [vmem:[#allocation8 + $0x1000] sm:$0xff]
    %v2672 = vld [vmem:[#allocation8 + $0x1008] sm:$0xff]
    %v2673 = vld [vmem:[#allocation8 + $0x1010] sm:$0xff]
    %v2674 = vld [vmem:[#allocation8 + $0x1018] sm:$0xff]
    %v2675 = vld [vmem:[#allocation8 + $0x1020] sm:$0xff]
    %v2676 = vld [vmem:[#allocation8 + $0x1028] sm:$0xff]
    %v2677 = vld [vmem:[#allocation8 + $0x1030] sm:$0xff]
    %v2678 = vld [vmem:[#allocation8 + $0x1038] sm:$0xff]
    %v2679 = vld [vmem:[#allocation8 + $0x1050] sm:$0xff]
    %v2680 = vld [vmem:[#allocation8 + $0x1058] sm:$0xff]
    %v2681 = vld [vmem:[#allocation8 + $0x1060] sm:$0xff]
    %v2682 = vld [vmem:[#allocation8 + $0x1068] sm:$0xff]
    %v2683 = vld [vmem:[#allocation8 + $0x1070] sm:$0xff]
    %v2684 = vld [vmem:[#allocation8 + $0x1078] sm:$0xff]
    %v2685 = vld [vmem:[#allocation8 + $0x1080] sm:$0xff]
    %v2686 = vld [vmem:[#allocation8 + $0x1088] sm:$0xff]
    %v2687 = vld [vmem:[#allocation8 + $0x1090] sm:$0xff]
    %v2688 = vld [vmem:[#allocation8 + $0x1098] sm:$0xff]
    %v2689 = vld [vmem:[#allocation8 + $0x10b0] sm:$0xff]
    %v2690 = vld [vmem:[#allocation8 + $0x10b8] sm:$0xff]
    %v2691 = vld [vmem:[#allocation8 + $0x10c0] sm:$0xff]
    %v2692 = vld [vmem:[#allocation8 + $0x10c8] sm:$0xff]
    %v2693 = vld [vmem:[#allocation8 + $0x10d0] sm:$0xff]
    %v2694 = vld [vmem:[#allocation8 + $0x10d8] sm:$0xff]
    %v2695 = vld [vmem:[#allocation8 + $0x10e0] sm:$0xff]
    %v2696 = vld [vmem:[#allocation8 + $0x10e8] sm:$0xff]
    %v2697 = vld [vmem:[#allocation8 + $0x10f0] sm:$0xff]
    %v2698 = vld [vmem:[#allocation8 + $0x10f8] sm:$0xff]
    %v2699 = vld [vmem:[#allocation8 + $0x1110] sm:$0xff]
    %v2700 = vld [vmem:[#allocation8 + $0x1118] sm:$0xff]
    %v2701 = vld [vmem:[#allocation8 + $0x1120] sm:$0xff]
    %v2702 = vld [vmem:[#allocation8 + $0x1128] sm:$0xff]
    %v2703 = vld [vmem:[#allocation8 + $0x1130] sm:$0xff]
    %v2704 = vld [vmem:[#allocation8 + $0x1138] sm:$0xff]
    %v2705 = vld [vmem:[#allocation8 + $0x1140] sm:$0xff]
    %v2706 = vld [vmem:[#allocation8 + $0x1148] sm:$0xff]
    %v2707 = vld [vmem:[#allocation8 + $0x1150] sm:$0xff]
    %v2708 = vld [vmem:[#allocation8 + $0x1158] sm:$0xff]
    %v2709 = vld [vmem:[#allocation8 + $0x1170] sm:$0xff]
    %v2710 = vld [vmem:[#allocation8 + $0x1178] sm:$0xff]
    %v2711 = vld [vmem:[#allocation8 + $0x1180] sm:$0xff]
    %v2712 = vld [vmem:[#allocation8 + $0x1188] sm:$0xff]
    %v2713 = vld [vmem:[#allocation8 + $0x1190] sm:$0xff]
    %v2714 = vld [vmem:[#allocation8 + $0x1198] sm:$0xff]
    %v2715 = vld [vmem:[#allocation8 + $0x11a0] sm:$0xff]
    %v2716 = vld [vmem:[#allocation8 + $0x11a8] sm:$0xff]
    %v2717 = vld [vmem:[#allocation8 + $0x11b0] sm:$0xff]
    %v2718 = vld [vmem:[#allocation8 + $0x11b8] sm:$0xff]
    %v2719 = vld [vmem:[#allocation8 + $0x11d0] sm:$0xff]
    %v2720 = vld [vmem:[#allocation8 + $0x11d8] sm:$0xff]
    %v2721 = vld [vmem:[#allocation8 + $0x11e0] sm:$0xff]
    %v2722 = vld [vmem:[#allocation8 + $0x11e8] sm:$0xff]
    %v2723 = vld [vmem:[#allocation8 + $0x11f0] sm:$0xff]
    %v2724 = vld [vmem:[#allocation8 + $0x11f8] sm:$0xff]
    %v2725 = vld [vmem:[#allocation10] sm:$0xff]
    %v2726 = vld [vmem:[#allocation10 + $0x8] sm:$0xf]
    %v2729 = vlaneseq
    %v2730 = vshrl.u32 %v2729, 7
    %v2731 = vsub.s32 0, %v2730
    %v2732 = vrot.slane %v2725, %v2731
    %v2733 = vlaneseq
    %v2734 = vshrl.u32 %v2733, 7
    %v2735 = vsub.s32 1, %v2734
    %v2736 = vrot.slane %v2725, %v2735
    %v2737 = vlaneseq
    %v2738 = vshrl.u32 %v2737, 7
    %v2739 = vsub.s32 2, %v2738
    %v2740 = vrot.slane %v2725, %v2739
    %v2741 = vlaneseq
    %v2742 = vshrl.u32 %v2741, 7
    %v2743 = vsub.s32 6, %v2742
    %v2744 = vrot.slane %v2725, %v2743
    %v2745 = vlaneseq
    %v2746 = vshrl.u32 %v2745, 7
    %v2747 = vsub.s32 7, %v2746
    %v2748 = vrot.slane %v2725, %v2747
    %v2749 = vlaneseq
    %v2750 = vshrl.u32 %v2749, 7
    %v2751 = vsub.s32 0, %v2750
    %v2752 = vrot.slane %v2726, %v2751
    %v2753 = vlaneseq
    %v2754 = vshrl.u32 %v2753, 7
    %v2755 = vsub.s32 1, %v2754
    %v2756 = vrot.slane %v2726, %v2755
    %v2757 = vlaneseq
    %v2758 = vshrl.u32 %v2757, 7
    %v2759 = vsub.s32 2, %v2758
    %v2760 = vrot.slane %v2726, %v2759
    %v2761 = vlaneseq
    %v2762 = vshrl.u32 %v2761, 7
    %v2763 = vsub.s32 3, %v2762
    %v2764 = vrot.slane %v2726, %v2763
    %2774 = vmatprep.subr.mxu0 %v2396
    %2775 = vmatpush1.msra.mxu0 %v2395
    %2776 = vmatprep.subr.mxu0 %v2386
    %2777 = vmatpush1.msra.mxu0 %v2385
    %2778 = vmatprep.subr.mxu0 %v2376
    %2779 = vmatpush1.msra.mxu0 %v2375
    %2780 = vmatprep.subr.mxu0 %v2366
    %2781 = vmatpush1.msra.mxu0 %v2365
    %2782 = vmatprep.subr.mxu0 %v2356
    %2783 = vmatpush1.msra.mxu0 %v2355
    %2784 = vmatprep.subr.mxu0 %v2346
    %2785 = vmatpush1.msra.mxu0 %v2345
    %2786 = vmatprep.subr.mxu0 %v2336
    %2787 = vmatpush1.msra.mxu0 %v2335
    %2788 = vmatprep.subr.mxu0 %v2326
    %2789 = vmatpush1.msra.mxu0 %v2325
    %2790 = vmatprep.subr.mxu0 %v2316
    %2791 = vmatpush1.msra.mxu0 %v2315
    %2792 = vmatprep.subr.mxu0 %v2306
    %2793 = vmatpush1.msra.mxu0 %v2305
    %2794 = vmatprep.subr.mxu0 %v2296
    %2795 = vmatpush1.msra.mxu0 %v2295
    %2796 = vmatprep.subr.mxu0 %v2286
    %2797 = vmatpush1.msra.mxu0 %v2285
    %2798 = vmatprep.subr.mxu0 %v2276
    %2799 = vmatpush1.msra.mxu0 %v2275
    %2800 = vmatprep.subr.mxu0 %v2266
    %2801 = vmatpush1.msra.mxu0 %v2265
    %2802 = vmatprep.subr.mxu0 %v2256
    %2803 = vmatpush1.msra.mxu0 %v2255
    %2804 = vmatprep.subr.mxu0 %v2246
    %2805 = vmatpush1.msra.mxu0 %v2245
    %2806 = vmatprep.subr.mxu0 %v2556
    %2807 = vmatpush2.msra.mxu0 %v2555
    %2808 = vmatprep.subr.mxu0 %v2546
    %2809 = vmatpush2.msra.mxu0 %v2545
    %2810 = vmatprep.subr.mxu0 %v2536
    %2811 = vmatpush2.msra.mxu0 %v2535
    %2812 = vmatprep.subr.mxu0 %v2526
    %2813 = vmatpush2.msra.mxu0 %v2525
    %2814 = vmatprep.subr.mxu0 %v2516
    %2815 = vmatpush2.msra.mxu0 %v2515
    %2816 = vmatprep.subr.mxu0 %v2506
    %2817 = vmatpush2.msra.mxu0 %v2505
    %2818 = vmatprep.subr.mxu0 %v2496
    %2819 = vmatpush2.msra.mxu0 %v2495
    %2820 = vmatprep.subr.mxu0 %v2486
    %2821 = vmatpush2.msra.mxu0 %v2485
    %2822 = vmatprep.subr.mxu0 %v2476
    %2823 = vmatpush2.msra.mxu0 %v2475
    %2824 = vmatprep.subr.mxu0 %v2466
    %2825 = vmatpush2.msra.mxu0 %v2465
    %2826 = vmatprep.subr.mxu0 %v2456
    %2827 = vmatpush2.msra.mxu0 %v2455
    %2828 = vmatprep.subr.mxu0 %v2446
    %2829 = vmatpush2.msra.mxu0 %v2445
    %2830 = vmatprep.subr.mxu0 %v2436
    %2831 = vmatpush2.msra.mxu0 %v2435
    %2832 = vmatprep.subr.mxu0 %v2426
    %2833 = vmatpush2.msra.mxu0 %v2425
    %2834 = vmatprep.subr.mxu0 %v2416
    %2835 = vmatpush2.msra.mxu0 %v2415
    %2836 = vmatprep.subr.mxu0 %v2406
    %2837 = vmatpush2.msra.mxu0 %v2405
    %2838 = vmatprep.mubr.f32.mxu0 %v2243
    %2839 = vmatmul.mubr.f32.gmra.mxu0 %v2242
    %v2840 = vpop.f32.mrf.mxu0
    %v2841 = vadd.f32 %v2732, %v2840
    %v2842 = vpop.f32.mrf.mxu0
    %v2843 = vadd.f32 %v2736, %v2842
    %2844 = vdwg.mxu0
    %2845 = vmatprep.subr.mxu0 %v2716
    %2846 = vmatpush1.msra.mxu0 %v2715
    %2847 = vmatprep.subr.mxu0 %v2706
    %2848 = vmatpush1.msra.mxu0 %v2705
    %2849 = vmatprep.subr.mxu0 %v2696
    %2850 = vmatpush1.msra.mxu0 %v2695
    %2851 = vmatprep.subr.mxu0 %v2686
    %2852 = vmatpush1.msra.mxu0 %v2685
    %2853 = vmatprep.subr.mxu0 %v2676
    %2854 = vmatpush1.msra.mxu0 %v2675
    %2855 = vmatprep.subr.mxu0 %v2666
    %2856 = vmatpush1.msra.mxu0 %v2665
    %2857 = vmatprep.subr.mxu0 %v2656
    %2858 = vmatpush1.msra.mxu0 %v2655
    %2859 = vmatprep.subr.mxu0 %v2646
    %2860 = vmatpush1.msra.mxu0 %v2645
    %2861 = vmatprep.subr.mxu0 %v2636
    %2862 = vmatpush1.msra.mxu0 %v2635
    %2863 = vmatprep.subr.mxu0 %v2626
    %2864 = vmatpush1.msra.mxu0 %v2625
    %2865 = vmatprep.subr.mxu0 %v2616
    %2866 = vmatpush1.msra.mxu0 %v2615
    %2867 = vmatprep.subr.mxu0 %v2606
    %2868 = vmatpush1.msra.mxu0 %v2605
    %2869 = vmatprep.subr.mxu0 %v2596
    %2870 = vmatpush1.msra.mxu0 %v2595
    %2871 = vmatprep.subr.mxu0 %v2586
    %2872 = vmatpush1.msra.mxu0 %v2585
    %2873 = vmatprep.subr.mxu0 %v2576
    %2874 = vmatpush1.msra.mxu0 %v2575
    %2875 = vmatprep.subr.mxu0 %v2566
    %2876 = vmatpush1.msra.mxu0 %v2565
    %2877 = vmatprep.subr.mxu0 0.0
    %2878 = vmatpush2.msra.mxu0 0.0
    %2879 = vmatprep.subr.mxu0 0.0
    %2880 = vmatpush2.msra.mxu0 0.0
    %2881 = vmatprep.subr.mxu0 0.0
    %2882 = vmatpush2.msra.mxu0 0.0
    %2883 = vmatprep.subr.mxu0 0.0
    %2884 = vmatpush2.msra.mxu0 0.0
    %2885 = vmatprep.subr.mxu0 0.0
    %2886 = vmatpush2.msra.mxu0 0.0
    %2887 = vmatprep.subr.mxu0 0.0
    %2888 = vmatpush2.msra.mxu0 0.0
    %2889 = vmatprep.subr.mxu0 0.0
    %2890 = vmatpush2.msra.mxu0 0.0
    %2891 = vmatprep.subr.mxu0 0.0
    %2892 = vmatpush2.msra.mxu0 0.0
    %2893 = vmatprep.subr.mxu0 0.0
    %2894 = vmatpush2.msra.mxu0 0.0
    %2895 = vmatprep.subr.mxu0 0.0
    %2896 = vmatpush2.msra.mxu0 0.0
    %2897 = vmatprep.subr.mxu0 0.0
    %2898 = vmatpush2.msra.mxu0 0.0
    %2899 = vmatprep.subr.mxu0 0.0
    %2900 = vmatpush2.msra.mxu0 0.0
    %2901 = vmatprep.subr.mxu0 0.0
    %2902 = vmatpush2.msra.mxu0 0.0
    %2903 = vmatprep.subr.mxu0 0.0
    %2904 = vmatpush2.msra.mxu0 0.0
    %2905 = vmatprep.subr.mxu0 0.0
    %2906 = vmatpush2.msra.mxu0 0.0
    %2907 = vmatprep.subr.mxu0 0.0
    %2908 = vmatpush2.msra.mxu0 0.0
    %2909 = vmatprep.mubr.f32.mxu0 0.0
    %2910 = vmatmul.mubr.f32.gmra.mxu0 %v2244
    %v2911 = vpop.f32.mrf.mxu0
    %v2912 = vadd.f32 %v2841, %v2911
    %v2913 = vpop.f32.mrf.mxu0
    %v2914 = vadd.f32 %v2843, %v2913
    %2915 = vdwg.mxu0
    %2916 = vmatprep.subr.mxu0 %v2398
    %2917 = vmatpush1.msra.mxu0 %v2397
    %2918 = vmatprep.subr.mxu0 %v2388
    %2919 = vmatpush1.msra.mxu0 %v2387
    %2920 = vmatprep.subr.mxu0 %v2378
    %2921 = vmatpush1.msra.mxu0 %v2377
    %2922 = vmatprep.subr.mxu0 %v2368
    %2923 = vmatpush1.msra.mxu0 %v2367
    %2924 = vmatprep.subr.mxu0 %v2358
    %2925 = vmatpush1.msra.mxu0 %v2357
    %2926 = vmatprep.subr.mxu0 %v2348
    %2927 = vmatpush1.msra.mxu0 %v2347
    %2928 = vmatprep.subr.mxu0 %v2338
    %2929 = vmatpush1.msra.mxu0 %v2337
    %2930 = vmatprep.subr.mxu0 %v2328
    %2931 = vmatpush1.msra.mxu0 %v2327
    %2932 = vmatprep.subr.mxu0 %v2318
    %2933 = vmatpush1.msra.mxu0 %v2317
    %2934 = vmatprep.subr.mxu0 %v2308
    %2935 = vmatpush1.msra.mxu0 %v2307
    %2936 = vmatprep.subr.mxu0 %v2298
    %2937 = vmatpush1.msra.mxu0 %v2297
    %2938 = vmatprep.subr.mxu0 %v2288
    %2939 = vmatpush1.msra.mxu0 %v2287
    %2940 = vmatprep.subr.mxu0 %v2278
    %2941 = vmatpush1.msra.mxu0 %v2277
    %2942 = vmatprep.subr.mxu0 %v2268
    %2943 = vmatpush1.msra.mxu0 %v2267
    %2944 = vmatprep.subr.mxu0 %v2258
    %2945 = vmatpush1.msra.mxu0 %v2257
    %2946 = vmatprep.subr.mxu0 %v2248
    %2947 = vmatpush1.msra.mxu0 %v2247
    %2948 = vmatprep.subr.mxu0 %v2558
    %2949 = vmatpush2.msra.mxu0 %v2557
    %2950 = vmatprep.subr.mxu0 %v2548
    %2951 = vmatpush2.msra.mxu0 %v2547
    %2952 = vmatprep.subr.mxu0 %v2538
    %2953 = vmatpush2.msra.mxu0 %v2537
    %2954 = vmatprep.subr.mxu0 %v2528
    %2955 = vmatpush2.msra.mxu0 %v2527
    %2956 = vmatprep.subr.mxu0 %v2518
    %2957 = vmatpush2.msra.mxu0 %v2517
    %2958 = vmatprep.subr.mxu0 %v2508
    %2959 = vmatpush2.msra.mxu0 %v2507
    %2960 = vmatprep.subr.mxu0 %v2498
    %2961 = vmatpush2.msra.mxu0 %v2497
    %2962 = vmatprep.subr.mxu0 %v2488
    %2963 = vmatpush2.msra.mxu0 %v2487
    %2964 = vmatprep.subr.mxu0 %v2478
    %2965 = vmatpush2.msra.mxu0 %v2477
    %2966 = vmatprep.subr.mxu0 %v2468
    %2967 = vmatpush2.msra.mxu0 %v2467
    %2968 = vmatprep.subr.mxu0 %v2458
    %2969 = vmatpush2.msra.mxu0 %v2457
    %2970 = vmatprep.subr.mxu0 %v2448
    %2971 = vmatpush2.msra.mxu0 %v2447
    %2972 = vmatprep.subr.mxu0 %v2438
    %2973 = vmatpush2.msra.mxu0 %v2437
    %2974 = vmatprep.subr.mxu0 %v2428
    %2975 = vmatpush2.msra.mxu0 %v2427
    %2976 = vmatprep.subr.mxu0 %v2418
    %2977 = vmatpush2.msra.mxu0 %v2417
    %2978 = vmatprep.subr.mxu0 %v2408
    %2979 = vmatpush2.msra.mxu0 %v2407
    %2980 = vmatprep.mubr.f32.mxu0 %v2243
    %2981 = vmatmul.mubr.f32.gmra.mxu0 %v2242
    %v2982 = vpop.f32.mrf.mxu0
    %v2983 = vadd.f32 %v2740, %v2982
    %v2984 = vpop.f32.mrf.mxu0
    %2985 = vdwg.mxu0
    %2986 = vmatprep.subr.mxu0 %v2718
    %2987 = vmatpush1.msra.mxu0 %v2717
    %2988 = vmatprep.subr.mxu0 %v2708
    %2989 = vmatpush1.msra.mxu0 %v2707
    %2990 = vmatprep.subr.mxu0 %v2698
    %2991 = vmatpush1.msra.mxu0 %v2697
    %2992 = vmatprep.subr.mxu0 %v2688
    %2993 = vmatpush1.msra.mxu0 %v2687
    %2994 = vmatprep.subr.mxu0 %v2678
    %2995 = vmatpush1.msra.mxu0 %v2677
    %2996 = vmatprep.subr.mxu0 %v2668
    %2997 = vmatpush1.msra.mxu0 %v2667
    %2998 = vmatprep.subr.mxu0 %v2658
    %2999 = vmatpush1.msra.mxu0 %v2657
    %3000 = vmatprep.subr.mxu0 %v2648
    %3001 = vmatpush1.msra.mxu0 %v2647
    %3002 = vmatprep.subr.mxu0 %v2638
    %3003 = vmatpush1.msra.mxu0 %v2637
    %3004 = vmatprep.subr.mxu0 %v2628
    %3005 = vmatpush1.msra.mxu0 %v2627
    %3006 = vmatprep.subr.mxu0 %v2618
    %3007 = vmatpush1.msra.mxu0 %v2617
    %3008 = vmatprep.subr.mxu0 %v2608
    %3009 = vmatpush1.msra.mxu0 %v2607
    %3010 = vmatprep.subr.mxu0 %v2598
    %3011 = vmatpush1.msra.mxu0 %v2597
    %3012 = vmatprep.subr.mxu0 %v2588
    %3013 = vmatpush1.msra.mxu0 %v2587
    %3014 = vmatprep.subr.mxu0 %v2578
    %3015 = vmatpush1.msra.mxu0 %v2577
    %3016 = vmatprep.subr.mxu0 %v2568
    %3017 = vmatpush1.msra.mxu0 %v2567
    %3018 = vmatprep.subr.mxu0 0.0
    %3019 = vmatpush2.msra.mxu0 0.0
    %3020 = vmatprep.subr.mxu0 0.0
    %3021 = vmatpush2.msra.mxu0 0.0
    %3022 = vmatprep.subr.mxu0 0.0
    %3023 = vmatpush2.msra.mxu0 0.0
    %3024 = vmatprep.subr.mxu0 0.0
    %3025 = vmatpush2.msra.mxu0 0.0
    %3026 = vmatprep.subr.mxu0 0.0
    %3027 = vmatpush2.msra.mxu0 0.0
    %3028 = vmatprep.subr.mxu0 0.0
    %3029 = vmatpush2.msra.mxu0 0.0
    %3030 = vmatprep.subr.mxu0 0.0
    %3031 = vmatpush2.msra.mxu0 0.0
    %3032 = vmatprep.subr.mxu0 0.0
    %3033 = vmatpush2.msra.mxu0 0.0
    %3034 = vmatprep.subr.mxu0 0.0
    %3035 = vmatpush2.msra.mxu0 0.0
    %3036 = vmatprep.subr.mxu0 0.0
    %3037 = vmatpush2.msra.mxu0 0.0
    %3038 = vmatprep.subr.mxu0 0.0
    %3039 = vmatpush2.msra.mxu0 0.0
    %3040 = vmatprep.subr.mxu0 0.0
    %3041 = vmatpush2.msra.mxu0 0.0
    %3042 = vmatprep.subr.mxu0 0.0
    %3043 = vmatpush2.msra.mxu0 0.0
    %3044 = vmatprep.subr.mxu0 0.0
    %3045 = vmatpush2.msra.mxu0 0.0
    %3046 = vmatprep.subr.mxu0 0.0
    %3047 = vmatpush2.msra.mxu0 0.0
    %3048 = vmatprep.subr.mxu0 0.0
    %3049 = vmatpush2.msra.mxu0 0.0
    %3050 = vmatprep.mubr.f32.mxu0 0.0
    %3051 = vmatmul.mubr.f32.gmra.mxu0 %v2244
    %v3052 = vpop.f32.mrf.mxu0
    %v3053 = vadd.f32 %v2983, %v3052
    %v3054 = vpop.f32.mrf.mxu0
    %3055 = vdwg.mxu0
    %3056 = vmatprep.subr.mxu0 %v2400
    %3057 = vmatpush1.msra.mxu0 %v2399
    %3058 = vmatprep.subr.mxu0 %v2390
    %3059 = vmatpush1.msra.mxu0 %v2389
    %3060 = vmatprep.subr.mxu0 %v2380
    %3061 = vmatpush1.msra.mxu0 %v2379
    %3062 = vmatprep.subr.mxu0 %v2370
    %3063 = vmatpush1.msra.mxu0 %v2369
    %3064 = vmatprep.subr.mxu0 %v2360
    %3065 = vmatpush1.msra.mxu0 %v2359
    %3066 = vmatprep.subr.mxu0 %v2350
    %3067 = vmatpush1.msra.mxu0 %v2349
    %3068 = vmatprep.subr.mxu0 %v2340
    %3069 = vmatpush1.msra.mxu0 %v2339
    %3070 = vmatprep.subr.mxu0 %v2330
    %3071 = vmatpush1.msra.mxu0 %v2329
    %3072 = vmatprep.subr.mxu0 %v2320
    %3073 = vmatpush1.msra.mxu0 %v2319
    %3074 = vmatprep.subr.mxu0 %v2310
    %3075 = vmatpush1.msra.mxu0 %v2309
    %3076 = vmatprep.subr.mxu0 %v2300
    %3077 = vmatpush1.msra.mxu0 %v2299
    %3078 = vmatprep.subr.mxu0 %v2290
    %3079 = vmatpush1.msra.mxu0 %v2289
    %3080 = vmatprep.subr.mxu0 %v2280
    %3081 = vmatpush1.msra.mxu0 %v2279
    %3082 = vmatprep.subr.mxu0 %v2270
    %3083 = vmatpush1.msra.mxu0 %v2269
    %3084 = vmatprep.subr.mxu0 %v2260
    %3085 = vmatpush1.msra.mxu0 %v2259
    %3086 = vmatprep.subr.mxu0 %v2250
    %3087 = vmatpush1.msra.mxu0 %v2249
    %3088 = vmatprep.subr.mxu0 %v2560
    %3089 = vmatpush2.msra.mxu0 %v2559
    %3090 = vmatprep.subr.mxu0 %v2550
    %3091 = vmatpush2.msra.mxu0 %v2549
    %3092 = vmatprep.subr.mxu0 %v2540
    %3093 = vmatpush2.msra.mxu0 %v2539
    %3094 = vmatprep.subr.mxu0 %v2530
    %3095 = vmatpush2.msra.mxu0 %v2529
    %3096 = vmatprep.subr.mxu0 %v2520
    %3097 = vmatpush2.msra.mxu0 %v2519
    %3098 = vmatprep.subr.mxu0 %v2510
    %3099 = vmatpush2.msra.mxu0 %v2509
    %3100 = vmatprep.subr.mxu0 %v2500
    %3101 = vmatpush2.msra.mxu0 %v2499
    %3102 = vmatprep.subr.mxu0 %v2490
    %3103 = vmatpush2.msra.mxu0 %v2489
    %3104 = vmatprep.subr.mxu0 %v2480
    %3105 = vmatpush2.msra.mxu0 %v2479
    %3106 = vmatprep.subr.mxu0 %v2470
    %3107 = vmatpush2.msra.mxu0 %v2469
    %3108 = vmatprep.subr.mxu0 %v2460
    %3109 = vmatpush2.msra.mxu0 %v2459
    %3110 = vmatprep.subr.mxu0 %v2450
    %3111 = vmatpush2.msra.mxu0 %v2449
    %3112 = vmatprep.subr.mxu0 %v2440
    %3113 = vmatpush2.msra.mxu0 %v2439
    %3114 = vmatprep.subr.mxu0 %v2430
    %3115 = vmatpush2.msra.mxu0 %v2429
    %3116 = vmatprep.subr.mxu0 %v2420
    %3117 = vmatpush2.msra.mxu0 %v2419
    %3118 = vmatprep.subr.mxu0 %v2410
    %3119 = vmatpush2.msra.mxu0 %v2409
    %3120 = vmatprep.mubr.f32.mxu0 %v2243
    %3121 = vmatmul.mubr.f32.gmra.mxu0 %v2242
    %v3122 = vpop.f32.mrf.mxu0
    %v3123 = vadd.f32 %v2744, %v3122
    %v3124 = vpop.f32.mrf.mxu0
    %v3125 = vadd.f32 %v2748, %v3124
    %3126 = vdwg.mxu0
    %3127 = vmatprep.subr.mxu0 %v2720
    %3128 = vmatpush1.msra.mxu0 %v2719
    %3129 = vmatprep.subr.mxu0 %v2710
    %3130 = vmatpush1.msra.mxu0 %v2709
    %3131 = vmatprep.subr.mxu0 %v2700
    %3132 = vmatpush1.msra.mxu0 %v2699
    %3133 = vmatprep.subr.mxu0 %v2690
    %3134 = vmatpush1.msra.mxu0 %v2689
    %3135 = vmatprep.subr.mxu0 %v2680
    %3136 = vmatpush1.msra.mxu0 %v2679
    %3137 = vmatprep.subr.mxu0 %v2670
    %3138 = vmatpush1.msra.mxu0 %v2669
    %3139 = vmatprep.subr.mxu0 %v2660
    %3140 = vmatpush1.msra.mxu0 %v2659
    %3141 = vmatprep.subr.mxu0 %v2650
    %3142 = vmatpush1.msra.mxu0 %v2649
    %3143 = vmatprep.subr.mxu0 %v2640
    %3144 = vmatpush1.msra.mxu0 %v2639
    %3145 = vmatprep.subr.mxu0 %v2630
    %3146 = vmatpush1.msra.mxu0 %v2629
    %3147 = vmatprep.subr.mxu0 %v2620
    %3148 = vmatpush1.msra.mxu0 %v2619
    %3149 = vmatprep.subr.mxu0 %v2610
    %3150 = vmatpush1.msra.mxu0 %v2609
    %3151 = vmatprep.subr.mxu0 %v2600
    %3152 = vmatpush1.msra.mxu0 %v2599
    %3153 = vmatprep.subr.mxu0 %v2590
    %3154 = vmatpush1.msra.mxu0 %v2589
    %3155 = vmatprep.subr.mxu0 %v2580
    %3156 = vmatpush1.msra.mxu0 %v2579
    %3157 = vmatprep.subr.mxu0 %v2570
    %3158 = vmatpush1.msra.mxu0 %v2569
    %3159 = vmatprep.subr.mxu0 0.0
    %3160 = vmatpush2.msra.mxu0 0.0
    %3161 = vmatprep.subr.mxu0 0.0
    %3162 = vmatpush2.msra.mxu0 0.0
    %3163 = vmatprep.subr.mxu0 0.0
    %3164 = vmatpush2.msra.mxu0 0.0
    %3165 = vmatprep.subr.mxu0 0.0
    %3166 = vmatpush2.msra.mxu0 0.0
    %3167 = vmatprep.subr.mxu0 0.0
    %3168 = vmatpush2.msra.mxu0 0.0
    %3169 = vmatprep.subr.mxu0 0.0
    %3170 = vmatpush2.msra.mxu0 0.0
    %3171 = vmatprep.subr.mxu0 0.0
    %3172 = vmatpush2.msra.mxu0 0.0
    %3173 = vmatprep.subr.mxu0 0.0
    %3174 = vmatpush2.msra.mxu0 0.0
    %3175 = vmatprep.subr.mxu0 0.0
    %3176 = vmatpush2.msra.mxu0 0.0
    %3177 = vmatprep.subr.mxu0 0.0
    %3178 = vmatpush2.msra.mxu0 0.0
    %3179 = vmatprep.subr.mxu0 0.0
    %3180 = vmatpush2.msra.mxu0 0.0
    %3181 = vmatprep.subr.mxu0 0.0
    %3182 = vmatpush2.msra.mxu0 0.0
    %3183 = vmatprep.subr.mxu0 0.0
    %3184 = vmatpush2.msra.mxu0 0.0
    %3185 = vmatprep.subr.mxu0 0.0
    %3186 = vmatpush2.msra.mxu0 0.0
    %3187 = vmatprep.subr.mxu0 0.0
    %3188 = vmatpush2.msra.mxu0 0.0
    %3189 = vmatprep.subr.mxu0 0.0
    %3190 = vmatpush2.msra.mxu0 0.0
    %3191 = vmatprep.mubr.f32.mxu0 0.0
    %3192 = vmatmul.mubr.f32.gmra.mxu0 %v2244
    %v3193 = vpop.f32.mrf.mxu0
    %v3194 = vadd.f32 %v3123, %v3193
    %v3195 = vpop.f32.mrf.mxu0
    %v3196 = vadd.f32 %v3125, %v3195
    %3197 = vdwg.mxu0
    %3198 = vmatprep.subr.mxu0 %v2402
    %3199 = vmatpush1.msra.mxu0 %v2401
    %3200 = vmatprep.subr.mxu0 %v2392
    %3201 = vmatpush1.msra.mxu0 %v2391
    %3202 = vmatprep.subr.mxu0 %v2382
    %3203 = vmatpush1.msra.mxu0 %v2381
    %3204 = vmatprep.subr.mxu0 %v2372
    %3205 = vmatpush1.msra.mxu0 %v2371
    %3206 = vmatprep.subr.mxu0 %v2362
    %3207 = vmatpush1.msra.mxu0 %v2361
    %3208 = vmatprep.subr.mxu0 %v2352
    %3209 = vmatpush1.msra.mxu0 %v2351
    %3210 = vmatprep.subr.mxu0 %v2342
    %3211 = vmatpush1.msra.mxu0 %v2341
    %3212 = vmatprep.subr.mxu0 %v2332
    %3213 = vmatpush1.msra.mxu0 %v2331
    %3214 = vmatprep.subr.mxu0 %v2322
    %3215 = vmatpush1.msra.mxu0 %v2321
    %3216 = vmatprep.subr.mxu0 %v2312
    %3217 = vmatpush1.msra.mxu0 %v2311
    %3218 = vmatprep.subr.mxu0 %v2302
    %3219 = vmatpush1.msra.mxu0 %v2301
    %3220 = vmatprep.subr.mxu0 %v2292
    %3221 = vmatpush1.msra.mxu0 %v2291
    %3222 = vmatprep.subr.mxu0 %v2282
    %3223 = vmatpush1.msra.mxu0 %v2281
    %3224 = vmatprep.subr.mxu0 %v2272
    %3225 = vmatpush1.msra.mxu0 %v2271
    %3226 = vmatprep.subr.mxu0 %v2262
    %3227 = vmatpush1.msra.mxu0 %v2261
    %3228 = vmatprep.subr.mxu0 %v2252
    %3229 = vmatpush1.msra.mxu0 %v2251
    %3230 = vmatprep.subr.mxu0 %v2562
    %3231 = vmatpush2.msra.mxu0 %v2561
    %3232 = vmatprep.subr.mxu0 %v2552
    %3233 = vmatpush2.msra.mxu0 %v2551
    %3234 = vmatprep.subr.mxu0 %v2542
    %3235 = vmatpush2.msra.mxu0 %v2541
    %3236 = vmatprep.subr.mxu0 %v2532
    %3237 = vmatpush2.msra.mxu0 %v2531
    %3238 = vmatprep.subr.mxu0 %v2522
    %3239 = vmatpush2.msra.mxu0 %v2521
    %3240 = vmatprep.subr.mxu0 %v2512
    %3241 = vmatpush2.msra.mxu0 %v2511
    %3242 = vmatprep.subr.mxu0 %v2502
    %3243 = vmatpush2.msra.mxu0 %v2501
    %3244 = vmatprep.subr.mxu0 %v2492
    %3245 = vmatpush2.msra.mxu0 %v2491
    %3246 = vmatprep.subr.mxu0 %v2482
    %3247 = vmatpush2.msra.mxu0 %v2481
    %3248 = vmatprep.subr.mxu0 %v2472
    %3249 = vmatpush2.msra.mxu0 %v2471
    %3250 = vmatprep.subr.mxu0 %v2462
    %3251 = vmatpush2.msra.mxu0 %v2461
    %3252 = vmatprep.subr.mxu0 %v2452
    %3253 = vmatpush2.msra.mxu0 %v2451
    %3254 = vmatprep.subr.mxu0 %v2442
    %3255 = vmatpush2.msra.mxu0 %v2441
    %3256 = vmatprep.subr.mxu0 %v2432
    %3257 = vmatpush2.msra.mxu0 %v2431
    %3258 = vmatprep.subr.mxu0 %v2422
    %3259 = vmatpush2.msra.mxu0 %v2421
    %3260 = vmatprep.subr.mxu0 %v2412
    %3261 = vmatpush2.msra.mxu0 %v2411
    %3262 = vmatprep.mubr.f32.mxu0 %v2243
    %3263 = vmatmul.mubr.f32.gmra.mxu0 %v2242
    %v3264 = vpop.f32.mrf.mxu0
    %v3265 = vadd.f32 %v2752, %v3264
    %v3266 = vpop.f32.mrf.mxu0
    %v3267 = vadd.f32 %v2756, %v3266
    %3268 = vdwg.mxu0
    %3269 = vmatprep.subr.mxu0 %v2722
    %3270 = vmatpush1.msra.mxu0 %v2721
    %3271 = vmatprep.subr.mxu0 %v2712
    %3272 = vmatpush1.msra.mxu0 %v2711
    %3273 = vmatprep.subr.mxu0 %v2702
    %3274 = vmatpush1.msra.mxu0 %v2701
    %3275 = vmatprep.subr.mxu0 %v2692
    %3276 = vmatpush1.msra.mxu0 %v2691
    %3277 = vmatprep.subr.mxu0 %v2682
    %3278 = vmatpush1.msra.mxu0 %v2681
    %3279 = vmatprep.subr.mxu0 %v2672
    %3280 = vmatpush1.msra.mxu0 %v2671
    %3281 = vmatprep.subr.mxu0 %v2662
    %3282 = vmatpush1.msra.mxu0 %v2661
    %3283 = vmatprep.subr.mxu0 %v2652
    %3284 = vmatpush1.msra.mxu0 %v2651
    %3285 = vmatprep.subr.mxu0 %v2642
    %3286 = vmatpush1.msra.mxu0 %v2641
    %3287 = vmatprep.subr.mxu0 %v2632
    %3288 = vmatpush1.msra.mxu0 %v2631
    %3289 = vmatprep.subr.mxu0 %v2622
    %3290 = vmatpush1.msra.mxu0 %v2621
    %3291 = vmatprep.subr.mxu0 %v2612
    %3292 = vmatpush1.msra.mxu0 %v2611
    %3293 = vmatprep.subr.mxu0 %v2602
    %3294 = vmatpush1.msra.mxu0 %v2601
    %3295 = vmatprep.subr.mxu0 %v2592
    %3296 = vmatpush1.msra.mxu0 %v2591
    %3297 = vmatprep.subr.mxu0 %v2582
    %3298 = vmatpush1.msra.mxu0 %v2581
    %3299 = vmatprep.subr.mxu0 %v2572
    %3300 = vmatpush1.msra.mxu0 %v2571
    %3301 = vmatprep.subr.mxu0 0.0
    %3302 = vmatpush2.msra.mxu0 0.0
    %3303 = vmatprep.subr.mxu0 0.0
    %3304 = vmatpush2.msra.mxu0 0.0
    %3305 = vmatprep.subr.mxu0 0.0
    %3306 = vmatpush2.msra.mxu0 0.0
    %3307 = vmatprep.subr.mxu0 0.0
    %3308 = vmatpush2.msra.mxu0 0.0
    %3309 = vmatprep.subr.mxu0 0.0
    %3310 = vmatpush2.msra.mxu0 0.0
    %3311 = vmatprep.subr.mxu0 0.0
    %3312 = vmatpush2.msra.mxu0 0.0
    %3313 = vmatprep.subr.mxu0 0.0
    %3314 = vmatpush2.msra.mxu0 0.0
    %3315 = vmatprep.subr.mxu0 0.0
    %3316 = vmatpush2.msra.mxu0 0.0
    %3317 = vmatprep.subr.mxu0 0.0
    %3318 = vmatpush2.msra.mxu0 0.0
    %3319 = vmatprep.subr.mxu0 0.0
    %3320 = vmatpush2.msra.mxu0 0.0
    %3321 = vmatprep.subr.mxu0 0.0
    %3322 = vmatpush2.msra.mxu0 0.0
    %3323 = vmatprep.subr.mxu0 0.0
    %3324 = vmatpush2.msra.mxu0 0.0
    %3325 = vmatprep.subr.mxu0 0.0
    %3326 = vmatpush2.msra.mxu0 0.0
    %3327 = vmatprep.subr.mxu0 0.0
    %3328 = vmatpush2.msra.mxu0 0.0
    %3329 = vmatprep.subr.mxu0 0.0
    %3330 = vmatpush2.msra.mxu0 0.0
    %3331 = vmatprep.subr.mxu0 0.0
    %3332 = vmatpush2.msra.mxu0 0.0
    %3333 = vmatprep.mubr.f32.mxu0 0.0
    %3334 = vmatmul.mubr.f32.gmra.mxu0 %v2244
    %v3335 = vpop.f32.mrf.mxu0
    %v3336 = vadd.f32 %v3265, %v3335
    %v3337 = vpop.f32.mrf.mxu0
    %v3338 = vadd.f32 %v3267, %v3337
    %3339 = vdwg.mxu0
    %3340 = vmatprep.subr.mxu0 %v2404
    %3341 = vmatpush1.msra.mxu0 %v2403
    %3342 = vmatprep.subr.mxu0 %v2394
    %3343 = vmatpush1.msra.mxu0 %v2393
    %3344 = vmatprep.subr.mxu0 %v2384
    %3345 = vmatpush1.msra.mxu0 %v2383
    %3346 = vmatprep.subr.mxu0 %v2374
    %3347 = vmatpush1.msra.mxu0 %v2373
    %3348 = vmatprep.subr.mxu0 %v2364
    %3349 = vmatpush1.msra.mxu0 %v2363
    %3350 = vmatprep.subr.mxu0 %v2354
    %3351 = vmatpush1.msra.mxu0 %v2353
    %3352 = vmatprep.subr.mxu0 %v2344
    %3353 = vmatpush1.msra.mxu0 %v2343
    %3354 = vmatprep.subr.mxu0 %v2334
    %3355 = vmatpush1.msra.mxu0 %v2333
    %3356 = vmatprep.subr.mxu0 %v2324
    %3357 = vmatpush1.msra.mxu0 %v2323
    %3358 = vmatprep.subr.mxu0 %v2314
    %3359 = vmatpush1.msra.mxu0 %v2313
    %3360 = vmatprep.subr.mxu0 %v2304
    %3361 = vmatpush1.msra.mxu0 %v2303
    %3362 = vmatprep.subr.mxu0 %v2294
    %3363 = vmatpush1.msra.mxu0 %v2293
    %3364 = vmatprep.subr.mxu0 %v2284
    %3365 = vmatpush1.msra.mxu0 %v2283
    %3366 = vmatprep.subr.mxu0 %v2274
    %3367 = vmatpush1.msra.mxu0 %v2273
    %3368 = vmatprep.subr.mxu0 %v2264
    %3369 = vmatpush1.msra.mxu0 %v2263
    %3370 = vmatprep.subr.mxu0 %v2254
    %3371 = vmatpush1.msra.mxu0 %v2253
    %3372 = vmatprep.subr.mxu0 %v2564
    %3373 = vmatpush2.msra.mxu0 %v2563
    %3374 = vmatprep.subr.mxu0 %v2554
    %3375 = vmatpush2.msra.mxu0 %v2553
    %3376 = vmatprep.subr.mxu0 %v2544
    %3377 = vmatpush2.msra.mxu0 %v2543
    %3378 = vmatprep.subr.mxu0 %v2534
    %3379 = vmatpush2.msra.mxu0 %v2533
    %3380 = vmatprep.subr.mxu0 %v2524
    %3381 = vmatpush2.msra.mxu0 %v2523
    %3382 = vmatprep.subr.mxu0 %v2514
    %3383 = vmatpush2.msra.mxu0 %v2513
    %3384 = vmatprep.subr.mxu0 %v2504
    %3385 = vmatpush2.msra.mxu0 %v2503
    %3386 = vmatprep.subr.mxu0 %v2494
    %3387 = vmatpush2.msra.mxu0 %v2493
    %3388 = vmatprep.subr.mxu0 %v2484
    %3389 = vmatpush2.msra.mxu0 %v2483
    %3390 = vmatprep.subr.mxu0 %v2474
    %3391 = vmatpush2.msra.mxu0 %v2473
    %3392 = vmatprep.subr.mxu0 %v2464
    %3393 = vmatpush2.msra.mxu0 %v2463
    %3394 = vmatprep.subr.mxu0 %v2454
    %3395 = vmatpush2.msra.mxu0 %v2453
    %3396 = vmatprep.subr.mxu0 %v2444
    %3397 = vmatpush2.msra.mxu0 %v2443
    %3398 = vmatprep.subr.mxu0 %v2434
    %3399 = vmatpush2.msra.mxu0 %v2433
    %3400 = vmatprep.subr.mxu0 %v2424
    %3401 = vmatpush2.msra.mxu0 %v2423
    %3402 = vmatprep.subr.mxu0 %v2414
    %3403 = vmatpush2.msra.mxu0 %v2413
    %3404 = vmatprep.mubr.f32.mxu0 %v2243
    %3405 = vmatmul.mubr.f32.gmra.mxu0 %v2242
    %v3406 = vpop.f32.mrf.mxu0
    %v3407 = vadd.f32 %v2760, %v3406
    %v3408 = vpop.f32.mrf.mxu0
    %v3409 = vadd.f32 %v2764, %v3408
    %3410 = vdwg.mxu0
    %3411 = vmatprep.subr.mxu0 %v2724
    %3412 = vmatpush1.msra.mxu0 %v2723
    %3413 = vmatprep.subr.mxu0 %v2714
    %3414 = vmatpush1.msra.mxu0 %v2713
    %3415 = vmatprep.subr.mxu0 %v2704
    %3416 = vmatpush1.msra.mxu0 %v2703
    %3417 = vmatprep.subr.mxu0 %v2694
    %3418 = vmatpush1.msra.mxu0 %v2693
    %3419 = vmatprep.subr.mxu0 %v2684
    %3420 = vmatpush1.msra.mxu0 %v2683
    %3421 = vmatprep.subr.mxu0 %v2674
    %3422 = vmatpush1.msra.mxu0 %v2673
    %3423 = vmatprep.subr.mxu0 %v2664
    %3424 = vmatpush1.msra.mxu0 %v2663
    %3425 = vmatprep.subr.mxu0 %v2654
    %3426 = vmatpush1.msra.mxu0 %v2653
    %3427 = vmatprep.subr.mxu0 %v2644
    %3428 = vmatpush1.msra.mxu0 %v2643
    %3429 = vmatprep.subr.mxu0 %v2634
    %3430 = vmatpush1.msra.mxu0 %v2633
    %3431 = vmatprep.subr.mxu0 %v2624
    %3432 = vmatpush1.msra.mxu0 %v2623
    %3433 = vmatprep.subr.mxu0 %v2614
    %3434 = vmatpush1.msra.mxu0 %v2613
    %3435 = vmatprep.subr.mxu0 %v2604
    %3436 = vmatpush1.msra.mxu0 %v2603
    %3437 = vmatprep.subr.mxu0 %v2594
    %3438 = vmatpush1.msra.mxu0 %v2593
    %3439 = vmatprep.subr.mxu0 %v2584
    %3440 = vmatpush1.msra.mxu0 %v2583
    %3441 = vmatprep.subr.mxu0 %v2574
    %3442 = vmatpush1.msra.mxu0 %v2573
    %3443 = vmatprep.subr.mxu0 0.0
    %3444 = vmatpush2.msra.mxu0 0.0
    %3445 = vmatprep.subr.mxu0 0.0
    %3446 = vmatpush2.msra.mxu0 0.0
    %3447 = vmatprep.subr.mxu0 0.0
    %3448 = vmatpush2.msra.mxu0 0.0
    %3449 = vmatprep.subr.mxu0 0.0
    %3450 = vmatpush2.msra.mxu0 0.0
    %3451 = vmatprep.subr.mxu0 0.0
    %3452 = vmatpush2.msra.mxu0 0.0
    %3453 = vmatprep.subr.mxu0 0.0
    %3454 = vmatpush2.msra.mxu0 0.0
    %3455 = vmatprep.subr.mxu0 0.0
    %3456 = vmatpush2.msra.mxu0 0.0
    %3457 = vmatprep.subr.mxu0 0.0
    %3458 = vmatpush2.msra.mxu0 0.0
    %3459 = vmatprep.subr.mxu0 0.0
    %3460 = vmatpush2.msra.mxu0 0.0
    %3461 = vmatprep.subr.mxu0 0.0
    %3462 = vmatpush2.msra.mxu0 0.0
    %3463 = vmatprep.subr.mxu0 0.0
    %3464 = vmatpush2.msra.mxu0 0.0
    %3465 = vmatprep.subr.mxu0 0.0
    %3466 = vmatpush2.msra.mxu0 0.0
    %3467 = vmatprep.subr.mxu0 0.0
    %3468 = vmatpush2.msra.mxu0 0.0
    %3469 = vmatprep.subr.mxu0 0.0
    %3470 = vmatpush2.msra.mxu0 0.0
    %3471 = vmatprep.subr.mxu0 0.0
    %3472 = vmatpush2.msra.mxu0 0.0
    %3473 = vmatprep.subr.mxu0 0.0
    %3474 = vmatpush2.msra.mxu0 0.0
    %3475 = vmatprep.mubr.f32.mxu0 0.0
    %3476 = vmatmul.mubr.f32.gmra.mxu0 %v2244
    %v3477 = vpop.f32.mrf.mxu0
    %v3478 = vadd.f32 %v3407, %v3477
    %v3479 = vpop.f32.mrf.mxu0
    %v3480 = vadd.f32 %v3409, %v3479
    %3481 = vdwg.mxu0
    %v3482 = vxor.u32 %v2912, 2147483648
    %v3483 = vxor.u32 %v2914, 2147483648
    %v3484 = vxor.u32 %v3053, 2147483648
    %v3485 = vmul.f32 %v3482, 1.442695
    %v3486 = vpow.pop %v3485
    %v3487 = vmul.f32 %v3483, 1.442695
    %v3488 = vpow.pop %v3487
    %v3489 = vmul.f32 %v3484, 1.442695
    %v3490 = vpow.pop %v3489
    %v3491 = vadd.f32 %v3486, 1.0
    %v3492 = vadd.f32 %v3488, 1.0
    %v3493 = vadd.f32 %v3490, 1.0
    %v3494 = vrcp.pop %v3491
    %v3495 = vmul.f32 1.0, %v3494
    %v3496 = vrcp.pop %v3492
    %v3497 = vmul.f32 1.0, %v3496
    %v3498 = vrcp.pop %v3493
    %v3499 = vmul.f32 1.0, %v3498
    %v3500 = vtanh.pop %v3194
    %v3501 = vtanh.pop %v3196
    %v3502 = vtanh.pop %v3336
    %v3503 = vmul.f32 %v3495, %v3500
    %v3504 = vmul.f32 %v3497, %v3501
    %v3505 = vmul.f32 %v3499, %v3502
    %v3506 = vxor.u32 %v3338, 2147483648
    %v3507 = vxor.u32 %v3478, 2147483648
    %v3508 = vxor.u32 %v3480, 2147483648
    %v3509 = vmul.f32 %v3506, 1.442695
    %v3510 = vpow.pop %v3509
    %v3511 = vmul.f32 %v3507, 1.442695
    %v3512 = vpow.pop %v3511
    %v3513 = vmul.f32 %v3508, 1.442695
    %v3514 = vpow.pop %v3513
    %v3515 = vadd.f32 %v3510, 1.0
    %v3516 = vadd.f32 %v3512, 1.0
    %v3517 = vadd.f32 %v3514, 1.0
    %v3518 = vrcp.pop %v3515
    %v3519 = vmul.f32 1.0, %v3518
    %v3520 = vrcp.pop %v3516
    %v3521 = vmul.f32 1.0, %v3520
    %v3522 = vrcp.pop %v3517
    %v3523 = vmul.f32 1.0, %v3522
    %v3524 = vtanh.pop %v3503
    %v3525 = vtanh.pop %v3504
    %v3526 = vtanh.pop %v3505
    %v3527 = vmul.f32 %v3519, %v3524
    %v3528 = vmul.f32 %v3521, %v3525
    %v3529 = vmul.f32 %v3523, %v3526
    %v3530 = vld [vmem:[%s5] sm:$0xff]
    %v3531 = vld [vmem:[%s5 + $0x8] sm:$0xff]
    %v3532 = vld [vmem:[%s5 + $0x10] sm:$0xff]
    %v3533 = vld [vmem:[%s5 + $0x18] sm:$0xff]
    %v3534 = vld [vmem:[%s5 + $0x20] sm:$0xff]
    %v3535 = vld [vmem:[%s5 + $0x28] sm:$0xff]
    %v3536 = vld [vmem:[%s5 + $0x30] sm:$0xff]
    %v3537 = vld [vmem:[%s5 + $0x38] sm:$0xff]
    %v3538 = vld [vmem:[%s5 + $0x40] sm:$0xff]
    %v3539 = vld [vmem:[%s5 + $0x48] sm:$0xff]
    %v3540 = vld [vmem:[%s5 + $0x50] sm:$0xff]
    %v3541 = vld [vmem:[%s5 + $0x58] sm:$0xff]
    %v3542 = vld [vmem:[%s5 + $0x60] sm:$0xff]
    %v3543 = vld [vmem:[%s5 + $0x68] sm:$0xff]
    %v3544 = vld [vmem:[%s5 + $0x70] sm:$0xff]
    %v3545 = vld [vmem:[%s5 + $0x78] sm:$0xff]
    %v3546 = vld [vmem:[%s5 + $0x80] sm:$0xff]
    %v3547 = vld [vmem:[%s5 + $0x88] sm:$0xff]
    %v3548 = vld [vmem:[%s5 + $0x90] sm:$0xff]
    %v3549 = vld [vmem:[%s5 + $0x98] sm:$0xff]
    %v3550 = vld [vmem:[%s5 + $0xa0] sm:$0xff]
    %v3551 = vld [vmem:[%s5 + $0xa8] sm:$0xff]
    %v3552 = vld [vmem:[%s5 + $0xb0] sm:$0xff]
    %v3553 = vld [vmem:[%s5 + $0xb8] sm:$0xff]
    %v3554 = vld [vmem:[%s5 + $0xc0] sm:$0xff]
    %v3555 = vld [vmem:[%s5 + $0xc8] sm:$0xff]
    %v3556 = vld [vmem:[%s5 + $0xd0] sm:$0xff]
    %v3557 = vld [vmem:[%s5 + $0xd8] sm:$0xff]
    %v3558 = vld [vmem:[%s5 + $0xe0] sm:$0xff]
    %v3559 = vld [vmem:[%s5 + $0xe8] sm:$0xff]
    %v3560 = vld [vmem:[%s5 + $0xf0] sm:$0xff]
    %v3561 = vld [vmem:[%s5 + $0xf8] sm:$0xff]
    %v3562 = vld [vmem:[%s5 + $0x100] sm:$0xff]
    %v3563 = vld [vmem:[%s5 + $0x108] sm:$0xff]
    %v3564 = vld [vmem:[%s5 + $0x110] sm:$0xff]
    %v3565 = vld [vmem:[%s5 + $0x118] sm:$0xff]
    %v3566 = vld [vmem:[%s5 + $0x120] sm:$0xff]
    %v3567 = vld [vmem:[%s5 + $0x128] sm:$0xff]
    %v3568 = vld [vmem:[%s5 + $0x130] sm:$0xff]
    %v3569 = vld [vmem:[%s5 + $0x138] sm:$0xff]
    %v3570 = vld [vmem:[%s5 + $0x140] sm:$0xff]
    %v3571 = vld [vmem:[%s5 + $0x148] sm:$0xff]
    %v3572 = vld [vmem:[%s5 + $0x150] sm:$0xff]
    %v3573 = vld [vmem:[%s5 + $0x158] sm:$0xff]
    %v3574 = vld [vmem:[%s5 + $0x160] sm:$0xff]
    %v3575 = vld [vmem:[%s5 + $0x168] sm:$0xff]
    %v3576 = vld [vmem:[%s5 + $0x170] sm:$0xff]
    %v3577 = vld [vmem:[%s5 + $0x178] sm:$0xff]
    %v3578 = vld [vmem:[#allocation11] sm:$0x1]
    %v3580 = vlaneseq
    %v3581 = vshrl.u32 %v3580, 7
    %v3582 = vsub.s32 0, %v3581
    %v3583 = vrot.slane %v3578, %v3582
    %3585 = vmatprep.subr.mxu0 0.0
    %3586 = vmatpush1.msra.mxu0 %v3545
    %3587 = vmatprep.subr.mxu0 0.0
    %3588 = vmatpush1.msra.mxu0 %v3544
    %3589 = vmatprep.subr.mxu0 0.0
    %3590 = vmatpush1.msra.mxu0 %v3543
    %3591 = vmatprep.subr.mxu0 0.0
    %3592 = vmatpush1.msra.mxu0 %v3542
    %3593 = vmatprep.subr.mxu0 0.0
    %3594 = vmatpush1.msra.mxu0 %v3541
    %3595 = vmatprep.subr.mxu0 0.0
    %3596 = vmatpush1.msra.mxu0 %v3540
    %3597 = vmatprep.subr.mxu0 0.0
    %3598 = vmatpush1.msra.mxu0 %v3539
    %3599 = vmatprep.subr.mxu0 0.0
    %3600 = vmatpush1.msra.mxu0 %v3538
    %3601 = vmatprep.subr.mxu0 0.0
    %3602 = vmatpush1.msra.mxu0 %v3537
    %3603 = vmatprep.subr.mxu0 0.0
    %3604 = vmatpush1.msra.mxu0 %v3536
    %3605 = vmatprep.subr.mxu0 0.0
    %3606 = vmatpush1.msra.mxu0 %v3535
    %3607 = vmatprep.subr.mxu0 0.0
    %3608 = vmatpush1.msra.mxu0 %v3534
    %3609 = vmatprep.subr.mxu0 0.0
    %3610 = vmatpush1.msra.mxu0 %v3533
    %3611 = vmatprep.subr.mxu0 0.0
    %3612 = vmatpush1.msra.mxu0 %v3532
    %3613 = vmatprep.subr.mxu0 0.0
    %3614 = vmatpush1.msra.mxu0 %v3531
    %3615 = vmatprep.subr.mxu0 0.0
    %3616 = vmatpush1.msra.mxu0 %v3530
    %3617 = vmatprep.subr.mxu0 0.0
    %3618 = vmatpush2.msra.mxu0 %v3561
    %3619 = vmatprep.subr.mxu0 0.0
    %3620 = vmatpush2.msra.mxu0 %v3560
    %3621 = vmatprep.subr.mxu0 0.0
    %3622 = vmatpush2.msra.mxu0 %v3559
    %3623 = vmatprep.subr.mxu0 0.0
    %3624 = vmatpush2.msra.mxu0 %v3558
    %3625 = vmatprep.subr.mxu0 0.0
    %3626 = vmatpush2.msra.mxu0 %v3557
    %3627 = vmatprep.subr.mxu0 0.0
    %3628 = vmatpush2.msra.mxu0 %v3556
    %3629 = vmatprep.subr.mxu0 0.0
    %3630 = vmatpush2.msra.mxu0 %v3555
    %3631 = vmatprep.subr.mxu0 0.0
    %3632 = vmatpush2.msra.mxu0 %v3554
    %3633 = vmatprep.subr.mxu0 0.0
    %3634 = vmatpush2.msra.mxu0 %v3553
    %3635 = vmatprep.subr.mxu0 0.0
    %3636 = vmatpush2.msra.mxu0 %v3552
    %3637 = vmatprep.subr.mxu0 0.0
    %3638 = vmatpush2.msra.mxu0 %v3551
    %3639 = vmatprep.subr.mxu0 0.0
    %3640 = vmatpush2.msra.mxu0 %v3550
    %3641 = vmatprep.subr.mxu0 0.0
    %3642 = vmatpush2.msra.mxu0 %v3549
    %3643 = vmatprep.subr.mxu0 0.0
    %3644 = vmatpush2.msra.mxu0 %v3548
    %3645 = vmatprep.subr.mxu0 0.0
    %3646 = vmatpush2.msra.mxu0 %v3547
    %3647 = vmatprep.subr.mxu0 0.0
    %3648 = vmatpush2.msra.mxu0 %v3546
    %3649 = vmatprep.mubr.f32.mxu0 %v3528
    %3650 = vmatmul.mubr.f32.gmra.mxu0 %v3527
    %v3651 = vpop.f32.mrf.mxu0
    %v3652 = vadd.f32 %v3583, %v3651
    %v3653 = vpop.f32.mrf.mxu0
    %3654 = vdwg.mxu0
    %3655 = vmatprep.subr.mxu0 0.0
    %3656 = vmatpush1.msra.mxu0 %v3577
    %3657 = vmatprep.subr.mxu0 0.0
    %3658 = vmatpush1.msra.mxu0 %v3576
    %3659 = vmatprep.subr.mxu0 0.0
    %3660 = vmatpush1.msra.mxu0 %v3575
    %3661 = vmatprep.subr.mxu0 0.0
    %3662 = vmatpush1.msra.mxu0 %v3574
    %3663 = vmatprep.subr.mxu0 0.0
    %3664 = vmatpush1.msra.mxu0 %v3573
    %3665 = vmatprep.subr.mxu0 0.0
    %3666 = vmatpush1.msra.mxu0 %v3572
    %3667 = vmatprep.subr.mxu0 0.0
    %3668 = vmatpush1.msra.mxu0 %v3571
    %3669 = vmatprep.subr.mxu0 0.0
    %3670 = vmatpush1.msra.mxu0 %v3570
    %3671 = vmatprep.subr.mxu0 0.0
    %3672 = vmatpush1.msra.mxu0 %v3569
    %3673 = vmatprep.subr.mxu0 0.0
    %3674 = vmatpush1.msra.mxu0 %v3568
    %3675 = vmatprep.subr.mxu0 0.0
    %3676 = vmatpush1.msra.mxu0 %v3567
    %3677 = vmatprep.subr.mxu0 0.0
    %3678 = vmatpush1.msra.mxu0 %v3566
    %3679 = vmatprep.subr.mxu0 0.0
    %3680 = vmatpush1.msra.mxu0 %v3565
    %3681 = vmatprep.subr.mxu0 0.0
    %3682 = vmatpush1.msra.mxu0 %v3564
    %3683 = vmatprep.subr.mxu0 0.0
    %3684 = vmatpush1.msra.mxu0 %v3563
    %3685 = vmatprep.subr.mxu0 0.0
    %3686 = vmatpush1.msra.mxu0 %v3562
    %3687 = vmatprep.subr.mxu0 0.0
    %3688 = vmatpush2.msra.mxu0 0.0
    %3689 = vmatprep.subr.mxu0 0.0
    %3690 = vmatpush2.msra.mxu0 0.0
    %3691 = vmatprep.subr.mxu0 0.0
    %3692 = vmatpush2.msra.mxu0 0.0
    %3693 = vmatprep.subr.mxu0 0.0
    %3694 = vmatpush2.msra.mxu0 0.0
    %3695 = vmatprep.subr.mxu0 0.0
    %3696 = vmatpush2.msra.mxu0 0.0
    %3697 = vmatprep.subr.mxu0 0.0
    %3698 = vmatpush2.msra.mxu0 0.0
    %3699 = vmatprep.subr.mxu0 0.0
    %3700 = vmatpush2.msra.mxu0 0.0
    %3701 = vmatprep.subr.mxu0 0.0
    %3702 = vmatpush2.msra.mxu0 0.0
    %3703 = vmatprep.subr.mxu0 0.0
    %3704 = vmatpush2.msra.mxu0 0.0
    %3705 = vmatprep.subr.mxu0 0.0
    %3706 = vmatpush2.msra.mxu0 0.0
    %3707 = vmatprep.subr.mxu0 0.0
    %3708 = vmatpush2.msra.mxu0 0.0
    %3709 = vmatprep.subr.mxu0 0.0
    %3710 = vmatpush2.msra.mxu0 0.0
    %3711 = vmatprep.subr.mxu0 0.0
    %3712 = vmatpush2.msra.mxu0 0.0
    %3713 = vmatprep.subr.mxu0 0.0
    %3714 = vmatpush2.msra.mxu0 0.0
    %3715 = vmatprep.subr.mxu0 0.0
    %3716 = vmatpush2.msra.mxu0 0.0
    %3717 = vmatprep.subr.mxu0 0.0
    %3718 = vmatpush2.msra.mxu0 0.0
    %3719 = vmatprep.mubr.f32.mxu0 0.0
    %3720 = vmatmul.mubr.f32.gmra.mxu0 %v3529
    %v3721 = vpop.f32.mrf.mxu0
    %v3722 = vadd.f32 %v3652, %v3721
    %v3723 = vpop.f32.mrf.mxu0
    %3724 = vdwg.mxu0
    %v3725 = vld [vmem:[%s7] sm:$0xff]
    %v3726 = vld [vmem:[%s7 + $0x8] sm:$0xff]
    %v3727 = vld [vmem:[%s7 + $0x10] sm:$0xff]
    %v3728 = vld [vmem:[%s7 + $0x18] sm:$0xff]
    %v3729 = vld [vmem:[%s7 + $0x20] sm:$0xff]
    %v3730 = vld [vmem:[%s7 + $0x28] sm:$0xff]
    %v3731 = vld [vmem:[%s7 + $0x30] sm:$0xff]
    %v3732 = vld [vmem:[%s7 + $0x38] sm:$0xff]
    %v3733 = vld [vmem:[#allocation13] sm:$0x1]
    %v3735 = vlaneseq
    %v3736 = vshrl.u32 %v3735, 7
    %v3737 = vsub.s32 0, %v3736
    %v3738 = vrot.slane %v3733, %v3737
    %vm3740 = vcmask 523264
    %v3742 = vsel %vm3740, %v3722, 0
    %3744 = vmatprep.subr.mxu0 0.0
    %3745 = vmatpush1.msra.mxu0 0.0
    %3746 = vmatprep.subr.mxu0 0.0
    %3747 = vmatpush1.msra.mxu0 0.0
    %3748 = vmatprep.subr.mxu0 0.0
    %3749 = vmatpush1.msra.mxu0 0.0
    %3750 = vmatprep.subr.mxu0 0.0
    %3751 = vmatpush1.msra.mxu0 0.0
    %3752 = vmatprep.subr.mxu0 0.0
    %3753 = vmatpush1.msra.mxu0 0.0
    %3754 = vmatprep.subr.mxu0 0.0
    %3755 = vmatpush1.msra.mxu0 0.0
    %3756 = vmatprep.subr.mxu0 0.0
    %3757 = vmatpush1.msra.mxu0 0.0
    %3758 = vmatprep.subr.mxu0 0.0
    %3759 = vmatpush1.msra.mxu0 0.0
    %3760 = vmatprep.subr.mxu0 0.0
    %3761 = vmatpush1.msra.mxu0 %v3732
    %3762 = vmatprep.subr.mxu0 0.0
    %3763 = vmatpush1.msra.mxu0 %v3731
    %3764 = vmatprep.subr.mxu0 0.0
    %3765 = vmatpush1.msra.mxu0 %v3730
    %3766 = vmatprep.subr.mxu0 0.0
    %3767 = vmatpush1.msra.mxu0 %v3729
    %3768 = vmatprep.subr.mxu0 0.0
    %3769 = vmatpush1.msra.mxu0 %v3728
    %3770 = vmatprep.subr.mxu0 0.0
    %3771 = vmatpush1.msra.mxu0 %v3727
    %3772 = vmatprep.subr.mxu0 0.0
    %3773 = vmatpush1.msra.mxu0 %v3726
    %3774 = vmatprep.subr.mxu0 0.0
    %3775 = vmatpush1.msra.mxu0 %v3725
    %3776 = vmatprep.subr.mxu0 0.0
    %3777 = vmatpush2.msra.mxu0 0.0
    %3778 = vmatprep.subr.mxu0 0.0
    %3779 = vmatpush2.msra.mxu0 0.0
    %3780 = vmatprep.subr.mxu0 0.0
    %3781 = vmatpush2.msra.mxu0 0.0
    %3782 = vmatprep.subr.mxu0 0.0
    %3783 = vmatpush2.msra.mxu0 0.0
    %3784 = vmatprep.subr.mxu0 0.0
    %3785 = vmatpush2.msra.mxu0 0.0
    %3786 = vmatprep.subr.mxu0 0.0
    %3787 = vmatpush2.msra.mxu0 0.0
    %3788 = vmatprep.subr.mxu0 0.0
    %3789 = vmatpush2.msra.mxu0 0.0
    %3790 = vmatprep.subr.mxu0 0.0
    %3791 = vmatpush2.msra.mxu0 0.0
    %3792 = vmatprep.subr.mxu0 0.0
    %3793 = vmatpush2.msra.mxu0 0.0
    %3794 = vmatprep.subr.mxu0 0.0
    %3795 = vmatpush2.msra.mxu0 0.0
    %3796 = vmatprep.subr.mxu0 0.0
    %3797 = vmatpush2.msra.mxu0 0.0
    %3798 = vmatprep.subr.mxu0 0.0
    %3799 = vmatpush2.msra.mxu0 0.0
    %3800 = vmatprep.subr.mxu0 0.0
    %3801 = vmatpush2.msra.mxu0 0.0
    %3802 = vmatprep.subr.mxu0 0.0
    %3803 = vmatpush2.msra.mxu0 0.0
    %3804 = vmatprep.subr.mxu0 0.0
    %3805 = vmatpush2.msra.mxu0 0.0
    %3806 = vmatprep.subr.mxu0 0.0
    %3807 = vmatpush2.msra.mxu0 0.0
    %3808 = vmatprep.mubr.f32.mxu0 0.0
    %3809 = vmatmul.mubr.f32.gmra.mxu0 %v3742
    %v3810 = vpop.f32.mrf.mxu0
    %v3811 = vadd.f32 %v3738, %v3810
    %v3812 = vpop.f32.mrf.mxu0
    %3813 = vdwg.mxu0
    %3814 = vst.msk [vmem:[#allocation14] sm:$0xff] %vm3740, %v3722
    %vm3815 = vcmask 23552
    %3816 = vst.msk [vmem:[%s9] sm:$0xff] %vm3815, %v3811
    // Predicated region
    $region66: #{tpu_custom_call.1} parent=1 // pred_check
      _
    $region67: #{tpu_custom_call.1} parent=1 // pred_check_branch
      %3818 = sbr.rel (0) target = $region69
    $region68: #{tpu_custom_call.1} parent=1 // pred_region
      _
    $region69: #{tpu_custom_call.1} parent=1 // pred_fallthru
      _
    // Predicated region
    $region70: #{tpu_custom_call.1} parent=1 // pred_check
      _
    $region71: #{tpu_custom_call.1} parent=1 // pred_check_branch
      %3820 = sbr.rel (0) target = $region73
    $region72: #{tpu_custom_call.1} parent=1 // pred_region
      %s3822 = ssub.s32 128, 128
      %3823 = vsyncadd [#allocation4], %s3822
      %s3825 = sshll.u32 [#allocation14], 4
      %s3826 = int_to_ptr.vmem [resolvable:$true] %s3825
      %3828 = dma.vmem_to_hbm [thread:$0]  %s3826, 128, %s10, [#allocation4]
    $region73: #{tpu_custom_call.1} parent=1 // pred_fallthru
      _
    // Predicated region
    $region74: #{tpu_custom_call.1} parent=1 // pred_check
      _
    $region75: #{tpu_custom_call.1} parent=1 // pred_check_branch
      %3830 = sbr.rel (0) target = $region77
    $region76: #{tpu_custom_call.1} parent=1 // pred_region
      _
    $region77: #{tpu_custom_call.1} parent=1 // pred_fallthru
      _
    // Predicated region
    $region78: #{tpu_custom_call.1} parent=1 // pred_check
      _
    $region79: #{tpu_custom_call.1} parent=1 // pred_check_branch
      %3832 = sbr.rel (0) target = $region81
    $region80: #{tpu_custom_call.1} parent=1 // pred_region
      %3833 = dma.done [#allocation4], 128
    $region81: #{tpu_custom_call.1} parent=1 // pred_fallthru
      _
    %3834 = vsyncpa [#allocation3], 1
    %3835 = vsyncpa [#allocation6], 1
    %3836 = vsyncpa [#allocation9], 1
    %3837 = vsyncpa [#allocation12], 1
    %3838 = vsyncpa [#allocation4], 1

</llo_original>
